<compile_context>
chip_gen: v7x
topology: tpu7x:2x2x1
jax: 0.10.0
libtpu: 0.0.40
codegen_flags: <defaults>
</compile_context>

<pallas_src>
import jax
import jax.numpy as jnp
from jax import lax
from jax.experimental import pallas as pl
from jax.experimental.pallas import tpu as pltpu


# ------------------------------ small helpers -------------------------------

def _round_up(x, m):
    return ((x + m - 1) // m) * m


def _pad_axis(x, target, axis, value=0):
    pad = target - x.shape[axis]
    if pad <= 0:
        return x
    widths = [(0, 0)] * x.ndim
    widths[axis] = (0, pad)
    return jnp.pad(x, widths, constant_values=value)


def _vmem_limit_bytes():
    # Per-generation scoped-VMEM limit: v5e/v6e have 128 MiB physical VMEM,
    # v7x only 64 MiB.  Leave ~20% headroom for the compiler.
    try:
        cap = int(pltpu.get_tpu_info().vmem_capacity_bytes)
    except Exception:
        cap = 64 * 1024 * 1024
    return min(int(cap * 0.8), 112 * 1024 * 1024)


def _time_block(S):
    for ts in (8, 4, 2, 1):
        if S % ts == 0:
            return ts
    return 1


_V_TILE_TARGET = 2048          # vocab chunk width for the streamed FC projection


# --------------------------- in-kernel LSTM cell -----------------------------

def _lstm_cell(x_bf, h_f32, c_f32, wx_ref, wh_ref, b_ref, h_pad):
    """One LSTM cell step (PyTorch gate order i,f,g,o). Two MXU dots, no concat."""
    gates = (jnp.dot(x_bf, wx_ref[...], preferred_element_type=jnp.float32)
             + jnp.dot(h_f32.astype(jnp.bfloat16), wh_ref[...],
                       preferred_element_type=jnp.float32)
             + b_ref[...])
    i = jax.nn.sigmoid(gates[:, 0 * h_pad:1 * h_pad])
    f = jax.nn.sigmoid(gates[:, 1 * h_pad:2 * h_pad])
    g = jnp.tanh(gates[:, 2 * h_pad:3 * h_pad])
    o = jax.nn.sigmoid(gates[:, 3 * h_pad:4 * h_pad])
    c_new = f * c_f32 + i * g
    h_new = o * jnp.tanh(c_new)
    return h_new, c_new


# ------------------------------ encoder kernel ------------------------------

def _make_encoder_kernel(num_layers, ts_block):
    def kernel(x_ref, *rest):
        wx = [rest[3 * l + 0] for l in range(num_layers)]
        wh = [rest[3 * l + 1] for l in range(num_layers)]
        bb = [rest[3 * l + 2] for l in range(num_layers)]
        h_ref = rest[3 * num_layers + 0]          # (L, B, H_pad) resident output = carry
        c_ref = rest[3 * num_layers + 1]
        H = h_ref.shape[-1]

        @pl.when(pl.program_id(0) == 0)
        def _():
            h_ref[...] = jnp.zeros(h_ref.shape, h_ref.dtype)
            c_ref[...] = jnp.zeros(c_ref.shape, c_ref.dtype)

        # load the carry once per time block, iterate TS sub-steps on values
        h = [h_ref[l] for l in range(num_layers)]
        c = [c_ref[l] for l in range(num_layers)]
        for ts in range(ts_block):
            x = x_ref[ts]                          # (B, E_pad) bf16
            for l in range(num_layers):
                h_new, c_new = _lstm_cell(x, h[l], c[l], wx[l], wh[l], bb[l], H)
                h[l] = h_new
                c[l] = c_new
                x = h_new.astype(jnp.bfloat16)
        for l in range(num_layers):
            h_ref[l] = h[l]
            c_ref[l] = c[l]
    return kernel


def run_encoder(params, meta, src_emb, ts_block):
    S, B_pad, E_pad = src_emb.shape
    L = meta['num_layers']
    H_pad = meta['h_pad']

    in_specs = [pl.BlockSpec((ts_block, B_pad, E_pad), lambda i: (i, 0, 0))]  # streamed
    ins = [src_emb]
    for l in range(L):
        lyr = params['enc_lstm'][l]
        in_specs += [pl.BlockSpec(lyr['wx'].shape, lambda i: (0, 0)),          # resident
                     pl.BlockSpec(lyr['wh'].shape, lambda i: (0, 0)),
                     pl.BlockSpec(lyr['b'].shape, lambda i: (0, 0))]
        ins += [lyr['wx'], lyr['wh'], lyr['b']]

    state_shape = jax.ShapeDtypeStruct((L, B_pad, H_pad), jnp.float32)
    state_spec = pl.BlockSpec((L, B_pad, H_pad), lambda i: (0, 0, 0))          # resident carry

    h, c = pl.pallas_call(
        _make_encoder_kernel(L, ts_block),
        out_shape=[state_shape, state_shape],
        grid_spec=pltpu.PrefetchScalarGridSpec(
            num_scalar_prefetch=0,
            grid=(S // ts_block,),
            in_specs=in_specs,
            out_specs=[state_spec, state_spec]),
        compiler_params=pltpu.CompilerParams(
            dimension_semantics=("arbitrary",),
            vmem_limit_bytes=_vmem_limit_bytes()),
    )(*ins)
    return h, c


# ------------------------------ decoder kernel ------------------------------

def _make_decoder_kernel(num_layers):
    def kernel(tf_ref, xtf_ref, h0_ref, c0_ref, emb_ref, *rest):
        wx = [rest[3 * l + 0] for l in range(num_layers)]
        wh = [rest[3 * l + 1] for l in range(num_layers)]
        bb = [rest[3 * l + 2] for l in range(num_layers)]
        fcw_ref = rest[3 * num_layers + 0]        # (H_pad, V_TILE) streamed chunk
        fcb_ref = rest[3 * num_layers + 1]        # (1, V_TILE)     streamed chunk
        out_ref = rest[3 * num_layers + 2]        # (1, B, V_TILE)  logits chunk
        h_scr = rest[3 * num_layers + 3]          # (L, B, H_pad) f32 carry
        c_scr = rest[3 * num_layers + 4]
        htop = rest[3 * num_layers + 5]           # (B, H_pad) bf16  top hidden (cached per step)
        xcur = rest[3 * num_layers + 6]           # (B, E_pad) bf16  current input embedding
        xbest = rest[3 * num_layers + 7]          # (B, E_pad) f32   best-guess embedding acc
        rmax = rest[3 * num_layers + 8]           # (B, 1) f32       running max logit

        t = pl.program_id(0)
        v = pl.program_id(1)
        n_chunks = pl.num_programs(1)
        B, VT = out_ref.shape[1], out_ref.shape[2]
        H = h_scr.shape[-1]

        @pl.when(jnp.logical_and(t == 0, v == 0))
        def _init():
            # reference: outputs[0] stays zero and the first decoder input is a
            # pad_token_id row (row 0 of the streamed TF embeddings holds it).
            h_scr[...] = h0_ref[...]
            c_scr[...] = c0_ref[...]
            xcur[...] = xtf_ref[0]

        @pl.when(t == 0)
        def _zero():
            out_ref[...] = jnp.zeros(out_ref.shape, out_ref.dtype)

        @pl.when(t > 0)
        def _step():
            @pl.when(v == 0)
            def _lstm():
                x = xcur[...]
                for l in range(num_layers):
                    h_new, c_new = _lstm_cell(x, h_scr[l], c_scr[l],
                                              wx[l], wh[l], bb[l], H)
                    h_scr[l] = h_new
                    c_scr[l] = c_new
                    x = h_new.astype(jnp.bfloat16)
                htop[...] = x
                rmax[...] = jnp.full(rmax.shape, -jnp.inf, jnp.float32)
                xbest[...] = jnp.zeros(xbest.shape, xbest.dtype)

            # FC projection for this vocab chunk (padded lanes carry a -1e30 bias)
            logits = (jnp.dot(htop[...], fcw_ref[...],
                              preferred_element_type=jnp.float32) + fcb_ref[...])
            out_ref[0] = logits

            # greedy path only when not teacher-forcing this step
            @pl.when(tf_ref[t] == 0)
            def _greedy():
                lane = lax.broadcasted_iota(jnp.int32, (B, VT), 1)
                cmax = jnp.max(logits, axis=1, keepdims=True)
                first = jnp.min(jnp.where(logits == cmax, lane, VT),
                                axis=1, keepdims=True)
                onehot = (lane == first).astype(jnp.bfloat16)
                # TODO(synk): at production vocab sizes dec_emb should live in HBM
                # and this row lookup become a per-row DMA gather.
                start = pl.multiple_of(v * VT, VT)
                emb_chunk = emb_ref[pl.ds(start, VT), :]
                cand = jnp.dot(onehot, emb_chunk,
                               preferred_element_type=jnp.float32)   # (B, E_pad)
                better = cmax > rmax[...]                            # strict > : first index wins
                xbest[...] = jnp.where(better, cand, xbest[...])
                rmax[...] = jnp.maximum(rmax[...], cmax)

            @pl.when(v == n_chunks - 1)
            def _select_next():
                use_tf = tf_ref[t] == 1
                x_next = jnp.where(use_tf, xtf_ref[0].astype(jnp.float32), xbest[...])
                xcur[...] = x_next.astype(jnp.bfloat16)
    return kernel


def run_decoder(params, meta, enc_h, enc_c, xtf_emb, tf_mask):
    T, B_pad, E_pad = xtf_emb.shape
    L = meta['num_layers']
    H_pad, V_pad, VT = meta['h_pad'], meta['v_pad'], meta['v_tile']
    NV = V_pad // VT

    in_specs = [
        pl.BlockSpec((1, B_pad, E_pad), lambda t, v, tf: (t, 0, 0)),   # TF embeddings (streamed)
        pl.BlockSpec((L, B_pad, H_pad), lambda t, v, tf: (0, 0, 0)),   # encoder hidden (resident)
        pl.BlockSpec((L, B_pad, H_pad), lambda t, v, tf: (0, 0, 0)),   # encoder cell   (resident)
        pl.BlockSpec((V_pad, E_pad), lambda t, v, tf: (0, 0)),         # dec embedding  (resident)
    ]
    ins = [xtf_emb, enc_h, enc_c, params['dec_emb']]
    for l in range(L):
        lyr = params['dec_lstm'][l]
        in_specs += [pl.BlockSpec(lyr['wx'].shape, lambda t, v, tf: (0, 0)),
                     pl.BlockSpec(lyr['wh'].shape, lambda t, v, tf: (0, 0)),
                     pl.BlockSpec(lyr['b'].shape, lambda t, v, tf: (0, 0))]
        ins += [lyr['wx'], lyr['wh'], lyr['b']]
    in_specs += [pl.BlockSpec((H_pad, VT), lambda t, v, tf: (0, v)),   # fc_w chunk (streamed)
                 pl.BlockSpec((1, VT), lambda t, v, tf: (0, v))]       # fc_b chunk (streamed)
    ins += [params['fc_w'], params['fc_b']]

    out = pl.pallas_call(
        _make_decoder_kernel(L),
        out_shape=jax.ShapeDtypeStruct((T, B_pad, V_pad), jnp.float32),
        grid_spec=pltpu.PrefetchScalarGridSpec(
            num_scalar_prefetch=1,                                     # tf_mask -> SMEM
            grid=(T, NV),
            in_specs=in_specs,
            out_specs=pl.BlockSpec((1, B_pad, VT), lambda t, v, tf: (t, 0, v)),
            scratch_shapes=[
                pltpu.VMEM((L, B_pad, H_pad), jnp.float32),   # hidden carry
                pltpu.VMEM((L, B_pad, H_pad), jnp.float32),   # cell carry
                pltpu.VMEM((B_pad, H_pad), jnp.bfloat16),     # top hidden (bf16, per step)
                pltpu.VMEM((B_pad, E_pad), jnp.bfloat16),     # current input embedding
                pltpu.VMEM((B_pad, E_pad), jnp.float32),      # best-guess embedding acc
                pltpu.VMEM((B_pad, 1), jnp.float32),          # running max logit
            ]),
        compiler_params=pltpu.CompilerParams(
            dimension_semantics=("arbitrary", "arbitrary"),
            vmem_limit_bytes=_vmem_limit_bytes()),
    )(tf_mask, *ins)
    return out


# ----------------------------- parameter init -------------------------------

def _init_lstm_layer(key, in_dim, hidden, in_pad, h_pad):
    k1, k2, k3, k4 = jax.random.split(key, 4)
    scale = 1.0 / float(hidden) ** 0.5
    wih = jax.random.uniform(k1, (in_dim, 4 * hidden), jnp.float32, -scale, scale)
    whh = jax.random.uniform(k2, (hidden, 4 * hidden), jnp.float32, -scale, scale)
    b_ih = jax.random.uniform(k3, (4 * hidden,), jnp.float32, -scale, scale)
    b_hh = jax.random.uniform(k4, (4 * hidden,), jnp.float32, -scale, scale)

    def pad_gate_cols(w):
        w = w.reshape(w.shape[0], 4, hidden)
        w = _pad_axis(w, h_pad, 2)
        return w.reshape(w.shape[0], 4 * h_pad)

    wx = _pad_axis(pad_gate_cols(wih), in_pad, 0).astype(jnp.bfloat16)
    wh = _pad_axis(pad_gate_cols(whh), h_pad, 0).astype(jnp.bfloat16)
    b = _pad_axis((b_ih + b_hh).reshape(4, hidden), h_pad, 1)
    b = b.reshape(1, 4 * h_pad).astype(jnp.float32)
    return {'wx': wx, 'wh': wh, 'b': b}


def init_params(key, vocab, emb, hidden, num_layers):
    e_pad = _round_up(emb, 128)
    h_pad = _round_up(hidden, 128)
    v_tile = min(_V_TILE_TARGET, _round_up(vocab, 128))
    v_pad = _round_up(vocab, v_tile)

    keys = jax.random.split(key, 4 + 2 * num_layers)
    enc_emb = 0.1 * jax.random.normal(keys[0], (vocab, emb), jnp.float32)
    dec_emb = 0.1 * jax.random.normal(keys[1], (vocab, emb), jnp.float32)

    params = {
        'enc_emb': _pad_axis(enc_emb, e_pad, 1).astype(jnp.bfloat16),
        'dec_emb': _pad_axis(_pad_axis(dec_emb, e_pad, 1), v_pad, 0).astype(jnp.bfloat16),
        'enc_lstm': [],
        'dec_lstm': [],
    }
    for l in range(num_layers):
        in_dim = emb if l == 0 else hidden
        in_pad = e_pad if l == 0 else h_pad
        params['enc_lstm'].append(
            _init_lstm_layer(keys[4 + l], in_dim, hidden, in_pad, h_pad))
        params['dec_lstm'].append(
            _init_lstm_layer(keys[4 + num_layers + l], in_dim, hidden, in_pad, h_pad))

    scale = 1.0 / float(hidden) ** 0.5
    fc_w = jax.random.uniform(keys[2], (hidden, vocab), jnp.float32, -scale, scale)
    fc_b = jax.random.uniform(keys[3], (vocab,), jnp.float32, -scale, scale)
    params['fc_w'] = _pad_axis(_pad_axis(fc_w, h_pad, 0), v_pad, 1).astype(jnp.bfloat16)
    # padded vocab lanes get a huge negative bias so they can never win the argmax
    params['fc_b'] = _pad_axis(fc_b.reshape(1, vocab), v_pad, 1,
                               value=-1e30).astype(jnp.float32)

    meta = dict(vocab=vocab, emb=emb, hidden=hidden, num_layers=num_layers,
                v_pad=v_pad, e_pad=e_pad, h_pad=h_pad, v_tile=v_tile)
    return params, meta


# -------------------------------- forward -----------------------------------

def seq2seq_forward(params, meta, source, target, tf_key,
                    teacher_force_ratio=0.5, pad_token_id=0):
    """source: (S, B) int32, target: (T, B) int32 (may contain -100).
    Returns outputs: (T, B, vocab) float32; outputs[0] is all zeros."""
    S, B = source.shape
    T = target.shape[0]
    V = meta['vocab']
    B_pad = _round_up(B, 8)

    # ---------------- encoder ----------------
    # TODO(synk): dropout (p=0.5) on embeddings / between LSTM layers runs in
    # eval mode (identity) to keep the kernel deterministic.
    src = source.astype(jnp.int32)
    if B_pad != B:
        src = jnp.pad(src, ((0, 0), (0, B_pad - B)), constant_values=pad_token_id)
    src_emb = params['enc_emb'][src]                       # (S, B_pad, E_pad) bf16 (XLA gather)
    enc_h, enc_c = run_encoder(params, meta, src_emb, _time_block(S))

    # ---------------- decoder ----------------
    target = jnp.where(target == -100, pad_token_id, target)   # prepare_decoder_inputs
    tgt = target.astype(jnp.int32)
    if B_pad != B:
        tgt = jnp.pad(tgt, ((0, 0), (0, B_pad - B)), constant_values=pad_token_id)
    # Teacher-forcing input embeddings, pre-gathered by XLA.  Row 0 holds the
    # pad_token_id embedding = the first decoder input (as in the reference).
    tgt_in = tgt.at[0].set(pad_token_id)
    xtf_emb = params['dec_emb'][tgt_in]                    # (T, B_pad, E_pad) bf16

    # one shared teacher-forcing coin per step (like python random.random())
    coins = jax.random.uniform(tf_key, (T,))
    tf_mask = (coins < teacher_force_ratio).astype(jnp.int32)

    out_pad = run_decoder(params, meta, enc_h, enc_c, xtf_emb, tf_mask)
    return out_pad[:, :B, :V]                              # (T, B, vocab)


# --------------------------------- main --------------------------------------

if __name__ == "__main__":
    VOCAB = 64        # stands in for tokenizer.vocab_size
    EMB = 16          # stands in for embedding_size=300
    HIDDEN = 32       # stands in for hidden_size=1024
    LAYERS = 2
    B, S, T = 2, 8, 8
    PAD_ID = 0

    key = jax.random.PRNGKey(0)
    pk, sk, tk, tfk = jax.random.split(key, 4)

    params, meta = init_params(pk, VOCAB, EMB, HIDDEN, LAYERS)
    source = jax.random.randint(sk, (S, B), 0, VOCAB, dtype=jnp.int32)
    target = jax.random.randint(tk, (T, B), 0, VOCAB, dtype=jnp.int32)
    # exercise prepare_decoder_inputs (-100 -> pad_token_id)
    target = target.at[2, 0].set(-100)

    out = seq2seq_forward(params, meta, source, target, tfk,
                          teacher_force_ratio=0.5, pad_token_id=PAD_ID)
    out = jax.block_until_ready(out)

    assert out.shape == (T, B, VOCAB), out.shape
    assert bool(jnp.all(out[0] == 0.0))   # outputs[0] stays zero, as in PyTorch
    assert bool(jnp.all(jnp.isfinite(out)))
    print("KERNEL_OK")
</pallas_src>

<mosaic_0001>
module attributes {stable_mosaic.version = 11 : i64} {
  func.func @kernel(%arg0: i32, %arg1: memref<8x8x128xbf16, #tpu.memory_space<vmem>>, %arg2: memref<128x512xbf16, #tpu.memory_space<vmem>>, %arg3: memref<128x512xbf16, #tpu.memory_space<vmem>>, %arg4: memref<1x512xf32, #tpu.memory_space<vmem>>, %arg5: memref<128x512xbf16, #tpu.memory_space<vmem>>, %arg6: memref<128x512xbf16, #tpu.memory_space<vmem>>, %arg7: memref<1x512xf32, #tpu.memory_space<vmem>>, %arg8: memref<2x8x128xf32, #tpu.memory_space<vmem>>, %arg9: memref<2x8x128xf32, #tpu.memory_space<vmem>>) attributes {dimension_semantics = [#tpu.dimension_semantics<arbitrary>], iteration_bounds = array<i64: 1>, scalar_prefetch = 0 : i64, scratch_operands = 0 : i64, tpu.core_type = #tpu.core_type<tc>, window_params = [{transform_indices = @transform_0, window_bounds = array<i64: 8, 8, 128>}, {pipeline_mode = #tpu.pipeline_mode<synchronous>, transform_indices = @transform_1, window_bounds = array<i64: 128, 512>}, {pipeline_mode = #tpu.pipeline_mode<synchronous>, transform_indices = @transform_2, window_bounds = array<i64: 128, 512>}, {pipeline_mode = #tpu.pipeline_mode<synchronous>, transform_indices = @transform_3, window_bounds = array<i64: 1, 512>}, {pipeline_mode = #tpu.pipeline_mode<synchronous>, transform_indices = @transform_4, window_bounds = array<i64: 128, 512>}, {pipeline_mode = #tpu.pipeline_mode<synchronous>, transform_indices = @transform_5, window_bounds = array<i64: 128, 512>}, {pipeline_mode = #tpu.pipeline_mode<synchronous>, transform_indices = @transform_6, window_bounds = array<i64: 1, 512>}, {pipeline_mode = #tpu.pipeline_mode<synchronous>, transform_indices = @transform_7, window_bounds = array<i64: 2, 8, 128>}, {pipeline_mode = #tpu.pipeline_mode<synchronous>, transform_indices = @transform_8, window_bounds = array<i64: 2, 8, 128>}]} {
    %c0_i32 = arith.constant 0 : i32
    %0 = arith.cmpi eq, %arg0, %c0_i32 : i32
    %1 = arith.extui %0 : i1 to i32
    %c0_i32_0 = arith.constant 0 : i32
    %2 = arith.cmpi ne, %1, %c0_i32_0 : i32
    scf.if %2 {
      %cst_216 = arith.constant 0.000000e+00 : f32
      %591 = vector.broadcast %cst_216 : f32 to vector<2x8x128xf32>
      %c0_217 = arith.constant 0 : index
      %c0_218 = arith.constant 0 : index
      %c0_219 = arith.constant 0 : index
      %592 = vector.load %arg8[%c0_217, %c0_218, %c0_219] : memref<2x8x128xf32, #tpu.memory_space<vmem>>, vector<2x8x128xf32>
      tpu.vector_store %arg8[%c0_217, %c0_218, %c0_219], %591 {strides = array<i32>} : memref<2x8x128xf32, #tpu.memory_space<vmem>>, vector<2x8x128xf32>,
      %cst_220 = arith.constant 0.000000e+00 : f32
      %593 = vector.broadcast %cst_220 : f32 to vector<2x8x128xf32>
      %c0_221 = arith.constant 0 : index
      %c0_222 = arith.constant 0 : index
      %c0_223 = arith.constant 0 : index
      %594 = vector.load %arg9[%c0_221, %c0_222, %c0_223] : memref<2x8x128xf32, #tpu.memory_space<vmem>>, vector<2x8x128xf32>
      tpu.vector_store %arg9[%c0_221, %c0_222, %c0_223], %593 {strides = array<i32>} : memref<2x8x128xf32, #tpu.memory_space<vmem>>, vector<2x8x128xf32>,
    } else {
    }
    %c0 = arith.constant 0 : index
    %c0_1 = arith.constant 0 : index
    %c0_2 = arith.constant 0 : index
    %3 = vector.load %arg8[%c0, %c0_1, %c0_2] : memref<2x8x128xf32, #tpu.memory_space<vmem>>, vector<1x8x128xf32>
    %4 = vector.shape_cast %3 : vector<1x8x128xf32> to vector<8x128xf32>
    %c1 = arith.constant 1 : index
    %c0_3 = arith.constant 0 : index
    %c0_4 = arith.constant 0 : index
    %5 = vector.load %arg8[%c1, %c0_3, %c0_4] : memref<2x8x128xf32, #tpu.memory_space<vmem>>, vector<1x8x128xf32>
    %6 = vector.shape_cast %5 : vector<1x8x128xf32> to vector<8x128xf32>
    %c0_5 = arith.constant 0 : index
    %c0_6 = arith.constant 0 : index
    %c0_7 = arith.constant 0 : index
    %7 = vector.load %arg9[%c0_5, %c0_6, %c0_7] : memref<2x8x128xf32, #tpu.memory_space<vmem>>, vector<1x8x128xf32>
    %8 = vector.shape_cast %7 : vector<1x8x128xf32> to vector<8x128xf32>
    %c1_8 = arith.constant 1 : index
    %c0_9 = arith.constant 0 : index
    %c0_10 = arith.constant 0 : index
    %9 = vector.load %arg9[%c1_8, %c0_9, %c0_10] : memref<2x8x128xf32, #tpu.memory_space<vmem>>, vector<1x8x128xf32>
    %10 = vector.shape_cast %9 : vector<1x8x128xf32> to vector<8x128xf32>
    %c0_11 = arith.constant 0 : index
    %c0_12 = arith.constant 0 : index
    %c0_13 = arith.constant 0 : index
    %11 = vector.load %arg1[%c0_11, %c0_12, %c0_13] : memref<8x8x128xbf16, #tpu.memory_space<vmem>>, vector<1x8x128xbf16>
    %12 = vector.shape_cast %11 : vector<1x8x128xbf16> to vector<8x128xbf16>
    %c0_14 = arith.constant 0 : index
    %c0_15 = arith.constant 0 : index
    %13 = vector.load %arg2[%c0_14, %c0_15] : memref<128x512xbf16, #tpu.memory_space<vmem>>, vector<128x512xbf16>
    %cst = arith.constant dense<0.000000e+00> : vector<8x512xf32>
    %14 = tpu.matmul %12, %13, %cst {dimension_numbers = #tpu.dot_dimension_numbers<[1], [0], [0], [1], [0, 0, 1, 1], [], []>} : vector<8x128xbf16>, vector<128x512xbf16>, vector<8x512xf32> -> vector<8x512xf32>
    %15 = arith.truncf %4 : vector<8x128xf32> to vector<8x128xbf16>
    %c0_16 = arith.constant 0 : index
    %c0_17 = arith.constant 0 : index
    %16 = vector.load %arg3[%c0_16, %c0_17] : memref<128x512xbf16, #tpu.memory_space<vmem>>, vector<128x512xbf16>
    %cst_18 = arith.constant dense<0.000000e+00> : vector<8x512xf32>
    %17 = tpu.matmul %15, %16, %cst_18 {dimension_numbers = #tpu.dot_dimension_numbers<[1], [0], [0], [1], [0, 0, 1, 1], [], []>} : vector<8x128xbf16>, vector<128x512xbf16>, vector<8x512xf32> -> vector<8x512xf32>
    %18 = arith.addf %14, %17 : vector<8x512xf32>
    %c0_19 = arith.constant 0 : index
    %c0_20 = arith.constant 0 : index
    %19 = vector.load %arg4[%c0_19, %c0_20] : memref<1x512xf32, #tpu.memory_space<vmem>>, vector<1x512xf32>
    %20 = vector.broadcast %19 : vector<1x512xf32> to vector<8x512xf32>
    %21 = arith.addf %18, %20 : vector<8x512xf32>
    %22 = vector.extract_strided_slice %21 {offsets = [0, 0], sizes = [8, 128], strides = [1, 1]} : vector<8x512xf32> to vector<8x128xf32>
    %23 = arith.negf %22 : vector<8x128xf32>
    %24 = math.exp %23 : vector<8x128xf32>
    %cst_21 = arith.constant 1.000000e+00 : f32
    %25 = vector.broadcast %cst_21 : f32 to vector<8x128xf32>
    %26 = arith.addf %25, %24 : vector<8x128xf32>
    %27 = arith.divf %25, %26 : vector<8x128xf32>
    %28 = vector.extract_strided_slice %21 {offsets = [0, 128], sizes = [8, 128], strides = [1, 1]} : vector<8x512xf32> to vector<8x128xf32>
    %29 = arith.negf %28 : vector<8x128xf32>
    %30 = math.exp %29 : vector<8x128xf32>
    %cst_22 = arith.constant 1.000000e+00 : f32
    %31 = vector.broadcast %cst_22 : f32 to vector<8x128xf32>
    %32 = arith.addf %31, %30 : vector<8x128xf32>
    %33 = arith.divf %31, %32 : vector<8x128xf32>
    %34 = vector.extract_strided_slice %21 {offsets = [0, 256], sizes = [8, 128], strides = [1, 1]} : vector<8x512xf32> to vector<8x128xf32>
    %35 = math.tanh %34 : vector<8x128xf32>
    %36 = vector.extract_strided_slice %21 {offsets = [0, 384], sizes = [8, 128], strides = [1, 1]} : vector<8x512xf32> to vector<8x128xf32>
    %37 = arith.negf %36 : vector<8x128xf32>
    %38 = math.exp %37 : vector<8x128xf32>
    %cst_23 = arith.constant 1.000000e+00 : f32
    %39 = vector.broadcast %cst_23 : f32 to vector<8x128xf32>
    %40 = arith.addf %39, %38 : vector<8x128xf32>
    %41 = arith.divf %39, %40 : vector<8x128xf32>
    %42 = arith.mulf %33, %8 : vector<8x128xf32>
    %43 = arith.mulf %27, %35 : vector<8x128xf32>
    %44 = arith.addf %42, %43 : vector<8x128xf32>
    %45 = math.tanh %44 : vector<8x128xf32>
    %46 = arith.mulf %41, %45 : vector<8x128xf32>
    %47 = arith.truncf %46 : vector<8x128xf32> to vector<8x128xbf16>
    %c0_24 = arith.constant 0 : index
    %c0_25 = arith.constant 0 : index
    %48 = vector.load %arg5[%c0_24, %c0_25] : memref<128x512xbf16, #tpu.memory_space<vmem>>, vector<128x512xbf16>
    %cst_26 = arith.constant dense<0.000000e+00> : vector<8x512xf32>
    %49 = tpu.matmul %47, %48, %cst_26 {dimension_numbers = #tpu.dot_dimension_numbers<[1], [0], [0], [1], [0, 0, 1, 1], [], []>} : vector<8x128xbf16>, vector<128x512xbf16>, vector<8x512xf32> -> vector<8x512xf32>
    %50 = arith.truncf %6 : vector<8x128xf32> to vector<8x128xbf16>
    %c0_27 = arith.constant 0 : index
    %c0_28 = arith.constant 0 : index
    %51 = vector.load %arg6[%c0_27, %c0_28] : memref<128x512xbf16, #tpu.memory_space<vmem>>, vector<128x512xbf16>
    %cst_29 = arith.constant dense<0.000000e+00> : vector<8x512xf32>
    %52 = tpu.matmul %50, %51, %cst_29 {dimension_numbers = #tpu.dot_dimension_numbers<[1], [0], [0], [1], [0, 0, 1, 1], [], []>} : vector<8x128xbf16>, vector<128x512xbf16>, vector<8x512xf32> -> vector<8x512xf32>
    %53 = arith.addf %49, %52 : vector<8x512xf32>
    %c0_30 = arith.constant 0 : index
    %c0_31 = arith.constant 0 : index
    %54 = vector.load %arg7[%c0_30, %c0_31] : memref<1x512xf32, #tpu.memory_space<vmem>>, vector<1x512xf32>
    %55 = vector.broadcast %54 : vector<1x512xf32> to vector<8x512xf32>
    %56 = arith.addf %53, %55 : vector<8x512xf32>
    %57 = vector.extract_strided_slice %56 {offsets = [0, 0], sizes = [8, 128], strides = [1, 1]} : vector<8x512xf32> to vector<8x128xf32>
    %58 = arith.negf %57 : vector<8x128xf32>
    %59 = math.exp %58 : vector<8x128xf32>
    %cst_32 = arith.constant 1.000000e+00 : f32
    %60 = vector.broadcast %cst_32 : f32 to vector<8x128xf32>
    %61 = arith.addf %60, %59 : vector<8x128xf32>
    %62 = arith.divf %60, %61 : vector<8x128xf32>
    %63 = vector.extract_strided_slice %56 {offsets = [0, 128], sizes = [8, 128], strides = [1, 1]} : vector<8x512xf32> to vector<8x128xf32>
    %64 = arith.negf %63 : vector<8x128xf32>
    %65 = math.exp %64 : vector<8x128xf32>
    %cst_33 = arith.constant 1.000000e+00 : f32
    %66 = vector.broadcast %cst_33 : f32 to vector<8x128xf32>
    %67 = arith.addf %66, %65 : vector<8x128xf32>
    %68 = arith.divf %66, %67 : vector<8x128xf32>
    %69 = vector.extract_strided_slice %56 {offsets = [0, 256], sizes = [8, 128], strides = [1, 1]} : vector<8x512xf32> to vector<8x128xf32>
    %70 = math.tanh %69 : vector<8x128xf32>
    %71 = vector.extract_strided_slice %56 {offsets = [0, 384], sizes = [8, 128], strides = [1, 1]} : vector<8x512xf32> to vector<8x128xf32>
    %72 = arith.negf %71 : vector<8x128xf32>
    %73 = math.exp %72 : vector<8x128xf32>
    %cst_34 = arith.constant 1.000000e+00 : f32
    %74 = vector.broadcast %cst_34 : f32 to vector<8x128xf32>
    %75 = arith.addf %74, %73 : vector<8x128xf32>
    %76 = arith.divf %74, %75 : vector<8x128xf32>
    %77 = arith.mulf %68, %10 : vector<8x128xf32>
    %78 = arith.mulf %62, %70 : vector<8x128xf32>
    %79 = arith.addf %77, %78 : vector<8x128xf32>
    %80 = math.tanh %79 : vector<8x128xf32>
    %81 = arith.mulf %76, %80 : vector<8x128xf32>
    %c1_35 = arith.constant 1 : index
    %c0_36 = arith.constant 0 : index
    %c0_37 = arith.constant 0 : index
    %82 = vector.load %arg1[%c1_35, %c0_36, %c0_37] : memref<8x8x128xbf16, #tpu.memory_space<vmem>>, vector<1x8x128xbf16>
    %83 = vector.shape_cast %82 : vector<1x8x128xbf16> to vector<8x128xbf16>
    %c0_38 = arith.constant 0 : index
    %c0_39 = arith.constant 0 : index
    %84 = vector.load %arg2[%c0_38, %c0_39] : memref<128x512xbf16, #tpu.memory_space<vmem>>, vector<128x512xbf16>
    %cst_40 = arith.constant dense<0.000000e+00> : vector<8x512xf32>
    %85 = tpu.matmul %83, %84, %cst_40 {dimension_numbers = #tpu.dot_dimension_numbers<[1], [0], [0], [1], [0, 0, 1, 1], [], []>} : vector<8x128xbf16>, vector<128x512xbf16>, vector<8x512xf32> -> vector<8x512xf32>
    %86 = arith.truncf %46 : vector<8x128xf32> to vector<8x128xbf16>
    %c0_41 = arith.constant 0 : index
    %c0_42 = arith.constant 0 : index
    %87 = vector.load %arg3[%c0_41, %c0_42] : memref<128x512xbf16, #tpu.memory_space<vmem>>, vector<128x512xbf16>
    %cst_43 = arith.constant dense<0.000000e+00> : vector<8x512xf32>
    %88 = tpu.matmul %86, %87, %cst_43 {dimension_numbers = #tpu.dot_dimension_numbers<[1], [0], [0], [1], [0, 0, 1, 1], [], []>} : vector<8x128xbf16>, vector<128x512xbf16>, vector<8x512xf32> -> vector<8x512xf32>
    %89 = arith.addf %85, %88 : vector<8x512xf32>
    %c0_44 = arith.constant 0 : index
    %c0_45 = arith.constant 0 : index
    %90 = vector.load %arg4[%c0_44, %c0_45] : memref<1x512xf32, #tpu.memory_space<vmem>>, vector<1x512xf32>
    %91 = vector.broadcast %90 : vector<1x512xf32> to vector<8x512xf32>
    %92 = arith.addf %89, %91 : vector<8x512xf32>
    %93 = vector.extract_strided_slice %92 {offsets = [0, 0], sizes = [8, 128], strides = [1, 1]} : vector<8x512xf32> to vector<8x128xf32>
    %94 = arith.negf %93 : vector<8x128xf32>
    %95 = math.exp %94 : vector<8x128xf32>
    %cst_46 = arith.constant 1.000000e+00 : f32
    %96 = vector.broadcast %cst_46 : f32 to vector<8x128xf32>
    %97 = arith.addf %96, %95 : vector<8x128xf32>
    %98 = arith.divf %96, %97 : vector<8x128xf32>
    %99 = vector.extract_strided_slice %92 {offsets = [0, 128], sizes = [8, 128], strides = [1, 1]} : vector<8x512xf32> to vector<8x128xf32>
    %100 = arith.negf %99 : vector<8x128xf32>
    %101 = math.exp %100 : vector<8x128xf32>
    %cst_47 = arith.constant 1.000000e+00 : f32
    %102 = vector.broadcast %cst_47 : f32 to vector<8x128xf32>
    %103 = arith.addf %102, %101 : vector<8x128xf32>
    %104 = arith.divf %102, %103 : vector<8x128xf32>
    %105 = vector.extract_strided_slice %92 {offsets = [0, 256], sizes = [8, 128], strides = [1, 1]} : vector<8x512xf32> to vector<8x128xf32>
    %106 = math.tanh %105 : vector<8x128xf32>
    %107 = vector.extract_strided_slice %92 {offsets = [0, 384], sizes = [8, 128], strides = [1, 1]} : vector<8x512xf32> to vector<8x128xf32>
    %108 = arith.negf %107 : vector<8x128xf32>
    %109 = math.exp %108 : vector<8x128xf32>
    %cst_48 = arith.constant 1.000000e+00 : f32
    %110 = vector.broadcast %cst_48 : f32 to vector<8x128xf32>
    %111 = arith.addf %110, %109 : vector<8x128xf32>
    %112 = arith.divf %110, %111 : vector<8x128xf32>
    %113 = arith.mulf %104, %44 : vector<8x128xf32>
    %114 = arith.mulf %98, %106 : vector<8x128xf32>
    %115 = arith.addf %113, %114 : vector<8x128xf32>
    %116 = math.tanh %115 : vector<8x128xf32>
    %117 = arith.mulf %112, %116 : vector<8x128xf32>
    %118 = arith.truncf %117 : vector<8x128xf32> to vector<8x128xbf16>
    %c0_49 = arith.constant 0 : index
    %c0_50 = arith.constant 0 : index
    %119 = vector.load %arg5[%c0_49, %c0_50] : memref<128x512xbf16, #tpu.memory_space<vmem>>, vector<128x512xbf16>
    %cst_51 = arith.constant dense<0.000000e+00> : vector<8x512xf32>
    %120 = tpu.matmul %118, %119, %cst_51 {dimension_numbers = #tpu.dot_dimension_numbers<[1], [0], [0], [1], [0, 0, 1, 1], [], []>} : vector<8x128xbf16>, vector<128x512xbf16>, vector<8x512xf32> -> vector<8x512xf32>
    %121 = arith.truncf %81 : vector<8x128xf32> to vector<8x128xbf16>
    %c0_52 = arith.constant 0 : index
    %c0_53 = arith.constant 0 : index
    %122 = vector.load %arg6[%c0_52, %c0_53] : memref<128x512xbf16, #tpu.memory_space<vmem>>, vector<128x512xbf16>
    %cst_54 = arith.constant dense<0.000000e+00> : vector<8x512xf32>
    %123 = tpu.matmul %121, %122, %cst_54 {dimension_numbers = #tpu.dot_dimension_numbers<[1], [0], [0], [1], [0, 0, 1, 1], [], []>} : vector<8x128xbf16>, vector<128x512xbf16>, vector<8x512xf32> -> vector<8x512xf32>
    %124 = arith.addf %120, %123 : vector<8x512xf32>
    %c0_55 = arith.constant 0 : index
    %c0_56 = arith.constant 0 : index
    %125 = vector.load %arg7[%c0_55, %c0_56] : memref<1x512xf32, #tpu.memory_space<vmem>>, vector<1x512xf32>
    %126 = vector.broadcast %125 : vector<1x512xf32> to vector<8x512xf32>
    %127 = arith.addf %124, %126 : vector<8x512xf32>
    %128 = vector.extract_strided_slice %127 {offsets = [0, 0], sizes = [8, 128], strides = [1, 1]} : vector<8x512xf32> to vector<8x128xf32>
    %129 = arith.negf %128 : vector<8x128xf32>
    %130 = math.exp %129 : vector<8x128xf32>
    %cst_57 = arith.constant 1.000000e+00 : f32
    %131 = vector.broadcast %cst_57 : f32 to vector<8x128xf32>
    %132 = arith.addf %131, %130 : vector<8x128xf32>
    %133 = arith.divf %131, %132 : vector<8x128xf32>
    %134 = vector.extract_strided_slice %127 {offsets = [0, 128], sizes = [8, 128], strides = [1, 1]} : vector<8x512xf32> to vector<8x128xf32>
    %135 = arith.negf %134 : vector<8x128xf32>
    %136 = math.exp %135 : vector<8x128xf32>
    %cst_58 = arith.constant 1.000000e+00 : f32
    %137 = vector.broadcast %cst_58 : f32 to vector<8x128xf32>
    %138 = arith.addf %137, %136 : vector<8x128xf32>
    %139 = arith.divf %137, %138 : vector<8x128xf32>
    %140 = vector.extract_strided_slice %127 {offsets = [0, 256], sizes = [8, 128], strides = [1, 1]} : vector<8x512xf32> to vector<8x128xf32>
    %141 = math.tanh %140 : vector<8x128xf32>
    %142 = vector.extract_strided_slice %127 {offsets = [0, 384], sizes = [8, 128], strides = [1, 1]} : vector<8x512xf32> to vector<8x128xf32>
    %143 = arith.negf %142 : vector<8x128xf32>
    %144 = math.exp %143 : vector<8x128xf32>
    %cst_59 = arith.constant 1.000000e+00 : f32
    %145 = vector.broadcast %cst_59 : f32 to vector<8x128xf32>
    %146 = arith.addf %145, %144 : vector<8x128xf32>
    %147 = arith.divf %145, %146 : vector<8x128xf32>
    %148 = arith.mulf %139, %79 : vector<8x128xf32>
    %149 = arith.mulf %133, %141 : vector<8x128xf32>
    %150 = arith.addf %148, %149 : vector<8x128xf32>
    %151 = math.tanh %150 : vector<8x128xf32>
    %152 = arith.mulf %147, %151 : vector<8x128xf32>
    %c2 = arith.constant 2 : index
    %c0_60 = arith.constant 0 : index
    %c0_61 = arith.constant 0 : index
    %153 = vector.load %arg1[%c2, %c0_60, %c0_61] : memref<8x8x128xbf16, #tpu.memory_space<vmem>>, vector<1x8x128xbf16>
    %154 = vector.shape_cast %153 : vector<1x8x128xbf16> to vector<8x128xbf16>
    %c0_62 = arith.constant 0 : index
    %c0_63 = arith.constant 0 : index
    %155 = vector.load %arg2[%c0_62, %c0_63] : memref<128x512xbf16, #tpu.memory_space<vmem>>, vector<128x512xbf16>
    %cst_64 = arith.constant dense<0.000000e+00> : vector<8x512xf32>
    %156 = tpu.matmul %154, %155, %cst_64 {dimension_numbers = #tpu.dot_dimension_numbers<[1], [0], [0], [1], [0, 0, 1, 1], [], []>} : vector<8x128xbf16>, vector<128x512xbf16>, vector<8x512xf32> -> vector<8x512xf32>
    %157 = arith.truncf %117 : vector<8x128xf32> to vector<8x128xbf16>
    %c0_65 = arith.constant 0 : index
    %c0_66 = arith.constant 0 : index
    %158 = vector.load %arg3[%c0_65, %c0_66] : memref<128x512xbf16, #tpu.memory_space<vmem>>, vector<128x512xbf16>
    %cst_67 = arith.constant dense<0.000000e+00> : vector<8x512xf32>
    %159 = tpu.matmul %157, %158, %cst_67 {dimension_numbers = #tpu.dot_dimension_numbers<[1], [0], [0], [1], [0, 0, 1, 1], [], []>} : vector<8x128xbf16>, vector<128x512xbf16>, vector<8x512xf32> -> vector<8x512xf32>
    %160 = arith.addf %156, %159 : vector<8x512xf32>
    %c0_68 = arith.constant 0 : index
    %c0_69 = arith.constant 0 : index
    %161 = vector.load %arg4[%c0_68, %c0_69] : memref<1x512xf32, #tpu.memory_space<vmem>>, vector<1x512xf32>
    %162 = vector.broadcast %161 : vector<1x512xf32> to vector<8x512xf32>
    %163 = arith.addf %160, %162 : vector<8x512xf32>
    %164 = vector.extract_strided_slice %163 {offsets = [0, 0], sizes = [8, 128], strides = [1, 1]} : vector<8x512xf32> to vector<8x128xf32>
    %165 = arith.negf %164 : vector<8x128xf32>
    %166 = math.exp %165 : vector<8x128xf32>
    %cst_70 = arith.constant 1.000000e+00 : f32
    %167 = vector.broadcast %cst_70 : f32 to vector<8x128xf32>
    %168 = arith.addf %167, %166 : vector<8x128xf32>
    %169 = arith.divf %167, %168 : vector<8x128xf32>
    %170 = vector.extract_strided_slice %163 {offsets = [0, 128], sizes = [8, 128], strides = [1, 1]} : vector<8x512xf32> to vector<8x128xf32>
    %171 = arith.negf %170 : vector<8x128xf32>
    %172 = math.exp %171 : vector<8x128xf32>
    %cst_71 = arith.constant 1.000000e+00 : f32
    %173 = vector.broadcast %cst_71 : f32 to vector<8x128xf32>
    %174 = arith.addf %173, %172 : vector<8x128xf32>
    %175 = arith.divf %173, %174 : vector<8x128xf32>
    %176 = vector.extract_strided_slice %163 {offsets = [0, 256], sizes = [8, 128], strides = [1, 1]} : vector<8x512xf32> to vector<8x128xf32>
    %177 = math.tanh %176 : vector<8x128xf32>
    %178 = vector.extract_strided_slice %163 {offsets = [0, 384], sizes = [8, 128], strides = [1, 1]} : vector<8x512xf32> to vector<8x128xf32>
    %179 = arith.negf %178 : vector<8x128xf32>
    %180 = math.exp %179 : vector<8x128xf32>
    %cst_72 = arith.constant 1.000000e+00 : f32
    %181 = vector.broadcast %cst_72 : f32 to vector<8x128xf32>
    %182 = arith.addf %181, %180 : vector<8x128xf32>
    %183 = arith.divf %181, %182 : vector<8x128xf32>
    %184 = arith.mulf %175, %115 : vector<8x128xf32>
    %185 = arith.mulf %169, %177 : vector<8x128xf32>
    %186 = arith.addf %184, %185 : vector<8x128xf32>
    %187 = math.tanh %186 : vector<8x128xf32>
    %188 = arith.mulf %183, %187 : vector<8x128xf32>
    %189 = arith.truncf %188 : vector<8x128xf32> to vector<8x128xbf16>
    %c0_73 = arith.constant 0 : index
    %c0_74 = arith.constant 0 : index
    %190 = vector.load %arg5[%c0_73, %c0_74] : memref<128x512xbf16, #tpu.memory_space<vmem>>, vector<128x512xbf16>
    %cst_75 = arith.constant dense<0.000000e+00> : vector<8x512xf32>
    %191 = tpu.matmul %189, %190, %cst_75 {dimension_numbers = #tpu.dot_dimension_numbers<[1], [0], [0], [1], [0, 0, 1, 1], [], []>} : vector<8x128xbf16>, vector<128x512xbf16>, vector<8x512xf32> -> vector<8x512xf32>
    %192 = arith.truncf %152 : vector<8x128xf32> to vector<8x128xbf16>
    %c0_76 = arith.constant 0 : index
    %c0_77 = arith.constant 0 : index
    %193 = vector.load %arg6[%c0_76, %c0_77] : memref<128x512xbf16, #tpu.memory_space<vmem>>, vector<128x512xbf16>
    %cst_78 = arith.constant dense<0.000000e+00> : vector<8x512xf32>
    %194 = tpu.matmul %192, %193, %cst_78 {dimension_numbers = #tpu.dot_dimension_numbers<[1], [0], [0], [1], [0, 0, 1, 1], [], []>} : vector<8x128xbf16>, vector<128x512xbf16>, vector<8x512xf32> -> vector<8x512xf32>
    %195 = arith.addf %191, %194 : vector<8x512xf32>
    %c0_79 = arith.constant 0 : index
    %c0_80 = arith.constant 0 : index
    %196 = vector.load %arg7[%c0_79, %c0_80] : memref<1x512xf32, #tpu.memory_space<vmem>>, vector<1x512xf32>
    %197 = vector.broadcast %196 : vector<1x512xf32> to vector<8x512xf32>
    %198 = arith.addf %195, %197 : vector<8x512xf32>
    %199 = vector.extract_strided_slice %198 {offsets = [0, 0], sizes = [8, 128], strides = [1, 1]} : vector<8x512xf32> to vector<8x128xf32>
    %200 = arith.negf %199 : vector<8x128xf32>
    %201 = math.exp %200 : vector<8x128xf32>
    %cst_81 = arith.constant 1.000000e+00 : f32
    %202 = vector.broadcast %cst_81 : f32 to vector<8x128xf32>
    %203 = arith.addf %202, %201 : vector<8x128xf32>
    %204 = arith.divf %202, %203 : vector<8x128xf32>
    %205 = vector.extract_strided_slice %198 {offsets = [0, 128], sizes = [8, 128], strides = [1, 1]} : vector<8x512xf32> to vector<8x128xf32>
    %206 = arith.negf %205 : vector<8x128xf32>
    %207 = math.exp %206 : vector<8x128xf32>
    %cst_82 = arith.constant 1.000000e+00 : f32
    %208 = vector.broadcast %cst_82 : f32 to vector<8x128xf32>
    %209 = arith.addf %208, %207 : vector<8x128xf32>
    %210 = arith.divf %208, %209 : vector<8x128xf32>
    %211 = vector.extract_strided_slice %198 {offsets = [0, 256], sizes = [8, 128], strides = [1, 1]} : vector<8x512xf32> to vector<8x128xf32>
    %212 = math.tanh %211 : vector<8x128xf32>
    %213 = vector.extract_strided_slice %198 {offsets = [0, 384], sizes = [8, 128], strides = [1, 1]} : vector<8x512xf32> to vector<8x128xf32>
    %214 = arith.negf %213 : vector<8x128xf32>
    %215 = math.exp %214 : vector<8x128xf32>
    %cst_83 = arith.constant 1.000000e+00 : f32
    %216 = vector.broadcast %cst_83 : f32 to vector<8x128xf32>
    %217 = arith.addf %216, %215 : vector<8x128xf32>
    %218 = arith.divf %216, %217 : vector<8x128xf32>
    %219 = arith.mulf %210, %150 : vector<8x128xf32>
    %220 = arith.mulf %204, %212 : vector<8x128xf32>
    %221 = arith.addf %219, %220 : vector<8x128xf32>
    %222 = math.tanh %221 : vector<8x128xf32>
    %223 = arith.mulf %218, %222 : vector<8x128xf32>
    %c3 = arith.constant 3 : index
    %c0_84 = arith.constant 0 : index
    %c0_85 = arith.constant 0 : index
    %224 = vector.load %arg1[%c3, %c0_84, %c0_85] : memref<8x8x128xbf16, #tpu.memory_space<vmem>>, vector<1x8x128xbf16>
    %225 = vector.shape_cast %224 : vector<1x8x128xbf16> to vector<8x128xbf16>
    %c0_86 = arith.constant 0 : index
    %c0_87 = arith.constant 0 : index
    %226 = vector.load %arg2[%c0_86, %c0_87] : memref<128x512xbf16, #tpu.memory_space<vmem>>, vector<128x512xbf16>
    %cst_88 = arith.constant dense<0.000000e+00> : vector<8x512xf32>
    %227 = tpu.matmul %225, %226, %cst_88 {dimension_numbers = #tpu.dot_dimension_numbers<[1], [0], [0], [1], [0, 0, 1, 1], [], []>} : vector<8x128xbf16>, vector<128x512xbf16>, vector<8x512xf32> -> vector<8x512xf32>
    %228 = arith.truncf %188 : vector<8x128xf32> to vector<8x128xbf16>
    %c0_89 = arith.constant 0 : index
    %c0_90 = arith.constant 0 : index
    %229 = vector.load %arg3[%c0_89, %c0_90] : memref<128x512xbf16, #tpu.memory_space<vmem>>, vector<128x512xbf16>
    %cst_91 = arith.constant dense<0.000000e+00> : vector<8x512xf32>
    %230 = tpu.matmul %228, %229, %cst_91 {dimension_numbers = #tpu.dot_dimension_numbers<[1], [0], [0], [1], [0, 0, 1, 1], [], []>} : vector<8x128xbf16>, vector<128x512xbf16>, vector<8x512xf32> -> vector<8x512xf32>
    %231 = arith.addf %227, %230 : vector<8x512xf32>
    %c0_92 = arith.constant 0 : index
    %c0_93 = arith.constant 0 : index
    %232 = vector.load %arg4[%c0_92, %c0_93] : memref<1x512xf32, #tpu.memory_space<vmem>>, vector<1x512xf32>
    %233 = vector.broadcast %232 : vector<1x512xf32> to vector<8x512xf32>
    %234 = arith.addf %231, %233 : vector<8x512xf32>
    %235 = vector.extract_strided_slice %234 {offsets = [0, 0], sizes = [8, 128], strides = [1, 1]} : vector<8x512xf32> to vector<8x128xf32>
    %236 = arith.negf %235 : vector<8x128xf32>
    %237 = math.exp %236 : vector<8x128xf32>
    %cst_94 = arith.constant 1.000000e+00 : f32
    %238 = vector.broadcast %cst_94 : f32 to vector<8x128xf32>
    %239 = arith.addf %238, %237 : vector<8x128xf32>
    %240 = arith.divf %238, %239 : vector<8x128xf32>
    %241 = vector.extract_strided_slice %234 {offsets = [0, 128], sizes = [8, 128], strides = [1, 1]} : vector<8x512xf32> to vector<8x128xf32>
    %242 = arith.negf %241 : vector<8x128xf32>
    %243 = math.exp %242 : vector<8x128xf32>
    %cst_95 = arith.constant 1.000000e+00 : f32
    %244 = vector.broadcast %cst_95 : f32 to vector<8x128xf32>
    %245 = arith.addf %244, %243 : vector<8x128xf32>
    %246 = arith.divf %244, %245 : vector<8x128xf32>
    %247 = vector.extract_strided_slice %234 {offsets = [0, 256], sizes = [8, 128], strides = [1, 1]} : vector<8x512xf32> to vector<8x128xf32>
    %248 = math.tanh %247 : vector<8x128xf32>
    %249 = vector.extract_strided_slice %234 {offsets = [0, 384], sizes = [8, 128], strides = [1, 1]} : vector<8x512xf32> to vector<8x128xf32>
    %250 = arith.negf %249 : vector<8x128xf32>
    %251 = math.exp %250 : vector<8x128xf32>
    %cst_96 = arith.constant 1.000000e+00 : f32
    %252 = vector.broadcast %cst_96 : f32 to vector<8x128xf32>
    %253 = arith.addf %252, %251 : vector<8x128xf32>
    %254 = arith.divf %252, %253 : vector<8x128xf32>
    %255 = arith.mulf %246, %186 : vector<8x128xf32>
    %256 = arith.mulf %240, %248 : vector<8x128xf32>
    %257 = arith.addf %255, %256 : vector<8x128xf32>
    %258 = math.tanh %257 : vector<8x128xf32>
    %259 = arith.mulf %254, %258 : vector<8x128xf32>
    %260 = arith.truncf %259 : vector<8x128xf32> to vector<8x128xbf16>
    %c0_97 = arith.constant 0 : index
    %c0_98 = arith.constant 0 : index
    %261 = vector.load %arg5[%c0_97, %c0_98] : memref<128x512xbf16, #tpu.memory_space<vmem>>, vector<128x512xbf16>
    %cst_99 = arith.constant dense<0.000000e+00> : vector<8x512xf32>
    %262 = tpu.matmul %260, %261, %cst_99 {dimension_numbers = #tpu.dot_dimension_numbers<[1], [0], [0], [1], [0, 0, 1, 1], [], []>} : vector<8x128xbf16>, vector<128x512xbf16>, vector<8x512xf32> -> vector<8x512xf32>
    %263 = arith.truncf %223 : vector<8x128xf32> to vector<8x128xbf16>
    %c0_100 = arith.constant 0 : index
    %c0_101 = arith.constant 0 : index
    %264 = vector.load %arg6[%c0_100, %c0_101] : memref<128x512xbf16, #tpu.memory_space<vmem>>, vector<128x512xbf16>
    %cst_102 = arith.constant dense<0.000000e+00> : vector<8x512xf32>
    %265 = tpu.matmul %263, %264, %cst_102 {dimension_numbers = #tpu.dot_dimension_numbers<[1], [0], [0], [1], [0, 0, 1, 1], [], []>} : vector<8x128xbf16>, vector<128x512xbf16>, vector<8x512xf32> -> vector<8x512xf32>
    %266 = arith.addf %262, %265 : vector<8x512xf32>
    %c0_103 = arith.constant 0 : index
    %c0_104 = arith.constant 0 : index
    %267 = vector.load %arg7[%c0_103, %c0_104] : memref<1x512xf32, #tpu.memory_space<vmem>>, vector<1x512xf32>
    %268 = vector.broadcast %267 : vector<1x512xf32> to vector<8x512xf32>
    %269 = arith.addf %266, %268 : vector<8x512xf32>
    %270 = vector.extract_strided_slice %269 {offsets = [0, 0], sizes = [8, 128], strides = [1, 1]} : vector<8x512xf32> to vector<8x128xf32>
    %271 = arith.negf %270 : vector<8x128xf32>
    %272 = math.exp %271 : vector<8x128xf32>
    %cst_105 = arith.constant 1.000000e+00 : f32
    %273 = vector.broadcast %cst_105 : f32 to vector<8x128xf32>
    %274 = arith.addf %273, %272 : vector<8x128xf32>
    %275 = arith.divf %273, %274 : vector<8x128xf32>
    %276 = vector.extract_strided_slice %269 {offsets = [0, 128], sizes = [8, 128], strides = [1, 1]} : vector<8x512xf32> to vector<8x128xf32>
    %277 = arith.negf %276 : vector<8x128xf32>
    %278 = math.exp %277 : vector<8x128xf32>
    %cst_106 = arith.constant 1.000000e+00 : f32
    %279 = vector.broadcast %cst_106 : f32 to vector<8x128xf32>
    %280 = arith.addf %279, %278 : vector<8x128xf32>
    %281 = arith.divf %279, %280 : vector<8x128xf32>
    %282 = vector.extract_strided_slice %269 {offsets = [0, 256], sizes = [8, 128], strides = [1, 1]} : vector<8x512xf32> to vector<8x128xf32>
    %283 = math.tanh %282 : vector<8x128xf32>
    %284 = vector.extract_strided_slice %269 {offsets = [0, 384], sizes = [8, 128], strides = [1, 1]} : vector<8x512xf32> to vector<8x128xf32>
    %285 = arith.negf %284 : vector<8x128xf32>
    %286 = math.exp %285 : vector<8x128xf32>
    %cst_107 = arith.constant 1.000000e+00 : f32
    %287 = vector.broadcast %cst_107 : f32 to vector<8x128xf32>
    %288 = arith.addf %287, %286 : vector<8x128xf32>
    %289 = arith.divf %287, %288 : vector<8x128xf32>
    %290 = arith.mulf %281, %221 : vector<8x128xf32>
    %291 = arith.mulf %275, %283 : vector<8x128xf32>
    %292 = arith.addf %290, %291 : vector<8x128xf32>
    %293 = math.tanh %292 : vector<8x128xf32>
    %294 = arith.mulf %289, %293 : vector<8x128xf32>
    %c4 = arith.constant 4 : index
    %c0_108 = arith.constant 0 : index
    %c0_109 = arith.constant 0 : index
    %295 = vector.load %arg1[%c4, %c0_108, %c0_109] : memref<8x8x128xbf16, #tpu.memory_space<vmem>>, vector<1x8x128xbf16>
    %296 = vector.shape_cast %295 : vector<1x8x128xbf16> to vector<8x128xbf16>
    %c0_110 = arith.constant 0 : index
    %c0_111 = arith.constant 0 : index
    %297 = vector.load %arg2[%c0_110, %c0_111] : memref<128x512xbf16, #tpu.memory_space<vmem>>, vector<128x512xbf16>
    %cst_112 = arith.constant dense<0.000000e+00> : vector<8x512xf32>
    %298 = tpu.matmul %296, %297, %cst_112 {dimension_numbers = #tpu.dot_dimension_numbers<[1], [0], [0], [1], [0, 0, 1, 1], [], []>} : vector<8x128xbf16>, vector<128x512xbf16>, vector<8x512xf32> -> vector<8x512xf32>
    %299 = arith.truncf %259 : vector<8x128xf32> to vector<8x128xbf16>
    %c0_113 = arith.constant 0 : index
    %c0_114 = arith.constant 0 : index
    %300 = vector.load %arg3[%c0_113, %c0_114] : memref<128x512xbf16, #tpu.memory_space<vmem>>, vector<128x512xbf16>
    %cst_115 = arith.constant dense<0.000000e+00> : vector<8x512xf32>
    %301 = tpu.matmul %299, %300, %cst_115 {dimension_numbers = #tpu.dot_dimension_numbers<[1], [0], [0], [1], [0, 0, 1, 1], [], []>} : vector<8x128xbf16>, vector<128x512xbf16>, vector<8x512xf32> -> vector<8x512xf32>
    %302 = arith.addf %298, %301 : vector<8x512xf32>
    %c0_116 = arith.constant 0 : index
    %c0_117 = arith.constant 0 : index
    %303 = vector.load %arg4[%c0_116, %c0_117] : memref<1x512xf32, #tpu.memory_space<vmem>>, vector<1x512xf32>
    %304 = vector.broadcast %303 : vector<1x512xf32> to vector<8x512xf32>
    %305 = arith.addf %302, %304 : vector<8x512xf32>
    %306 = vector.extract_strided_slice %305 {offsets = [0, 0], sizes = [8, 128], strides = [1, 1]} : vector<8x512xf32> to vector<8x128xf32>
    %307 = arith.negf %306 : vector<8x128xf32>
    %308 = math.exp %307 : vector<8x128xf32>
    %cst_118 = arith.constant 1.000000e+00 : f32
    %309 = vector.broadcast %cst_118 : f32 to vector<8x128xf32>
    %310 = arith.addf %309, %308 : vector<8x128xf32>
    %311 = arith.divf %309, %310 : vector<8x128xf32>
    %312 = vector.extract_strided_slice %305 {offsets = [0, 128], sizes = [8, 128], strides = [1, 1]} : vector<8x512xf32> to vector<8x128xf32>
    %313 = arith.negf %312 : vector<8x128xf32>
    %314 = math.exp %313 : vector<8x128xf32>
    %cst_119 = arith.constant 1.000000e+00 : f32
    %315 = vector.broadcast %cst_119 : f32 to vector<8x128xf32>
    %316 = arith.addf %315, %314 : vector<8x128xf32>
    %317 = arith.divf %315, %316 : vector<8x128xf32>
    %318 = vector.extract_strided_slice %305 {offsets = [0, 256], sizes = [8, 128], strides = [1, 1]} : vector<8x512xf32> to vector<8x128xf32>
    %319 = math.tanh %318 : vector<8x128xf32>
    %320 = vector.extract_strided_slice %305 {offsets = [0, 384], sizes = [8, 128], strides = [1, 1]} : vector<8x512xf32> to vector<8x128xf32>
    %321 = arith.negf %320 : vector<8x128xf32>
    %322 = math.exp %321 : vector<8x128xf32>
    %cst_120 = arith.constant 1.000000e+00 : f32
    %323 = vector.broadcast %cst_120 : f32 to vector<8x128xf32>
    %324 = arith.addf %323, %322 : vector<8x128xf32>
    %325 = arith.divf %323, %324 : vector<8x128xf32>
    %326 = arith.mulf %317, %257 : vector<8x128xf32>
    %327 = arith.mulf %311, %319 : vector<8x128xf32>
    %328 = arith.addf %326, %327 : vector<8x128xf32>
    %329 = math.tanh %328 : vector<8x128xf32>
    %330 = arith.mulf %325, %329 : vector<8x128xf32>
    %331 = arith.truncf %330 : vector<8x128xf32> to vector<8x128xbf16>
    %c0_121 = arith.constant 0 : index
    %c0_122 = arith.constant 0 : index
    %332 = vector.load %arg5[%c0_121, %c0_122] : memref<128x512xbf16, #tpu.memory_space<vmem>>, vector<128x512xbf16>
    %cst_123 = arith.constant dense<0.000000e+00> : vector<8x512xf32>
    %333 = tpu.matmul %331, %332, %cst_123 {dimension_numbers = #tpu.dot_dimension_numbers<[1], [0], [0], [1], [0, 0, 1, 1], [], []>} : vector<8x128xbf16>, vector<128x512xbf16>, vector<8x512xf32> -> vector<8x512xf32>
    %334 = arith.truncf %294 : vector<8x128xf32> to vector<8x128xbf16>
    %c0_124 = arith.constant 0 : index
    %c0_125 = arith.constant 0 : index
    %335 = vector.load %arg6[%c0_124, %c0_125] : memref<128x512xbf16, #tpu.memory_space<vmem>>, vector<128x512xbf16>
    %cst_126 = arith.constant dense<0.000000e+00> : vector<8x512xf32>
    %336 = tpu.matmul %334, %335, %cst_126 {dimension_numbers = #tpu.dot_dimension_numbers<[1], [0], [0], [1], [0, 0, 1, 1], [], []>} : vector<8x128xbf16>, vector<128x512xbf16>, vector<8x512xf32> -> vector<8x512xf32>
    %337 = arith.addf %333, %336 : vector<8x512xf32>
    %c0_127 = arith.constant 0 : index
    %c0_128 = arith.constant 0 : index
    %338 = vector.load %arg7[%c0_127, %c0_128] : memref<1x512xf32, #tpu.memory_space<vmem>>, vector<1x512xf32>
    %339 = vector.broadcast %338 : vector<1x512xf32> to vector<8x512xf32>
    %340 = arith.addf %337, %339 : vector<8x512xf32>
    %341 = vector.extract_strided_slice %340 {offsets = [0, 0], sizes = [8, 128], strides = [1, 1]} : vector<8x512xf32> to vector<8x128xf32>
    %342 = arith.negf %341 : vector<8x128xf32>
    %343 = math.exp %342 : vector<8x128xf32>
    %cst_129 = arith.constant 1.000000e+00 : f32
    %344 = vector.broadcast %cst_129 : f32 to vector<8x128xf32>
    %345 = arith.addf %344, %343 : vector<8x128xf32>
    %346 = arith.divf %344, %345 : vector<8x128xf32>
    %347 = vector.extract_strided_slice %340 {offsets = [0, 128], sizes = [8, 128], strides = [1, 1]} : vector<8x512xf32> to vector<8x128xf32>
    %348 = arith.negf %347 : vector<8x128xf32>
    %349 = math.exp %348 : vector<8x128xf32>
    %cst_130 = arith.constant 1.000000e+00 : f32
    %350 = vector.broadcast %cst_130 : f32 to vector<8x128xf32>
    %351 = arith.addf %350, %349 : vector<8x128xf32>
    %352 = arith.divf %350, %351 : vector<8x128xf32>
    %353 = vector.extract_strided_slice %340 {offsets = [0, 256], sizes = [8, 128], strides = [1, 1]} : vector<8x512xf32> to vector<8x128xf32>
    %354 = math.tanh %353 : vector<8x128xf32>
    %355 = vector.extract_strided_slice %340 {offsets = [0, 384], sizes = [8, 128], strides = [1, 1]} : vector<8x512xf32> to vector<8x128xf32>
    %356 = arith.negf %355 : vector<8x128xf32>
    %357 = math.exp %356 : vector<8x128xf32>
    %cst_131 = arith.constant 1.000000e+00 : f32
    %358 = vector.broadcast %cst_131 : f32 to vector<8x128xf32>
    %359 = arith.addf %358, %357 : vector<8x128xf32>
    %360 = arith.divf %358, %359 : vector<8x128xf32>
    %361 = arith.mulf %352, %292 : vector<8x128xf32>
    %362 = arith.mulf %346, %354 : vector<8x128xf32>
    %363 = arith.addf %361, %362 : vector<8x128xf32>
    %364 = math.tanh %363 : vector<8x128xf32>
    %365 = arith.mulf %360, %364 : vector<8x128xf32>
    %c5 = arith.constant 5 : index
    %c0_132 = arith.constant 0 : index
    %c0_133 = arith.constant 0 : index
    %366 = vector.load %arg1[%c5, %c0_132, %c0_133] : memref<8x8x128xbf16, #tpu.memory_space<vmem>>, vector<1x8x128xbf16>
    %367 = vector.shape_cast %366 : vector<1x8x128xbf16> to vector<8x128xbf16>
    %c0_134 = arith.constant 0 : index
    %c0_135 = arith.constant 0 : index
    %368 = vector.load %arg2[%c0_134, %c0_135] : memref<128x512xbf16, #tpu.memory_space<vmem>>, vector<128x512xbf16>
    %cst_136 = arith.constant dense<0.000000e+00> : vector<8x512xf32>
    %369 = tpu.matmul %367, %368, %cst_136 {dimension_numbers = #tpu.dot_dimension_numbers<[1], [0], [0], [1], [0, 0, 1, 1], [], []>} : vector<8x128xbf16>, vector<128x512xbf16>, vector<8x512xf32> -> vector<8x512xf32>
    %370 = arith.truncf %330 : vector<8x128xf32> to vector<8x128xbf16>
    %c0_137 = arith.constant 0 : index
    %c0_138 = arith.constant 0 : index
    %371 = vector.load %arg3[%c0_137, %c0_138] : memref<128x512xbf16, #tpu.memory_space<vmem>>, vector<128x512xbf16>
    %cst_139 = arith.constant dense<0.000000e+00> : vector<8x512xf32>
    %372 = tpu.matmul %370, %371, %cst_139 {dimension_numbers = #tpu.dot_dimension_numbers<[1], [0], [0], [1], [0, 0, 1, 1], [], []>} : vector<8x128xbf16>, vector<128x512xbf16>, vector<8x512xf32> -> vector<8x512xf32>
    %373 = arith.addf %369, %372 : vector<8x512xf32>
    %c0_140 = arith.constant 0 : index
    %c0_141 = arith.constant 0 : index
    %374 = vector.load %arg4[%c0_140, %c0_141] : memref<1x512xf32, #tpu.memory_space<vmem>>, vector<1x512xf32>
    %375 = vector.broadcast %374 : vector<1x512xf32> to vector<8x512xf32>
    %376 = arith.addf %373, %375 : vector<8x512xf32>
    %377 = vector.extract_strided_slice %376 {offsets = [0, 0], sizes = [8, 128], strides = [1, 1]} : vector<8x512xf32> to vector<8x128xf32>
    %378 = arith.negf %377 : vector<8x128xf32>
    %379 = math.exp %378 : vector<8x128xf32>
    %cst_142 = arith.constant 1.000000e+00 : f32
    %380 = vector.broadcast %cst_142 : f32 to vector<8x128xf32>
    %381 = arith.addf %380, %379 : vector<8x128xf32>
    %382 = arith.divf %380, %381 : vector<8x128xf32>
    %383 = vector.extract_strided_slice %376 {offsets = [0, 128], sizes = [8, 128], strides = [1, 1]} : vector<8x512xf32> to vector<8x128xf32>
    %384 = arith.negf %383 : vector<8x128xf32>
    %385 = math.exp %384 : vector<8x128xf32>
    %cst_143 = arith.constant 1.000000e+00 : f32
    %386 = vector.broadcast %cst_143 : f32 to vector<8x128xf32>
    %387 = arith.addf %386, %385 : vector<8x128xf32>
    %388 = arith.divf %386, %387 : vector<8x128xf32>
    %389 = vector.extract_strided_slice %376 {offsets = [0, 256], sizes = [8, 128], strides = [1, 1]} : vector<8x512xf32> to vector<8x128xf32>
    %390 = math.tanh %389 : vector<8x128xf32>
    %391 = vector.extract_strided_slice %376 {offsets = [0, 384], sizes = [8, 128], strides = [1, 1]} : vector<8x512xf32> to vector<8x128xf32>
    %392 = arith.negf %391 : vector<8x128xf32>
    %393 = math.exp %392 : vector<8x128xf32>
    %cst_144 = arith.constant 1.000000e+00 : f32
    %394 = vector.broadcast %cst_144 : f32 to vector<8x128xf32>
    %395 = arith.addf %394, %393 : vector<8x128xf32>
    %396 = arith.divf %394, %395 : vector<8x128xf32>
    %397 = arith.mulf %388, %328 : vector<8x128xf32>
    %398 = arith.mulf %382, %390 : vector<8x128xf32>
    %399 = arith.addf %397, %398 : vector<8x128xf32>
    %400 = math.tanh %399 : vector<8x128xf32>
    %401 = arith.mulf %396, %400 : vector<8x128xf32>
    %402 = arith.truncf %401 : vector<8x128xf32> to vector<8x128xbf16>
    %c0_145 = arith.constant 0 : index
    %c0_146 = arith.constant 0 : index
    %403 = vector.load %arg5[%c0_145, %c0_146] : memref<128x512xbf16, #tpu.memory_space<vmem>>, vector<128x512xbf16>
    %cst_147 = arith.constant dense<0.000000e+00> : vector<8x512xf32>
    %404 = tpu.matmul %402, %403, %cst_147 {dimension_numbers = #tpu.dot_dimension_numbers<[1], [0], [0], [1], [0, 0, 1, 1], [], []>} : vector<8x128xbf16>, vector<128x512xbf16>, vector<8x512xf32> -> vector<8x512xf32>
    %405 = arith.truncf %365 : vector<8x128xf32> to vector<8x128xbf16>
    %c0_148 = arith.constant 0 : index
    %c0_149 = arith.constant 0 : index
    %406 = vector.load %arg6[%c0_148, %c0_149] : memref<128x512xbf16, #tpu.memory_space<vmem>>, vector<128x512xbf16>
    %cst_150 = arith.constant dense<0.000000e+00> : vector<8x512xf32>
    %407 = tpu.matmul %405, %406, %cst_150 {dimension_numbers = #tpu.dot_dimension_numbers<[1], [0], [0], [1], [0, 0, 1, 1], [], []>} : vector<8x128xbf16>, vector<128x512xbf16>, vector<8x512xf32> -> vector<8x512xf32>
    %408 = arith.addf %404, %407 : vector<8x512xf32>
    %c0_151 = arith.constant 0 : index
    %c0_152 = arith.constant 0 : index
    %409 = vector.load %arg7[%c0_151, %c0_152] : memref<1x512xf32, #tpu.memory_space<vmem>>, vector<1x512xf32>
    %410 = vector.broadcast %409 : vector<1x512xf32> to vector<8x512xf32>
    %411 = arith.addf %408, %410 : vector<8x512xf32>
    %412 = vector.extract_strided_slice %411 {offsets = [0, 0], sizes = [8, 128], strides = [1, 1]} : vector<8x512xf32> to vector<8x128xf32>
    %413 = arith.negf %412 : vector<8x128xf32>
    %414 = math.exp %413 : vector<8x128xf32>
    %cst_153 = arith.constant 1.000000e+00 : f32
    %415 = vector.broadcast %cst_153 : f32 to vector<8x128xf32>
    %416 = arith.addf %415, %414 : vector<8x128xf32>
    %417 = arith.divf %415, %416 : vector<8x128xf32>
    %418 = vector.extract_strided_slice %411 {offsets = [0, 128], sizes = [8, 128], strides = [1, 1]} : vector<8x512xf32> to vector<8x128xf32>
    %419 = arith.negf %418 : vector<8x128xf32>
    %420 = math.exp %419 : vector<8x128xf32>
    %cst_154 = arith.constant 1.000000e+00 : f32
    %421 = vector.broadcast %cst_154 : f32 to vector<8x128xf32>
    %422 = arith.addf %421, %420 : vector<8x128xf32>
    %423 = arith.divf %421, %422 : vector<8x128xf32>
    %424 = vector.extract_strided_slice %411 {offsets = [0, 256], sizes = [8, 128], strides = [1, 1]} : vector<8x512xf32> to vector<8x128xf32>
    %425 = math.tanh %424 : vector<8x128xf32>
    %426 = vector.extract_strided_slice %411 {offsets = [0, 384], sizes = [8, 128], strides = [1, 1]} : vector<8x512xf32> to vector<8x128xf32>
    %427 = arith.negf %426 : vector<8x128xf32>
    %428 = math.exp %427 : vector<8x128xf32>
    %cst_155 = arith.constant 1.000000e+00 : f32
    %429 = vector.broadcast %cst_155 : f32 to vector<8x128xf32>
    %430 = arith.addf %429, %428 : vector<8x128xf32>
    %431 = arith.divf %429, %430 : vector<8x128xf32>
    %432 = arith.mulf %423, %363 : vector<8x128xf32>
    %433 = arith.mulf %417, %425 : vector<8x128xf32>
    %434 = arith.addf %432, %433 : vector<8x128xf32>
    %435 = math.tanh %434 : vector<8x128xf32>
    %436 = arith.mulf %431, %435 : vector<8x128xf32>
    %c6 = arith.constant 6 : index
    %c0_156 = arith.constant 0 : index
    %c0_157 = arith.constant 0 : index
    %437 = vector.load %arg1[%c6, %c0_156, %c0_157] : memref<8x8x128xbf16, #tpu.memory_space<vmem>>, vector<1x8x128xbf16>
    %438 = vector.shape_cast %437 : vector<1x8x128xbf16> to vector<8x128xbf16>
    %c0_158 = arith.constant 0 : index
    %c0_159 = arith.constant 0 : index
    %439 = vector.load %arg2[%c0_158, %c0_159] : memref<128x512xbf16, #tpu.memory_space<vmem>>, vector<128x512xbf16>
    %cst_160 = arith.constant dense<0.000000e+00> : vector<8x512xf32>
    %440 = tpu.matmul %438, %439, %cst_160 {dimension_numbers = #tpu.dot_dimension_numbers<[1], [0], [0], [1], [0, 0, 1, 1], [], []>} : vector<8x128xbf16>, vector<128x512xbf16>, vector<8x512xf32> -> vector<8x512xf32>
    %441 = arith.truncf %401 : vector<8x128xf32> to vector<8x128xbf16>
    %c0_161 = arith.constant 0 : index
    %c0_162 = arith.constant 0 : index
    %442 = vector.load %arg3[%c0_161, %c0_162] : memref<128x512xbf16, #tpu.memory_space<vmem>>, vector<128x512xbf16>
    %cst_163 = arith.constant dense<0.000000e+00> : vector<8x512xf32>
    %443 = tpu.matmul %441, %442, %cst_163 {dimension_numbers = #tpu.dot_dimension_numbers<[1], [0], [0], [1], [0, 0, 1, 1], [], []>} : vector<8x128xbf16>, vector<128x512xbf16>, vector<8x512xf32> -> vector<8x512xf32>
    %444 = arith.addf %440, %443 : vector<8x512xf32>
    %c0_164 = arith.constant 0 : index
    %c0_165 = arith.constant 0 : index
    %445 = vector.load %arg4[%c0_164, %c0_165] : memref<1x512xf32, #tpu.memory_space<vmem>>, vector<1x512xf32>
    %446 = vector.broadcast %445 : vector<1x512xf32> to vector<8x512xf32>
    %447 = arith.addf %444, %446 : vector<8x512xf32>
    %448 = vector.extract_strided_slice %447 {offsets = [0, 0], sizes = [8, 128], strides = [1, 1]} : vector<8x512xf32> to vector<8x128xf32>
    %449 = arith.negf %448 : vector<8x128xf32>
    %450 = math.exp %449 : vector<8x128xf32>
    %cst_166 = arith.constant 1.000000e+00 : f32
    %451 = vector.broadcast %cst_166 : f32 to vector<8x128xf32>
    %452 = arith.addf %451, %450 : vector<8x128xf32>
    %453 = arith.divf %451, %452 : vector<8x128xf32>
    %454 = vector.extract_strided_slice %447 {offsets = [0, 128], sizes = [8, 128], strides = [1, 1]} : vector<8x512xf32> to vector<8x128xf32>
    %455 = arith.negf %454 : vector<8x128xf32>
    %456 = math.exp %455 : vector<8x128xf32>
    %cst_167 = arith.constant 1.000000e+00 : f32
    %457 = vector.broadcast %cst_167 : f32 to vector<8x128xf32>
    %458 = arith.addf %457, %456 : vector<8x128xf32>
    %459 = arith.divf %457, %458 : vector<8x128xf32>
    %460 = vector.extract_strided_slice %447 {offsets = [0, 256], sizes = [8, 128], strides = [1, 1]} : vector<8x512xf32> to vector<8x128xf32>
    %461 = math.tanh %460 : vector<8x128xf32>
    %462 = vector.extract_strided_slice %447 {offsets = [0, 384], sizes = [8, 128], strides = [1, 1]} : vector<8x512xf32> to vector<8x128xf32>
    %463 = arith.negf %462 : vector<8x128xf32>
    %464 = math.exp %463 : vector<8x128xf32>
    %cst_168 = arith.constant 1.000000e+00 : f32
    %465 = vector.broadcast %cst_168 : f32 to vector<8x128xf32>
    %466 = arith.addf %465, %464 : vector<8x128xf32>
    %467 = arith.divf %465, %466 : vector<8x128xf32>
    %468 = arith.mulf %459, %399 : vector<8x128xf32>
    %469 = arith.mulf %453, %461 : vector<8x128xf32>
    %470 = arith.addf %468, %469 : vector<8x128xf32>
    %471 = math.tanh %470 : vector<8x128xf32>
    %472 = arith.mulf %467, %471 : vector<8x128xf32>
    %473 = arith.truncf %472 : vector<8x128xf32> to vector<8x128xbf16>
    %c0_169 = arith.constant 0 : index
    %c0_170 = arith.constant 0 : index
    %474 = vector.load %arg5[%c0_169, %c0_170] : memref<128x512xbf16, #tpu.memory_space<vmem>>, vector<128x512xbf16>
    %cst_171 = arith.constant dense<0.000000e+00> : vector<8x512xf32>
    %475 = tpu.matmul %473, %474, %cst_171 {dimension_numbers = #tpu.dot_dimension_numbers<[1], [0], [0], [1], [0, 0, 1, 1], [], []>} : vector<8x128xbf16>, vector<128x512xbf16>, vector<8x512xf32> -> vector<8x512xf32>
    %476 = arith.truncf %436 : vector<8x128xf32> to vector<8x128xbf16>
    %c0_172 = arith.constant 0 : index
    %c0_173 = arith.constant 0 : index
    %477 = vector.load %arg6[%c0_172, %c0_173] : memref<128x512xbf16, #tpu.memory_space<vmem>>, vector<128x512xbf16>
    %cst_174 = arith.constant dense<0.000000e+00> : vector<8x512xf32>
    %478 = tpu.matmul %476, %477, %cst_174 {dimension_numbers = #tpu.dot_dimension_numbers<[1], [0], [0], [1], [0, 0, 1, 1], [], []>} : vector<8x128xbf16>, vector<128x512xbf16>, vector<8x512xf32> -> vector<8x512xf32>
    %479 = arith.addf %475, %478 : vector<8x512xf32>
    %c0_175 = arith.constant 0 : index
    %c0_176 = arith.constant 0 : index
    %480 = vector.load %arg7[%c0_175, %c0_176] : memref<1x512xf32, #tpu.memory_space<vmem>>, vector<1x512xf32>
    %481 = vector.broadcast %480 : vector<1x512xf32> to vector<8x512xf32>
    %482 = arith.addf %479, %481 : vector<8x512xf32>
    %483 = vector.extract_strided_slice %482 {offsets = [0, 0], sizes = [8, 128], strides = [1, 1]} : vector<8x512xf32> to vector<8x128xf32>
    %484 = arith.negf %483 : vector<8x128xf32>
    %485 = math.exp %484 : vector<8x128xf32>
    %cst_177 = arith.constant 1.000000e+00 : f32
    %486 = vector.broadcast %cst_177 : f32 to vector<8x128xf32>
    %487 = arith.addf %486, %485 : vector<8x128xf32>
    %488 = arith.divf %486, %487 : vector<8x128xf32>
    %489 = vector.extract_strided_slice %482 {offsets = [0, 128], sizes = [8, 128], strides = [1, 1]} : vector<8x512xf32> to vector<8x128xf32>
    %490 = arith.negf %489 : vector<8x128xf32>
    %491 = math.exp %490 : vector<8x128xf32>
    %cst_178 = arith.constant 1.000000e+00 : f32
    %492 = vector.broadcast %cst_178 : f32 to vector<8x128xf32>
    %493 = arith.addf %492, %491 : vector<8x128xf32>
    %494 = arith.divf %492, %493 : vector<8x128xf32>
    %495 = vector.extract_strided_slice %482 {offsets = [0, 256], sizes = [8, 128], strides = [1, 1]} : vector<8x512xf32> to vector<8x128xf32>
    %496 = math.tanh %495 : vector<8x128xf32>
    %497 = vector.extract_strided_slice %482 {offsets = [0, 384], sizes = [8, 128], strides = [1, 1]} : vector<8x512xf32> to vector<8x128xf32>
    %498 = arith.negf %497 : vector<8x128xf32>
    %499 = math.exp %498 : vector<8x128xf32>
    %cst_179 = arith.constant 1.000000e+00 : f32
    %500 = vector.broadcast %cst_179 : f32 to vector<8x128xf32>
    %501 = arith.addf %500, %499 : vector<8x128xf32>
    %502 = arith.divf %500, %501 : vector<8x128xf32>
    %503 = arith.mulf %494, %434 : vector<8x128xf32>
    %504 = arith.mulf %488, %496 : vector<8x128xf32>
    %505 = arith.addf %503, %504 : vector<8x128xf32>
    %506 = math.tanh %505 : vector<8x128xf32>
    %507 = arith.mulf %502, %506 : vector<8x128xf32>
    %c7 = arith.constant 7 : index
    %c0_180 = arith.constant 0 : index
    %c0_181 = arith.constant 0 : index
    %508 = vector.load %arg1[%c7, %c0_180, %c0_181] : memref<8x8x128xbf16, #tpu.memory_space<vmem>>, vector<1x8x128xbf16>
    %509 = vector.shape_cast %508 : vector<1x8x128xbf16> to vector<8x128xbf16>
    %c0_182 = arith.constant 0 : index
    %c0_183 = arith.constant 0 : index
    %510 = vector.load %arg2[%c0_182, %c0_183] : memref<128x512xbf16, #tpu.memory_space<vmem>>, vector<128x512xbf16>
    %cst_184 = arith.constant dense<0.000000e+00> : vector<8x512xf32>
    %511 = tpu.matmul %509, %510, %cst_184 {dimension_numbers = #tpu.dot_dimension_numbers<[1], [0], [0], [1], [0, 0, 1, 1], [], []>} : vector<8x128xbf16>, vector<128x512xbf16>, vector<8x512xf32> -> vector<8x512xf32>
    %512 = arith.truncf %472 : vector<8x128xf32> to vector<8x128xbf16>
    %c0_185 = arith.constant 0 : index
    %c0_186 = arith.constant 0 : index
    %513 = vector.load %arg3[%c0_185, %c0_186] : memref<128x512xbf16, #tpu.memory_space<vmem>>, vector<128x512xbf16>
    %cst_187 = arith.constant dense<0.000000e+00> : vector<8x512xf32>
    %514 = tpu.matmul %512, %513, %cst_187 {dimension_numbers = #tpu.dot_dimension_numbers<[1], [0], [0], [1], [0, 0, 1, 1], [], []>} : vector<8x128xbf16>, vector<128x512xbf16>, vector<8x512xf32> -> vector<8x512xf32>
    %515 = arith.addf %511, %514 : vector<8x512xf32>
    %c0_188 = arith.constant 0 : index
    %c0_189 = arith.constant 0 : index
    %516 = vector.load %arg4[%c0_188, %c0_189] : memref<1x512xf32, #tpu.memory_space<vmem>>, vector<1x512xf32>
    %517 = vector.broadcast %516 : vector<1x512xf32> to vector<8x512xf32>
    %518 = arith.addf %515, %517 : vector<8x512xf32>
    %519 = vector.extract_strided_slice %518 {offsets = [0, 0], sizes = [8, 128], strides = [1, 1]} : vector<8x512xf32> to vector<8x128xf32>
    %520 = arith.negf %519 : vector<8x128xf32>
    %521 = math.exp %520 : vector<8x128xf32>
    %cst_190 = arith.constant 1.000000e+00 : f32
    %522 = vector.broadcast %cst_190 : f32 to vector<8x128xf32>
    %523 = arith.addf %522, %521 : vector<8x128xf32>
    %524 = arith.divf %522, %523 : vector<8x128xf32>
    %525 = vector.extract_strided_slice %518 {offsets = [0, 128], sizes = [8, 128], strides = [1, 1]} : vector<8x512xf32> to vector<8x128xf32>
    %526 = arith.negf %525 : vector<8x128xf32>
    %527 = math.exp %526 : vector<8x128xf32>
    %cst_191 = arith.constant 1.000000e+00 : f32
    %528 = vector.broadcast %cst_191 : f32 to vector<8x128xf32>
    %529 = arith.addf %528, %527 : vector<8x128xf32>
    %530 = arith.divf %528, %529 : vector<8x128xf32>
    %531 = vector.extract_strided_slice %518 {offsets = [0, 256], sizes = [8, 128], strides = [1, 1]} : vector<8x512xf32> to vector<8x128xf32>
    %532 = math.tanh %531 : vector<8x128xf32>
    %533 = vector.extract_strided_slice %518 {offsets = [0, 384], sizes = [8, 128], strides = [1, 1]} : vector<8x512xf32> to vector<8x128xf32>
    %534 = arith.negf %533 : vector<8x128xf32>
    %535 = math.exp %534 : vector<8x128xf32>
    %cst_192 = arith.constant 1.000000e+00 : f32
    %536 = vector.broadcast %cst_192 : f32 to vector<8x128xf32>
    %537 = arith.addf %536, %535 : vector<8x128xf32>
    %538 = arith.divf %536, %537 : vector<8x128xf32>
    %539 = arith.mulf %530, %470 : vector<8x128xf32>
    %540 = arith.mulf %524, %532 : vector<8x128xf32>
    %541 = arith.addf %539, %540 : vector<8x128xf32>
    %542 = math.tanh %541 : vector<8x128xf32>
    %543 = arith.mulf %538, %542 : vector<8x128xf32>
    %544 = arith.truncf %543 : vector<8x128xf32> to vector<8x128xbf16>
    %c0_193 = arith.constant 0 : index
    %c0_194 = arith.constant 0 : index
    %545 = vector.load %arg5[%c0_193, %c0_194] : memref<128x512xbf16, #tpu.memory_space<vmem>>, vector<128x512xbf16>
    %cst_195 = arith.constant dense<0.000000e+00> : vector<8x512xf32>
    %546 = tpu.matmul %544, %545, %cst_195 {dimension_numbers = #tpu.dot_dimension_numbers<[1], [0], [0], [1], [0, 0, 1, 1], [], []>} : vector<8x128xbf16>, vector<128x512xbf16>, vector<8x512xf32> -> vector<8x512xf32>
    %547 = arith.truncf %507 : vector<8x128xf32> to vector<8x128xbf16>
    %c0_196 = arith.constant 0 : index
    %c0_197 = arith.constant 0 : index
    %548 = vector.load %arg6[%c0_196, %c0_197] : memref<128x512xbf16, #tpu.memory_space<vmem>>, vector<128x512xbf16>
    %cst_198 = arith.constant dense<0.000000e+00> : vector<8x512xf32>
    %549 = tpu.matmul %547, %548, %cst_198 {dimension_numbers = #tpu.dot_dimension_numbers<[1], [0], [0], [1], [0, 0, 1, 1], [], []>} : vector<8x128xbf16>, vector<128x512xbf16>, vector<8x512xf32> -> vector<8x512xf32>
    %550 = arith.addf %546, %549 : vector<8x512xf32>
    %c0_199 = arith.constant 0 : index
    %c0_200 = arith.constant 0 : index
    %551 = vector.load %arg7[%c0_199, %c0_200] : memref<1x512xf32, #tpu.memory_space<vmem>>, vector<1x512xf32>
    %552 = vector.broadcast %551 : vector<1x512xf32> to vector<8x512xf32>
    %553 = arith.addf %550, %552 : vector<8x512xf32>
    %554 = vector.extract_strided_slice %553 {offsets = [0, 0], sizes = [8, 128], strides = [1, 1]} : vector<8x512xf32> to vector<8x128xf32>
    %555 = arith.negf %554 : vector<8x128xf32>
    %556 = math.exp %555 : vector<8x128xf32>
    %cst_201 = arith.constant 1.000000e+00 : f32
    %557 = vector.broadcast %cst_201 : f32 to vector<8x128xf32>
    %558 = arith.addf %557, %556 : vector<8x128xf32>
    %559 = arith.divf %557, %558 : vector<8x128xf32>
    %560 = vector.extract_strided_slice %553 {offsets = [0, 128], sizes = [8, 128], strides = [1, 1]} : vector<8x512xf32> to vector<8x128xf32>
    %561 = arith.negf %560 : vector<8x128xf32>
    %562 = math.exp %561 : vector<8x128xf32>
    %cst_202 = arith.constant 1.000000e+00 : f32
    %563 = vector.broadcast %cst_202 : f32 to vector<8x128xf32>
    %564 = arith.addf %563, %562 : vector<8x128xf32>
    %565 = arith.divf %563, %564 : vector<8x128xf32>
    %566 = vector.extract_strided_slice %553 {offsets = [0, 256], sizes = [8, 128], strides = [1, 1]} : vector<8x512xf32> to vector<8x128xf32>
    %567 = math.tanh %566 : vector<8x128xf32>
    %568 = vector.extract_strided_slice %553 {offsets = [0, 384], sizes = [8, 128], strides = [1, 1]} : vector<8x512xf32> to vector<8x128xf32>
    %569 = arith.negf %568 : vector<8x128xf32>
    %570 = math.exp %569 : vector<8x128xf32>
    %cst_203 = arith.constant 1.000000e+00 : f32
    %571 = vector.broadcast %cst_203 : f32 to vector<8x128xf32>
    %572 = arith.addf %571, %570 : vector<8x128xf32>
    %573 = arith.divf %571, %572 : vector<8x128xf32>
    %574 = arith.mulf %565, %505 : vector<8x128xf32>
    %575 = arith.mulf %559, %567 : vector<8x128xf32>
    %576 = arith.addf %574, %575 : vector<8x128xf32>
    %577 = math.tanh %576 : vector<8x128xf32>
    %578 = arith.mulf %573, %577 : vector<8x128xf32>
    %c0_204 = arith.constant 0 : index
    %c0_205 = arith.constant 0 : index
    %c0_206 = arith.constant 0 : index
    %579 = vector.load %arg8[%c0_204, %c0_205, %c0_206] : memref<2x8x128xf32, #tpu.memory_space<vmem>>, vector<1x8x128xf32>
    %580 = vector.shape_cast %579 : vector<1x8x128xf32> to vector<8x128xf32>
    %581 = vector.shape_cast %543 : vector<8x128xf32> to vector<1x8x128xf32>
    tpu.vector_store %arg8[%c0_204, %c0_205, %c0_206], %581 {strides = array<i32>} : memref<2x8x128xf32, #tpu.memory_space<vmem>>, vector<1x8x128xf32>,
    %c0_207 = arith.constant 0 : index
    %c0_208 = arith.constant 0 : index
    %c0_209 = arith.constant 0 : index
    %582 = vector.load %arg9[%c0_207, %c0_208, %c0_209] : memref<2x8x128xf32, #tpu.memory_space<vmem>>, vector<1x8x128xf32>
    %583 = vector.shape_cast %582 : vector<1x8x128xf32> to vector<8x128xf32>
    %584 = vector.shape_cast %541 : vector<8x128xf32> to vector<1x8x128xf32>
    tpu.vector_store %arg9[%c0_207, %c0_208, %c0_209], %584 {strides = array<i32>} : memref<2x8x128xf32, #tpu.memory_space<vmem>>, vector<1x8x128xf32>,
    %c1_210 = arith.constant 1 : index
    %c0_211 = arith.constant 0 : index
    %c0_212 = arith.constant 0 : index
    %585 = vector.load %arg8[%c1_210, %c0_211, %c0_212] : memref<2x8x128xf32, #tpu.memory_space<vmem>>, vector<1x8x128xf32>
    %586 = vector.shape_cast %585 : vector<1x8x128xf32> to vector<8x128xf32>
    %587 = vector.shape_cast %578 : vector<8x128xf32> to vector<1x8x128xf32>
    tpu.vector_store %arg8[%c1_210, %c0_211, %c0_212], %587 {strides = array<i32>} : memref<2x8x128xf32, #tpu.memory_space<vmem>>, vector<1x8x128xf32>,
    %c1_213 = arith.constant 1 : index
    %c0_214 = arith.constant 0 : index
    %c0_215 = arith.constant 0 : index
    %588 = vector.load %arg9[%c1_213, %c0_214, %c0_215] : memref<2x8x128xf32, #tpu.memory_space<vmem>>, vector<1x8x128xf32>
    %589 = vector.shape_cast %588 : vector<1x8x128xf32> to vector<8x128xf32>
    %590 = vector.shape_cast %576 : vector<8x128xf32> to vector<1x8x128xf32>
    tpu.vector_store %arg9[%c1_213, %c0_214, %c0_215], %590 {strides = array<i32>} : memref<2x8x128xf32, #tpu.memory_space<vmem>>, vector<1x8x128xf32>,
    return
  }
  func.func @transform_0(%arg0: i32) -> (i32, i32, i32) {
    %c0_i32 = arith.constant 0 : i32
    %c0_i32_0 = arith.constant 0 : i32
    %c0_i32_1 = arith.constant 0 : i32
    return %arg0, %c0_i32, %c0_i32_0 : i32, i32, i32
  }
  func.func @transform_1(%arg0: i32) -> (i32, i32) {
    %c0_i32 = arith.constant 0 : i32
    %c0_i32_0 = arith.constant 0 : i32
    %c0_i32_1 = arith.constant 0 : i32
    return %c0_i32, %c0_i32_0 : i32, i32
  }
  func.func @transform_2(%arg0: i32) -> (i32, i32) {
    %c0_i32 = arith.constant 0 : i32
    %c0_i32_0 = arith.constant 0 : i32
    %c0_i32_1 = arith.constant 0 : i32
    return %c0_i32, %c0_i32_0 : i32, i32
  }
  func.func @transform_3(%arg0: i32) -> (i32, i32) {
    %c0_i32 = arith.constant 0 : i32
    %c0_i32_0 = arith.constant 0 : i32
    %c0_i32_1 = arith.constant 0 : i32
    return %c0_i32, %c0_i32_0 : i32, i32
  }
  func.func @transform_4(%arg0: i32) -> (i32, i32) {
    %c0_i32 = arith.constant 0 : i32
    %c0_i32_0 = arith.constant 0 : i32
    %c0_i32_1 = arith.constant 0 : i32
    return %c0_i32, %c0_i32_0 : i32, i32
  }
  func.func @transform_5(%arg0: i32) -> (i32, i32) {
    %c0_i32 = arith.constant 0 : i32
    %c0_i32_0 = arith.constant 0 : i32
    %c0_i32_1 = arith.constant 0 : i32
    return %c0_i32, %c0_i32_0 : i32, i32
  }
  func.func @transform_6(%arg0: i32) -> (i32, i32) {
    %c0_i32 = arith.constant 0 : i32
    %c0_i32_0 = arith.constant 0 : i32
    %c0_i32_1 = arith.constant 0 : i32
    return %c0_i32, %c0_i32_0 : i32, i32
  }
  func.func @transform_7(%arg0: i32) -> (i32, i32, i32) {
    %c0_i32 = arith.constant 0 : i32
    %c0_i32_0 = arith.constant 0 : i32
    %c0_i32_1 = arith.constant 0 : i32
    %c0_i32_2 = arith.constant 0 : i32
    return %c0_i32, %c0_i32_0, %c0_i32_1 : i32, i32, i32
  }
  func.func @transform_8(%arg0: i32) -> (i32, i32, i32) {
    %c0_i32 = arith.constant 0 : i32
    %c0_i32_0 = arith.constant 0 : i32
    %c0_i32_1 = arith.constant 0 : i32
    %c0_i32_2 = arith.constant 0 : i32
    return %c0_i32, %c0_i32_0, %c0_i32_1 : i32, i32, i32
  }
}

</mosaic_0001>

<llo_original>
// kernel: tpu_custom_call.1
$region0: #{tpu_custom_call.1}
  #allocation0 [shape = 'u32[]', space=smem, size = 0x4, offset = 0x4, fixed_abs, tag = 'smem constant byte address 0x4 - core index']
  #allocation1 [shape = 'u32[144,128]{1,0:T(1,128)}', space=vmem, size = 0x12000, scoped, tag = 'internal scratch']
  %s0 = inlined_call_operand.hbm [shape: bf16[8,8,128], index: 0, kind: input, shape index: {}]
  %s1 = inlined_call_operand.hbm [shape: bf16[128,512], index: 1, kind: input, shape index: {}]
  %s2 = inlined_call_operand.hbm [shape: bf16[128,512], index: 2, kind: input, shape index: {}]
  %s3 = inlined_call_operand.vmem [shape: f32[1,512], index: 3, kind: input, shape index: {}]
  %s4 = inlined_call_operand.hbm [shape: bf16[128,512], index: 4, kind: input, shape index: {}]
  %s5 = inlined_call_operand.hbm [shape: bf16[128,512], index: 5, kind: input, shape index: {}]
  %s6 = inlined_call_operand.vmem [shape: f32[1,512], index: 6, kind: input, shape index: {}]
  %s7 = inlined_call_operand.hbm [shape: f32[2,8,128], index: 7, kind: output, shape index: {0}]
  %s8 = inlined_call_operand.hbm [shape: f32[2,8,128], index: 8, kind: output, shape index: {1}]
  %9 = xla_tuple %s7, %s8
  %s10 = sld [smem:[#allocation0]]
  $region70: #{tpu_custom_call.1} parent=0
    _
  %s12 = ssub.s32 1, %s10
  %s13 = scalar_select 0, %s12, %s10
  $region1: #{tpu_custom_call.1} parent=0
    #allocation2 [shape = 'u8[16384]{0}', space=vmem, size = 0x4000, scoped, tag = 'input window, operand 0, single buffered']
    #allocation3 [shape = 's32[1]{0}', space=sflag, size = 0x4, scoped, tag = 'scoped memory for tpu_custom_call.1']
    #allocation4 [shape = 's32[1]{0}', space=sflag, size = 0x4, scoped, tag = 'scoped memory for tpu_custom_call.1']
    #allocation5 [shape = 'u8[131072]{0}', space=vmem, size = 0x20000, scoped, tag = 'input window, operand 1, single buffered']
    #allocation6 [shape = 's32[1]{0}', space=sflag, size = 0x4, scoped, tag = 'scoped memory for tpu_custom_call.1']
    #allocation7 [shape = 'u8[131072]{0}', space=vmem, size = 0x20000, scoped, tag = 'input window, operand 2, single buffered']
    #allocation8 [shape = 'u8[131072]{0}', space=vmem, size = 0x20000, scoped, tag = 'input window, operand 4, single buffered']
    #allocation9 [shape = 's32[1]{0}', space=sflag, size = 0x4, scoped, tag = 'scoped memory for tpu_custom_call.1']
    #allocation10 [shape = 'u8[131072]{0}', space=vmem, size = 0x20000, scoped, tag = 'input window, operand 5, single buffered']
    #allocation11 [shape = 'u8[8192]{0}', space=vmem, size = 0x2000, scoped, tag = 'output window, operand 0, single buffered']
    #allocation12 [shape = 'u8[8192]{0}', space=vmem, size = 0x2000, scoped, tag = 'output window, operand 1, single buffered']
    #allocation13 [shape = 's32[1]{0}', space=sflag, size = 0x4, scoped, tag = 'scoped memory for tpu_custom_call.1']
    %14 = vsyncpa [#allocation3], 0
    %15 = vsyncpa [#allocation6], 0
    %16 = vsyncpa [#allocation9], 0
    %17 = vsyncpa [#allocation4], 0
    %18 = vsyncpa [#allocation13], 0
    // Predicated region
    $region2: #{tpu_custom_call.1} parent=1 // pred_check
      _
    $region3: #{tpu_custom_call.1} parent=1 // pred_check_branch
      %20 = sbr.rel (0) target = $region5
    $region4: #{tpu_custom_call.1} parent=1 // pred_region
      %s22 = ssub.s32 512, 512
      %23 = vsyncadd [#allocation3], %s22
      %s24 = sshll.u32 [#allocation2], 4
      %s25 = int_to_ptr.vmem [resolvable:$true] %s24
      %30 = dma.hbm_to_vmem [thread:$0]  %s0, 512, %s25, [#allocation3], 64, 64, 4
    $region5: #{tpu_custom_call.1} parent=1 // pred_fallthru
      _
    // Predicated region
    $region6: #{tpu_custom_call.1} parent=1 // pred_check
      _
    $region7: #{tpu_custom_call.1} parent=1 // pred_check_branch
      %32 = sbr.rel (0) target = $region9
    $region8: #{tpu_custom_call.1} parent=1 // pred_region
      %s34 = ssub.s32 4096, 4096
      %35 = vsyncadd [#allocation6], %s34
      %s36 = sshll.u32 [#allocation5], 4
      %s37 = int_to_ptr.vmem [resolvable:$true] %s36
      %42 = dma.hbm_to_vmem [thread:$0]  %s1, 4096, %s37, [#allocation6], 256, 256, 16
    $region9: #{tpu_custom_call.1} parent=1 // pred_fallthru
      _
    // Predicated region
    $region10: #{tpu_custom_call.1} parent=1 // pred_check
      _
    $region11: #{tpu_custom_call.1} parent=1 // pred_check_branch
      %44 = sbr.rel (0) target = $region13
    $region12: #{tpu_custom_call.1} parent=1 // pred_region
      %s46 = ssub.s32 4096, 4096
      %47 = vsyncadd [#allocation6], %s46
      %s48 = sshll.u32 [#allocation7], 4
      %s49 = int_to_ptr.vmem [resolvable:$true] %s48
      %54 = dma.hbm_to_vmem [thread:$0]  %s2, 4096, %s49, [#allocation6], 256, 256, 16
    $region13: #{tpu_custom_call.1} parent=1 // pred_fallthru
      _
    // Predicated region
    $region14: #{tpu_custom_call.1} parent=1 // pred_check
      _
    $region15: #{tpu_custom_call.1} parent=1 // pred_check_branch
      %56 = sbr.rel (0) target = $region17
    $region16: #{tpu_custom_call.1} parent=1 // pred_region
      _
    $region17: #{tpu_custom_call.1} parent=1 // pred_fallthru
      _
    // Predicated region
    $region18: #{tpu_custom_call.1} parent=1 // pred_check
      _
    $region19: #{tpu_custom_call.1} parent=1 // pred_check_branch
      %58 = sbr.rel (0) target = $region21
    $region20: #{tpu_custom_call.1} parent=1 // pred_region
      %s60 = ssub.s32 4096, 4096
      %61 = vsyncadd [#allocation9], %s60
      %s62 = sshll.u32 [#allocation8], 4
      %s63 = int_to_ptr.vmem [resolvable:$true] %s62
      %68 = dma.hbm_to_vmem [thread:$0]  %s4, 4096, %s63, [#allocation9], 256, 256, 16
    $region21: #{tpu_custom_call.1} parent=1 // pred_fallthru
      _
    // Predicated region
    $region22: #{tpu_custom_call.1} parent=1 // pred_check
      _
    $region23: #{tpu_custom_call.1} parent=1 // pred_check_branch
      %70 = sbr.rel (0) target = $region25
    $region24: #{tpu_custom_call.1} parent=1 // pred_region
      %s72 = ssub.s32 4096, 4096
      %73 = vsyncadd [#allocation9], %s72
      %s74 = sshll.u32 [#allocation10], 4
      %s75 = int_to_ptr.vmem [resolvable:$true] %s74
      %80 = dma.hbm_to_vmem [thread:$0]  %s5, 4096, %s75, [#allocation9], 256, 256, 16
    $region25: #{tpu_custom_call.1} parent=1 // pred_fallthru
      _
    // Predicated region
    $region26: #{tpu_custom_call.1} parent=1 // pred_check
      _
    $region27: #{tpu_custom_call.1} parent=1 // pred_check_branch
      %82 = sbr.rel (0) target = $region29
    $region28: #{tpu_custom_call.1} parent=1 // pred_region
      _
    $region29: #{tpu_custom_call.1} parent=1 // pred_fallthru
      _
    // Predicated region
    $region30: #{tpu_custom_call.1} parent=1 // pred_check
      _
    $region31: #{tpu_custom_call.1} parent=1 // pred_check_branch
      %84 = sbr.rel (0) target = $region33
    $region32: #{tpu_custom_call.1} parent=1 // pred_region
      %85 = dma.done [#allocation3], 512
    $region33: #{tpu_custom_call.1} parent=1 // pred_fallthru
      _
    // Predicated region
    $region34: #{tpu_custom_call.1} parent=1 // pred_check
      _
    $region35: #{tpu_custom_call.1} parent=1 // pred_check_branch
      %87 = sbr.rel (0) target = $region37
    $region36: #{tpu_custom_call.1} parent=1 // pred_region
      %88 = dma.done [#allocation6], 4096
    $region37: #{tpu_custom_call.1} parent=1 // pred_fallthru
      _
    // Predicated region
    $region38: #{tpu_custom_call.1} parent=1 // pred_check
      _
    $region39: #{tpu_custom_call.1} parent=1 // pred_check_branch
      %90 = sbr.rel (0) target = $region41
    $region40: #{tpu_custom_call.1} parent=1 // pred_region
      %91 = dma.done [#allocation6], 4096
    $region41: #{tpu_custom_call.1} parent=1 // pred_fallthru
      _
    // Predicated region
    $region42: #{tpu_custom_call.1} parent=1 // pred_check
      _
    $region43: #{tpu_custom_call.1} parent=1 // pred_check_branch
      %93 = sbr.rel (0) target = $region45
    $region44: #{tpu_custom_call.1} parent=1 // pred_region
      %94 = dma.done [#allocation9], 4096
    $region45: #{tpu_custom_call.1} parent=1 // pred_fallthru
      _
    // Predicated region
    $region46: #{tpu_custom_call.1} parent=1 // pred_check
      _
    $region47: #{tpu_custom_call.1} parent=1 // pred_check_branch
      %96 = sbr.rel (0) target = $region49
    $region48: #{tpu_custom_call.1} parent=1 // pred_region
      %97 = dma.done [#allocation9], 4096
    $region49: #{tpu_custom_call.1} parent=1 // pred_fallthru
      _
    %p99 = scmp.eq.s32.totalorder 0, 0
    // Predicated region
    $region50: #{tpu_custom_call.1} parent=1 // pred_check
      %p100 = pneg %p99
    $region51: #{tpu_custom_call.1} parent=1 // pred_check_branch
      %102 = sbr.rel (%p100) target = $region53
    $region52: #{tpu_custom_call.1} parent=1 // pred_region
      %103 = vst [vmem:[#allocation11] sm:$0xff] 0.0
      %104 = vst [vmem:[#allocation11 + $0x8] sm:$0xff] 0.0
      %105 = vst [vmem:[#allocation12] sm:$0xff] 0.0
      %106 = vst [vmem:[#allocation12 + $0x8] sm:$0xff] 0.0
    $region53: #{tpu_custom_call.1} parent=1 // pred_fallthru
      _
    %v107 = vld [vmem:[#allocation11] sm:$0xff]
    %s108 = scalar_lea.vmem [#allocation11], 8
    %v109 = vld [vmem:[%s108] sm:$0xff]
    %v110 = vld [vmem:[#allocation12] sm:$0xff]
    %s111 = scalar_lea.vmem [#allocation12], 8
    %v112 = vld [vmem:[%s111] sm:$0xff]
    %v113 = vld [vmem:[#allocation2] sm:$0xf]
    %v114 = vld [vmem:[#allocation5] sm:$0xff]
    %v115 = vld [vmem:[#allocation5 + $0x8] sm:$0xff]
    %v116 = vld [vmem:[#allocation5 + $0x10] sm:$0xff]
    %v117 = vld [vmem:[#allocation5 + $0x18] sm:$0xff]
    %v118 = vld [vmem:[#allocation5 + $0x20] sm:$0xff]
    %v119 = vld [vmem:[#allocation5 + $0x28] sm:$0xff]
    %v120 = vld [vmem:[#allocation5 + $0x30] sm:$0xff]
    %v121 = vld [vmem:[#allocation5 + $0x38] sm:$0xff]
    %v122 = vld [vmem:[#allocation5 + $0x40] sm:$0xff]
    %v123 = vld [vmem:[#allocation5 + $0x48] sm:$0xff]
    %v124 = vld [vmem:[#allocation5 + $0x50] sm:$0xff]
    %v125 = vld [vmem:[#allocation5 + $0x58] sm:$0xff]
    %v126 = vld [vmem:[#allocation5 + $0x60] sm:$0xff]
    %v127 = vld [vmem:[#allocation5 + $0x68] sm:$0xff]
    %v128 = vld [vmem:[#allocation5 + $0x70] sm:$0xff]
    %v129 = vld [vmem:[#allocation5 + $0x78] sm:$0xff]
    %v130 = vld [vmem:[#allocation5 + $0x80] sm:$0xff]
    %v131 = vld [vmem:[#allocation5 + $0x88] sm:$0xff]
    %v132 = vld [vmem:[#allocation5 + $0x90] sm:$0xff]
    %v133 = vld [vmem:[#allocation5 + $0x98] sm:$0xff]
    %v134 = vld [vmem:[#allocation5 + $0xa0] sm:$0xff]
    %v135 = vld [vmem:[#allocation5 + $0xa8] sm:$0xff]
    %v136 = vld [vmem:[#allocation5 + $0xb0] sm:$0xff]
    %v137 = vld [vmem:[#allocation5 + $0xb8] sm:$0xff]
    %v138 = vld [vmem:[#allocation5 + $0xc0] sm:$0xff]
    %v139 = vld [vmem:[#allocation5 + $0xc8] sm:$0xff]
    %v140 = vld [vmem:[#allocation5 + $0xd0] sm:$0xff]
    %v141 = vld [vmem:[#allocation5 + $0xd8] sm:$0xff]
    %v142 = vld [vmem:[#allocation5 + $0xe0] sm:$0xff]
    %v143 = vld [vmem:[#allocation5 + $0xe8] sm:$0xff]
    %v144 = vld [vmem:[#allocation5 + $0xf0] sm:$0xff]
    %v145 = vld [vmem:[#allocation5 + $0xf8] sm:$0xff]
    %v146 = vpack.c.bf16 %v107, %v107
    %v147 = vld [vmem:[#allocation7] sm:$0xff]
    %v148 = vld [vmem:[#allocation7 + $0x8] sm:$0xff]
    %v149 = vld [vmem:[#allocation7 + $0x10] sm:$0xff]
    %v150 = vld [vmem:[#allocation7 + $0x18] sm:$0xff]
    %v151 = vld [vmem:[#allocation7 + $0x20] sm:$0xff]
    %v152 = vld [vmem:[#allocation7 + $0x28] sm:$0xff]
    %v153 = vld [vmem:[#allocation7 + $0x30] sm:$0xff]
    %v154 = vld [vmem:[#allocation7 + $0x38] sm:$0xff]
    %v155 = vld [vmem:[#allocation7 + $0x40] sm:$0xff]
    %v156 = vld [vmem:[#allocation7 + $0x48] sm:$0xff]
    %v157 = vld [vmem:[#allocation7 + $0x50] sm:$0xff]
    %v158 = vld [vmem:[#allocation7 + $0x58] sm:$0xff]
    %v159 = vld [vmem:[#allocation7 + $0x60] sm:$0xff]
    %v160 = vld [vmem:[#allocation7 + $0x68] sm:$0xff]
    %v161 = vld [vmem:[#allocation7 + $0x70] sm:$0xff]
    %v162 = vld [vmem:[#allocation7 + $0x78] sm:$0xff]
    %v163 = vld [vmem:[#allocation7 + $0x80] sm:$0xff]
    %v164 = vld [vmem:[#allocation7 + $0x88] sm:$0xff]
    %v165 = vld [vmem:[#allocation7 + $0x90] sm:$0xff]
    %v166 = vld [vmem:[#allocation7 + $0x98] sm:$0xff]
    %v167 = vld [vmem:[#allocation7 + $0xa0] sm:$0xff]
    %v168 = vld [vmem:[#allocation7 + $0xa8] sm:$0xff]
    %v169 = vld [vmem:[#allocation7 + $0xb0] sm:$0xff]
    %v170 = vld [vmem:[#allocation7 + $0xb8] sm:$0xff]
    %v171 = vld [vmem:[#allocation7 + $0xc0] sm:$0xff]
    %v172 = vld [vmem:[#allocation7 + $0xc8] sm:$0xff]
    %v173 = vld [vmem:[#allocation7 + $0xd0] sm:$0xff]
    %v174 = vld [vmem:[#allocation7 + $0xd8] sm:$0xff]
    %v175 = vld [vmem:[#allocation7 + $0xe0] sm:$0xff]
    %v176 = vld [vmem:[#allocation7 + $0xe8] sm:$0xff]
    %v177 = vld [vmem:[#allocation7 + $0xf0] sm:$0xff]
    %v178 = vld [vmem:[#allocation7 + $0xf8] sm:$0xff]
    %v211 = vunpack.c.l.b16 %v147
    %v212 = vunpack.c.h.b16 %v147
    %v213 = vunpack.c.l.b16 %v148
    %v214 = vunpack.c.h.b16 %v148
    %v215 = vunpack.c.l.b16 %v149
    %v216 = vunpack.c.h.b16 %v149
    %v217 = vunpack.c.l.b16 %v150
    %v218 = vunpack.c.h.b16 %v150
    %v219 = vunpack.c.l.b16 %v151
    %v220 = vunpack.c.h.b16 %v151
    %v221 = vunpack.c.l.b16 %v152
    %v222 = vunpack.c.h.b16 %v152
    %v223 = vunpack.c.l.b16 %v153
    %v224 = vunpack.c.h.b16 %v153
    %v225 = vunpack.c.l.b16 %v154
    %v226 = vunpack.c.h.b16 %v154
    %v227 = vunpack.c.l.b16 %v155
    %v228 = vunpack.c.h.b16 %v155
    %v229 = vunpack.c.l.b16 %v156
    %v230 = vunpack.c.h.b16 %v156
    %v231 = vunpack.c.l.b16 %v157
    %v232 = vunpack.c.h.b16 %v157
    %v233 = vunpack.c.l.b16 %v158
    %v234 = vunpack.c.h.b16 %v158
    %v235 = vunpack.c.l.b16 %v159
    %v236 = vunpack.c.h.b16 %v159
    %v237 = vunpack.c.l.b16 %v160
    %v238 = vunpack.c.h.b16 %v160
    %v239 = vunpack.c.l.b16 %v161
    %v240 = vunpack.c.h.b16 %v161
    %v241 = vunpack.c.l.b16 %v162
    %v242 = vunpack.c.h.b16 %v162
    %v243 = vunpack.c.l.b16 %v163
    %v244 = vunpack.c.h.b16 %v163
    %v245 = vunpack.c.l.b16 %v164
    %v246 = vunpack.c.h.b16 %v164
    %v247 = vunpack.c.l.b16 %v165
    %v248 = vunpack.c.h.b16 %v165
    %v249 = vunpack.c.l.b16 %v166
    %v250 = vunpack.c.h.b16 %v166
    %v251 = vunpack.c.l.b16 %v167
    %v252 = vunpack.c.h.b16 %v167
    %v253 = vunpack.c.l.b16 %v168
    %v254 = vunpack.c.h.b16 %v168
    %v255 = vunpack.c.l.b16 %v169
    %v256 = vunpack.c.h.b16 %v169
    %v257 = vunpack.c.l.b16 %v170
    %v258 = vunpack.c.h.b16 %v170
    %v259 = vunpack.c.l.b16 %v171
    %v260 = vunpack.c.h.b16 %v171
    %v261 = vunpack.c.l.b16 %v172
    %v262 = vunpack.c.h.b16 %v172
    %v263 = vunpack.c.l.b16 %v173
    %v264 = vunpack.c.h.b16 %v173
    %v265 = vunpack.c.l.b16 %v174
    %v266 = vunpack.c.h.b16 %v174
    %v267 = vunpack.c.l.b16 %v175
    %v268 = vunpack.c.h.b16 %v175
    %v269 = vunpack.c.l.b16 %v176
    %v270 = vunpack.c.h.b16 %v176
    %v271 = vunpack.c.l.b16 %v177
    %v272 = vunpack.c.h.b16 %v177
    %v273 = vunpack.c.l.b16 %v178
    %v274 = vunpack.c.h.b16 %v178
    %v275 = vpack.c.b16 %v215, %v211
    %v276 = vpack.c.b16 %v216, %v212
    %v277 = vpack.c.b16 %v217, %v213
    %v278 = vpack.c.b16 %v218, %v214
    %v279 = vpack.c.b16 %v223, %v219
    %v280 = vpack.c.b16 %v224, %v220
    %v281 = vpack.c.b16 %v225, %v221
    %v282 = vpack.c.b16 %v226, %v222
    %v283 = vpack.c.b16 %v231, %v227
    %v284 = vpack.c.b16 %v232, %v228
    %v285 = vpack.c.b16 %v233, %v229
    %v286 = vpack.c.b16 %v234, %v230
    %v287 = vpack.c.b16 %v239, %v235
    %v288 = vpack.c.b16 %v240, %v236
    %v289 = vpack.c.b16 %v241, %v237
    %v290 = vpack.c.b16 %v242, %v238
    %v291 = vpack.c.b16 %v247, %v243
    %v292 = vpack.c.b16 %v248, %v244
    %v293 = vpack.c.b16 %v249, %v245
    %v294 = vpack.c.b16 %v250, %v246
    %v295 = vpack.c.b16 %v255, %v251
    %v296 = vpack.c.b16 %v256, %v252
    %v297 = vpack.c.b16 %v257, %v253
    %v298 = vpack.c.b16 %v258, %v254
    %v299 = vpack.c.b16 %v263, %v259
    %v300 = vpack.c.b16 %v264, %v260
    %v301 = vpack.c.b16 %v265, %v261
    %v302 = vpack.c.b16 %v266, %v262
    %v303 = vpack.c.b16 %v271, %v267
    %v304 = vpack.c.b16 %v272, %v268
    %v305 = vpack.c.b16 %v273, %v269
    %v306 = vpack.c.b16 %v274, %v270
    %339 = vmatprep.subr.bf16.mxu0 %v276
    %340 = vmatpush1.bf16.msra.mxu0 %v275
    %341 = vmatprep.subr.bf16.mxu0 %v280
    %342 = vmatpush1.bf16.msra.mxu0 %v279
    %343 = vmatprep.subr.bf16.mxu0 %v284
    %344 = vmatpush1.bf16.msra.mxu0 %v283
    %345 = vmatprep.subr.bf16.mxu0 %v288
    %346 = vmatpush1.bf16.msra.mxu0 %v287
    %347 = vmatprep.subr.bf16.mxu0 %v292
    %348 = vmatpush1.bf16.msra.mxu0 %v291
    %349 = vmatprep.subr.bf16.mxu0 %v296
    %350 = vmatpush1.bf16.msra.mxu0 %v295
    %351 = vmatprep.subr.bf16.mxu0 %v300
    %352 = vmatpush1.bf16.msra.mxu0 %v299
    %353 = vmatprep.subr.bf16.mxu0 %v304
    %354 = vmatpush1.bf16.msra.mxu0 %v303
    %355 = vmatprep.subr.bf16.mxu0 0
    %356 = vmatpush1.bf16.msra.mxu0 0
    %357 = vmatprep.subr.bf16.mxu0 0
    %358 = vmatpush1.bf16.msra.mxu0 0
    %359 = vmatprep.subr.bf16.mxu0 0
    %360 = vmatpush1.bf16.msra.mxu0 0
    %361 = vmatprep.subr.bf16.mxu0 0
    %362 = vmatpush1.bf16.msra.mxu0 0
    %363 = vmatprep.subr.bf16.mxu0 0
    %364 = vmatpush1.bf16.msra.mxu0 0
    %365 = vmatprep.subr.bf16.mxu0 0
    %366 = vmatpush1.bf16.msra.mxu0 0
    %367 = vmatprep.subr.bf16.mxu0 0
    %368 = vmatpush1.bf16.msra.mxu0 0
    %369 = vmatprep.subr.bf16.mxu0 0
    %370 = vmatpush1.bf16.msra.mxu0 0
    %371 = vmatprep.mubr.bf16.mxu0 0
    %372 = vmatmul.mubr.bf16.gmra.mrb[0].mxu0 %v146
    %v373 = vpop.f32.mrb[0].mxu0
    %v374 = vadd.f32 0.0, %v373
    %v375 = vpop.f32.mrb[0].mxu0
    %v376 = vadd.f32 0.0, %v375
    %v377 = vpop.f32.mrb[0].mxu0
    %v378 = vpop.f32.mrb[0].mxu0
    %379 = vdwg.mxu0
    %380 = vmatprep.subr.bf16.mxu0 %v278
    %381 = vmatpush1.bf16.msra.mxu0 %v277
    %382 = vmatprep.subr.bf16.mxu0 %v282
    %383 = vmatpush1.bf16.msra.mxu0 %v281
    %384 = vmatprep.subr.bf16.mxu0 %v286
    %385 = vmatpush1.bf16.msra.mxu0 %v285
    %386 = vmatprep.subr.bf16.mxu0 %v290
    %387 = vmatpush1.bf16.msra.mxu0 %v289
    %388 = vmatprep.subr.bf16.mxu0 %v294
    %389 = vmatpush1.bf16.msra.mxu0 %v293
    %390 = vmatprep.subr.bf16.mxu0 %v298
    %391 = vmatpush1.bf16.msra.mxu0 %v297
    %392 = vmatprep.subr.bf16.mxu0 %v302
    %393 = vmatpush1.bf16.msra.mxu0 %v301
    %394 = vmatprep.subr.bf16.mxu0 %v306
    %395 = vmatpush1.bf16.msra.mxu0 %v305
    %396 = vmatprep.subr.bf16.mxu0 0
    %397 = vmatpush1.bf16.msra.mxu0 0
    %398 = vmatprep.subr.bf16.mxu0 0
    %399 = vmatpush1.bf16.msra.mxu0 0
    %400 = vmatprep.subr.bf16.mxu0 0
    %401 = vmatpush1.bf16.msra.mxu0 0
    %402 = vmatprep.subr.bf16.mxu0 0
    %403 = vmatpush1.bf16.msra.mxu0 0
    %404 = vmatprep.subr.bf16.mxu0 0
    %405 = vmatpush1.bf16.msra.mxu0 0
    %406 = vmatprep.subr.bf16.mxu0 0
    %407 = vmatpush1.bf16.msra.mxu0 0
    %408 = vmatprep.subr.bf16.mxu0 0
    %409 = vmatpush1.bf16.msra.mxu0 0
    %410 = vmatprep.subr.bf16.mxu0 0
    %411 = vmatpush1.bf16.msra.mxu0 0
    %412 = vmatprep.mubr.bf16.mxu0 0
    %413 = vmatmul.mubr.bf16.gmra.mrb[0].mxu0 %v146
    %v414 = vpop.f32.mrb[0].mxu0
    %v415 = vadd.f32 0.0, %v414
    %v416 = vpop.f32.mrb[0].mxu0
    %v417 = vadd.f32 0.0, %v416
    %v418 = vpop.f32.mrb[0].mxu0
    %v419 = vpop.f32.mrb[0].mxu0
    %420 = vdwg.mxu0
    %v453 = vunpack.c.l.b16 %v114
    %v454 = vunpack.c.h.b16 %v114
    %v455 = vunpack.c.l.b16 %v115
    %v456 = vunpack.c.h.b16 %v115
    %v457 = vunpack.c.l.b16 %v116
    %v458 = vunpack.c.h.b16 %v116
    %v459 = vunpack.c.l.b16 %v117
    %v460 = vunpack.c.h.b16 %v117
    %v461 = vunpack.c.l.b16 %v118
    %v462 = vunpack.c.h.b16 %v118
    %v463 = vunpack.c.l.b16 %v119
    %v464 = vunpack.c.h.b16 %v119
    %v465 = vunpack.c.l.b16 %v120
    %v466 = vunpack.c.h.b16 %v120
    %v467 = vunpack.c.l.b16 %v121
    %v468 = vunpack.c.h.b16 %v121
    %v469 = vunpack.c.l.b16 %v122
    %v470 = vunpack.c.h.b16 %v122
    %v471 = vunpack.c.l.b16 %v123
    %v472 = vunpack.c.h.b16 %v123
    %v473 = vunpack.c.l.b16 %v124
    %v474 = vunpack.c.h.b16 %v124
    %v475 = vunpack.c.l.b16 %v125
    %v476 = vunpack.c.h.b16 %v125
    %v477 = vunpack.c.l.b16 %v126
    %v478 = vunpack.c.h.b16 %v126
    %v479 = vunpack.c.l.b16 %v127
    %v480 = vunpack.c.h.b16 %v127
    %v481 = vunpack.c.l.b16 %v128
    %v482 = vunpack.c.h.b16 %v128
    %v483 = vunpack.c.l.b16 %v129
    %v484 = vunpack.c.h.b16 %v129
    %v485 = vunpack.c.l.b16 %v130
    %v486 = vunpack.c.h.b16 %v130
    %v487 = vunpack.c.l.b16 %v131
    %v488 = vunpack.c.h.b16 %v131
    %v489 = vunpack.c.l.b16 %v132
    %v490 = vunpack.c.h.b16 %v132
    %v491 = vunpack.c.l.b16 %v133
    %v492 = vunpack.c.h.b16 %v133
    %v493 = vunpack.c.l.b16 %v134
    %v494 = vunpack.c.h.b16 %v134
    %v495 = vunpack.c.l.b16 %v135
    %v496 = vunpack.c.h.b16 %v135
    %v497 = vunpack.c.l.b16 %v136
    %v498 = vunpack.c.h.b16 %v136
    %v499 = vunpack.c.l.b16 %v137
    %v500 = vunpack.c.h.b16 %v137
    %v501 = vunpack.c.l.b16 %v138
    %v502 = vunpack.c.h.b16 %v138
    %v503 = vunpack.c.l.b16 %v139
    %v504 = vunpack.c.h.b16 %v139
    %v505 = vunpack.c.l.b16 %v140
    %v506 = vunpack.c.h.b16 %v140
    %v507 = vunpack.c.l.b16 %v141
    %v508 = vunpack.c.h.b16 %v141
    %v509 = vunpack.c.l.b16 %v142
    %v510 = vunpack.c.h.b16 %v142
    %v511 = vunpack.c.l.b16 %v143
    %v512 = vunpack.c.h.b16 %v143
    %v513 = vunpack.c.l.b16 %v144
    %v514 = vunpack.c.h.b16 %v144
    %v515 = vunpack.c.l.b16 %v145
    %v516 = vunpack.c.h.b16 %v145
    %v517 = vpack.c.b16 %v457, %v453
    %v518 = vpack.c.b16 %v458, %v454
    %v519 = vpack.c.b16 %v459, %v455
    %v520 = vpack.c.b16 %v460, %v456
    %v521 = vpack.c.b16 %v465, %v461
    %v522 = vpack.c.b16 %v466, %v462
    %v523 = vpack.c.b16 %v467, %v463
    %v524 = vpack.c.b16 %v468, %v464
    %v525 = vpack.c.b16 %v473, %v469
    %v526 = vpack.c.b16 %v474, %v470
    %v527 = vpack.c.b16 %v475, %v471
    %v528 = vpack.c.b16 %v476, %v472
    %v529 = vpack.c.b16 %v481, %v477
    %v530 = vpack.c.b16 %v482, %v478
    %v531 = vpack.c.b16 %v483, %v479
    %v532 = vpack.c.b16 %v484, %v480
    %v533 = vpack.c.b16 %v489, %v485
    %v534 = vpack.c.b16 %v490, %v486
    %v535 = vpack.c.b16 %v491, %v487
    %v536 = vpack.c.b16 %v492, %v488
    %v537 = vpack.c.b16 %v497, %v493
    %v538 = vpack.c.b16 %v498, %v494
    %v539 = vpack.c.b16 %v499, %v495
    %v540 = vpack.c.b16 %v500, %v496
    %v541 = vpack.c.b16 %v505, %v501
    %v542 = vpack.c.b16 %v506, %v502
    %v543 = vpack.c.b16 %v507, %v503
    %v544 = vpack.c.b16 %v508, %v504
    %v545 = vpack.c.b16 %v513, %v509
    %v546 = vpack.c.b16 %v514, %v510
    %v547 = vpack.c.b16 %v515, %v511
    %v548 = vpack.c.b16 %v516, %v512
    %581 = vmatprep.subr.bf16.mxu0 %v518
    %582 = vmatpush1.bf16.msra.mxu0 %v517
    %583 = vmatprep.subr.bf16.mxu0 %v522
    %584 = vmatpush1.bf16.msra.mxu0 %v521
    %585 = vmatprep.subr.bf16.mxu0 %v526
    %586 = vmatpush1.bf16.msra.mxu0 %v525
    %587 = vmatprep.subr.bf16.mxu0 %v530
    %588 = vmatpush1.bf16.msra.mxu0 %v529
    %589 = vmatprep.subr.bf16.mxu0 %v534
    %590 = vmatpush1.bf16.msra.mxu0 %v533
    %591 = vmatprep.subr.bf16.mxu0 %v538
    %592 = vmatpush1.bf16.msra.mxu0 %v537
    %593 = vmatprep.subr.bf16.mxu0 %v542
    %594 = vmatpush1.bf16.msra.mxu0 %v541
    %595 = vmatprep.subr.bf16.mxu0 %v546
    %596 = vmatpush1.bf16.msra.mxu0 %v545
    %597 = vmatprep.subr.bf16.mxu0 0
    %598 = vmatpush1.bf16.msra.mxu0 0
    %599 = vmatprep.subr.bf16.mxu0 0
    %600 = vmatpush1.bf16.msra.mxu0 0
    %601 = vmatprep.subr.bf16.mxu0 0
    %602 = vmatpush1.bf16.msra.mxu0 0
    %603 = vmatprep.subr.bf16.mxu0 0
    %604 = vmatpush1.bf16.msra.mxu0 0
    %605 = vmatprep.subr.bf16.mxu0 0
    %606 = vmatpush1.bf16.msra.mxu0 0
    %607 = vmatprep.subr.bf16.mxu0 0
    %608 = vmatpush1.bf16.msra.mxu0 0
    %609 = vmatprep.subr.bf16.mxu0 0
    %610 = vmatpush1.bf16.msra.mxu0 0
    %611 = vmatprep.subr.bf16.mxu0 0
    %612 = vmatpush1.bf16.msra.mxu0 0
    %613 = vmatprep.mubr.bf16.mxu0 0
    %614 = vmatmul.mubr.bf16.gmra.mrb[0].mxu0 %v113
    %v615 = vpop.f32.mrb[0].mxu0
    %v616 = vadd.f32 %v374, %v615
    %v617 = vpop.f32.mrb[0].mxu0
    %v618 = vadd.f32 %v376, %v617
    %v619 = vpop.f32.mrb[0].mxu0
    %v620 = vpop.f32.mrb[0].mxu0
    %621 = vdwg.mxu0
    %622 = vmatprep.subr.bf16.mxu0 %v520
    %623 = vmatpush1.bf16.msra.mxu0 %v519
    %624 = vmatprep.subr.bf16.mxu0 %v524
    %625 = vmatpush1.bf16.msra.mxu0 %v523
    %626 = vmatprep.subr.bf16.mxu0 %v528
    %627 = vmatpush1.bf16.msra.mxu0 %v527
    %628 = vmatprep.subr.bf16.mxu0 %v532
    %629 = vmatpush1.bf16.msra.mxu0 %v531
    %630 = vmatprep.subr.bf16.mxu0 %v536
    %631 = vmatpush1.bf16.msra.mxu0 %v535
    %632 = vmatprep.subr.bf16.mxu0 %v540
    %633 = vmatpush1.bf16.msra.mxu0 %v539
    %634 = vmatprep.subr.bf16.mxu0 %v544
    %635 = vmatpush1.bf16.msra.mxu0 %v543
    %636 = vmatprep.subr.bf16.mxu0 %v548
    %637 = vmatpush1.bf16.msra.mxu0 %v547
    %638 = vmatprep.subr.bf16.mxu0 0
    %639 = vmatpush1.bf16.msra.mxu0 0
    %640 = vmatprep.subr.bf16.mxu0 0
    %641 = vmatpush1.bf16.msra.mxu0 0
    %642 = vmatprep.subr.bf16.mxu0 0
    %643 = vmatpush1.bf16.msra.mxu0 0
    %644 = vmatprep.subr.bf16.mxu0 0
    %645 = vmatpush1.bf16.msra.mxu0 0
    %646 = vmatprep.subr.bf16.mxu0 0
    %647 = vmatpush1.bf16.msra.mxu0 0
    %648 = vmatprep.subr.bf16.mxu0 0
    %649 = vmatpush1.bf16.msra.mxu0 0
    %650 = vmatprep.subr.bf16.mxu0 0
    %651 = vmatpush1.bf16.msra.mxu0 0
    %652 = vmatprep.subr.bf16.mxu0 0
    %653 = vmatpush1.bf16.msra.mxu0 0
    %654 = vmatprep.mubr.bf16.mxu0 0
    %655 = vmatmul.mubr.bf16.gmra.mrb[0].mxu0 %v113
    %v656 = vpop.f32.mrb[0].mxu0
    %v657 = vadd.f32 %v415, %v656
    %v658 = vpop.f32.mrb[0].mxu0
    %v659 = vadd.f32 %v417, %v658
    %v660 = vpop.f32.mrb[0].mxu0
    %v661 = vpop.f32.mrb[0].mxu0
    %662 = vdwg.mxu0
    %v663 = vld [vmem:[%s3] sm:$0xf]
    %v665 = vlaneseq
    %v666 = vshrl.u32 %v665, 7
    %v667 = vsub.s32 0, %v666
    %v668 = vrot.slane %v663, %v667
    %v669 = vlaneseq
    %v670 = vshrl.u32 %v669, 7
    %v671 = vsub.s32 1, %v670
    %v672 = vrot.slane %v663, %v671
    %v673 = vlaneseq
    %v674 = vshrl.u32 %v673, 7
    %v675 = vsub.s32 2, %v674
    %v676 = vrot.slane %v663, %v675
    %v677 = vlaneseq
    %v678 = vshrl.u32 %v677, 7
    %v679 = vsub.s32 3, %v678
    %v680 = vrot.slane %v663, %v679
    %v685 = vadd.f32 %v616, %v668
    %v686 = vadd.f32 %v618, %v672
    %v687 = vadd.f32 %v657, %v676
    %v688 = vadd.f32 %v659, %v680
    %v689 = vxor.u32 %v685, 2147483648
    %v690 = vmul.f32 %v689, 1.442695
    %v691 = vpow.pop %v690
    %v692 = vadd.f32 %v691, 1.0
    %v693 = vrcp.pop %v692
    %v694 = vmul.f32 1.0, %v693
    %v695 = vxor.u32 %v686, 2147483648
    %v696 = vmul.f32 %v695, 1.442695
    %v697 = vpow.pop %v696
    %v698 = vadd.f32 %v697, 1.0
    %v699 = vrcp.pop %v698
    %v700 = vmul.f32 1.0, %v699
    %v701 = vtanh.pop %v687
    %v702 = vxor.u32 %v688, 2147483648
    %v703 = vmul.f32 %v702, 1.442695
    %v704 = vpow.pop %v703
    %v705 = vadd.f32 %v704, 1.0
    %v706 = vrcp.pop %v705
    %v707 = vmul.f32 1.0, %v706
    %v708 = vmul.f32 %v700, %v110
    %v709 = vmul.f32 %v694, %v701
    %v710 = vadd.f32 %v708, %v709
    %v711 = vtanh.pop %v710
    %v712 = vmul.f32 %v707, %v711
    %v713 = vpack.c.bf16 %v712, %v712
    %v714 = vld [vmem:[#allocation8] sm:$0xff]
    %v715 = vld [vmem:[#allocation8 + $0x8] sm:$0xff]
    %v716 = vld [vmem:[#allocation8 + $0x10] sm:$0xff]
    %v717 = vld [vmem:[#allocation8 + $0x18] sm:$0xff]
    %v718 = vld [vmem:[#allocation8 + $0x20] sm:$0xff]
    %v719 = vld [vmem:[#allocation8 + $0x28] sm:$0xff]
    %v720 = vld [vmem:[#allocation8 + $0x30] sm:$0xff]
    %v721 = vld [vmem:[#allocation8 + $0x38] sm:$0xff]
    %v722 = vld [vmem:[#allocation8 + $0x40] sm:$0xff]
    %v723 = vld [vmem:[#allocation8 + $0x48] sm:$0xff]
    %v724 = vld [vmem:[#allocation8 + $0x50] sm:$0xff]
    %v725 = vld [vmem:[#allocation8 + $0x58] sm:$0xff]
    %v726 = vld [vmem:[#allocation8 + $0x60] sm:$0xff]
    %v727 = vld [vmem:[#allocation8 + $0x68] sm:$0xff]
    %v728 = vld [vmem:[#allocation8 + $0x70] sm:$0xff]
    %v729 = vld [vmem:[#allocation8 + $0x78] sm:$0xff]
    %v730 = vld [vmem:[#allocation8 + $0x80] sm:$0xff]
    %v731 = vld [vmem:[#allocation8 + $0x88] sm:$0xff]
    %v732 = vld [vmem:[#allocation8 + $0x90] sm:$0xff]
    %v733 = vld [vmem:[#allocation8 + $0x98] sm:$0xff]
    %v734 = vld [vmem:[#allocation8 + $0xa0] sm:$0xff]
    %v735 = vld [vmem:[#allocation8 + $0xa8] sm:$0xff]
    %v736 = vld [vmem:[#allocation8 + $0xb0] sm:$0xff]
    %v737 = vld [vmem:[#allocation8 + $0xb8] sm:$0xff]
    %v738 = vld [vmem:[#allocation8 + $0xc0] sm:$0xff]
    %v739 = vld [vmem:[#allocation8 + $0xc8] sm:$0xff]
    %v740 = vld [vmem:[#allocation8 + $0xd0] sm:$0xff]
    %v741 = vld [vmem:[#allocation8 + $0xd8] sm:$0xff]
    %v742 = vld [vmem:[#allocation8 + $0xe0] sm:$0xff]
    %v743 = vld [vmem:[#allocation8 + $0xe8] sm:$0xff]
    %v744 = vld [vmem:[#allocation8 + $0xf0] sm:$0xff]
    %v745 = vld [vmem:[#allocation8 + $0xf8] sm:$0xff]
    %v746 = vpack.c.bf16 %v109, %v109
    %v747 = vld [vmem:[#allocation10] sm:$0xff]
    %v748 = vld [vmem:[#allocation10 + $0x8] sm:$0xff]
    %v749 = vld [vmem:[#allocation10 + $0x10] sm:$0xff]
    %v750 = vld [vmem:[#allocation10 + $0x18] sm:$0xff]
    %v751 = vld [vmem:[#allocation10 + $0x20] sm:$0xff]
    %v752 = vld [vmem:[#allocation10 + $0x28] sm:$0xff]
    %v753 = vld [vmem:[#allocation10 + $0x30] sm:$0xff]
    %v754 = vld [vmem:[#allocation10 + $0x38] sm:$0xff]
    %v755 = vld [vmem:[#allocation10 + $0x40] sm:$0xff]
    %v756 = vld [vmem:[#allocation10 + $0x48] sm:$0xff]
    %v757 = vld [vmem:[#allocation10 + $0x50] sm:$0xff]
    %v758 = vld [vmem:[#allocation10 + $0x58] sm:$0xff]
    %v759 = vld [vmem:[#allocation10 + $0x60] sm:$0xff]
    %v760 = vld [vmem:[#allocation10 + $0x68] sm:$0xff]
    %v761 = vld [vmem:[#allocation10 + $0x70] sm:$0xff]
    %v762 = vld [vmem:[#allocation10 + $0x78] sm:$0xff]
    %v763 = vld [vmem:[#allocation10 + $0x80] sm:$0xff]
    %v764 = vld [vmem:[#allocation10 + $0x88] sm:$0xff]
    %v765 = vld [vmem:[#allocation10 + $0x90] sm:$0xff]
    %v766 = vld [vmem:[#allocation10 + $0x98] sm:$0xff]
    %v767 = vld [vmem:[#allocation10 + $0xa0] sm:$0xff]
    %v768 = vld [vmem:[#allocation10 + $0xa8] sm:$0xff]
    %v769 = vld [vmem:[#allocation10 + $0xb0] sm:$0xff]
    %v770 = vld [vmem:[#allocation10 + $0xb8] sm:$0xff]
    %v771 = vld [vmem:[#allocation10 + $0xc0] sm:$0xff]
    %v772 = vld [vmem:[#allocation10 + $0xc8] sm:$0xff]
    %v773 = vld [vmem:[#allocation10 + $0xd0] sm:$0xff]
    %v774 = vld [vmem:[#allocation10 + $0xd8] sm:$0xff]
    %v775 = vld [vmem:[#allocation10 + $0xe0] sm:$0xff]
    %v776 = vld [vmem:[#allocation10 + $0xe8] sm:$0xff]
    %v777 = vld [vmem:[#allocation10 + $0xf0] sm:$0xff]
    %v778 = vld [vmem:[#allocation10 + $0xf8] sm:$0xff]
    %v811 = vunpack.c.l.b16 %v747
    %v812 = vunpack.c.h.b16 %v747
    %v813 = vunpack.c.l.b16 %v748
    %v814 = vunpack.c.h.b16 %v748
    %v815 = vunpack.c.l.b16 %v749
    %v816 = vunpack.c.h.b16 %v749
    %v817 = vunpack.c.l.b16 %v750
    %v818 = vunpack.c.h.b16 %v750
    %v819 = vunpack.c.l.b16 %v751
    %v820 = vunpack.c.h.b16 %v751
    %v821 = vunpack.c.l.b16 %v752
    %v822 = vunpack.c.h.b16 %v752
    %v823 = vunpack.c.l.b16 %v753
    %v824 = vunpack.c.h.b16 %v753
    %v825 = vunpack.c.l.b16 %v754
    %v826 = vunpack.c.h.b16 %v754
    %v827 = vunpack.c.l.b16 %v755
    %v828 = vunpack.c.h.b16 %v755
    %v829 = vunpack.c.l.b16 %v756
    %v830 = vunpack.c.h.b16 %v756
    %v831 = vunpack.c.l.b16 %v757
    %v832 = vunpack.c.h.b16 %v757
    %v833 = vunpack.c.l.b16 %v758
    %v834 = vunpack.c.h.b16 %v758
    %v835 = vunpack.c.l.b16 %v759
    %v836 = vunpack.c.h.b16 %v759
    %v837 = vunpack.c.l.b16 %v760
    %v838 = vunpack.c.h.b16 %v760
    %v839 = vunpack.c.l.b16 %v761
    %v840 = vunpack.c.h.b16 %v761
    %v841 = vunpack.c.l.b16 %v762
    %v842 = vunpack.c.h.b16 %v762
    %v843 = vunpack.c.l.b16 %v763
    %v844 = vunpack.c.h.b16 %v763
    %v845 = vunpack.c.l.b16 %v764
    %v846 = vunpack.c.h.b16 %v764
    %v847 = vunpack.c.l.b16 %v765
    %v848 = vunpack.c.h.b16 %v765
    %v849 = vunpack.c.l.b16 %v766
    %v850 = vunpack.c.h.b16 %v766
    %v851 = vunpack.c.l.b16 %v767
    %v852 = vunpack.c.h.b16 %v767
    %v853 = vunpack.c.l.b16 %v768
    %v854 = vunpack.c.h.b16 %v768
    %v855 = vunpack.c.l.b16 %v769
    %v856 = vunpack.c.h.b16 %v769
    %v857 = vunpack.c.l.b16 %v770
    %v858 = vunpack.c.h.b16 %v770
    %v859 = vunpack.c.l.b16 %v771
    %v860 = vunpack.c.h.b16 %v771
    %v861 = vunpack.c.l.b16 %v772
    %v862 = vunpack.c.h.b16 %v772
    %v863 = vunpack.c.l.b16 %v773
    %v864 = vunpack.c.h.b16 %v773
    %v865 = vunpack.c.l.b16 %v774
    %v866 = vunpack.c.h.b16 %v774
    %v867 = vunpack.c.l.b16 %v775
    %v868 = vunpack.c.h.b16 %v775
    %v869 = vunpack.c.l.b16 %v776
    %v870 = vunpack.c.h.b16 %v776
    %v871 = vunpack.c.l.b16 %v777
    %v872 = vunpack.c.h.b16 %v777
    %v873 = vunpack.c.l.b16 %v778
    %v874 = vunpack.c.h.b16 %v778
    %v875 = vpack.c.b16 %v815, %v811
    %v876 = vpack.c.b16 %v816, %v812
    %v877 = vpack.c.b16 %v817, %v813
    %v878 = vpack.c.b16 %v818, %v814
    %v879 = vpack.c.b16 %v823, %v819
    %v880 = vpack.c.b16 %v824, %v820
    %v881 = vpack.c.b16 %v825, %v821
    %v882 = vpack.c.b16 %v826, %v822
    %v883 = vpack.c.b16 %v831, %v827
    %v884 = vpack.c.b16 %v832, %v828
    %v885 = vpack.c.b16 %v833, %v829
    %v886 = vpack.c.b16 %v834, %v830
    %v887 = vpack.c.b16 %v839, %v835
    %v888 = vpack.c.b16 %v840, %v836
    %v889 = vpack.c.b16 %v841, %v837
    %v890 = vpack.c.b16 %v842, %v838
    %v891 = vpack.c.b16 %v847, %v843
    %v892 = vpack.c.b16 %v848, %v844
    %v893 = vpack.c.b16 %v849, %v845
    %v894 = vpack.c.b16 %v850, %v846
    %v895 = vpack.c.b16 %v855, %v851
    %v896 = vpack.c.b16 %v856, %v852
    %v897 = vpack.c.b16 %v857, %v853
    %v898 = vpack.c.b16 %v858, %v854
    %v899 = vpack.c.b16 %v863, %v859
    %v900 = vpack.c.b16 %v864, %v860
    %v901 = vpack.c.b16 %v865, %v861
    %v902 = vpack.c.b16 %v866, %v862
    %v903 = vpack.c.b16 %v871, %v867
    %v904 = vpack.c.b16 %v872, %v868
    %v905 = vpack.c.b16 %v873, %v869
    %v906 = vpack.c.b16 %v874, %v870
    %939 = vmatprep.subr.bf16.mxu0 %v876
    %940 = vmatpush1.bf16.msra.mxu0 %v875
    %941 = vmatprep.subr.bf16.mxu0 %v880
    %942 = vmatpush1.bf16.msra.mxu0 %v879
    %943 = vmatprep.subr.bf16.mxu0 %v884
    %944 = vmatpush1.bf16.msra.mxu0 %v883
    %945 = vmatprep.subr.bf16.mxu0 %v888
    %946 = vmatpush1.bf16.msra.mxu0 %v887
    %947 = vmatprep.subr.bf16.mxu0 %v892
    %948 = vmatpush1.bf16.msra.mxu0 %v891
    %949 = vmatprep.subr.bf16.mxu0 %v896
    %950 = vmatpush1.bf16.msra.mxu0 %v895
    %951 = vmatprep.subr.bf16.mxu0 %v900
    %952 = vmatpush1.bf16.msra.mxu0 %v899
    %953 = vmatprep.subr.bf16.mxu0 %v904
    %954 = vmatpush1.bf16.msra.mxu0 %v903
    %955 = vmatprep.subr.bf16.mxu0 0
    %956 = vmatpush1.bf16.msra.mxu0 0
    %957 = vmatprep.subr.bf16.mxu0 0
    %958 = vmatpush1.bf16.msra.mxu0 0
    %959 = vmatprep.subr.bf16.mxu0 0
    %960 = vmatpush1.bf16.msra.mxu0 0
    %961 = vmatprep.subr.bf16.mxu0 0
    %962 = vmatpush1.bf16.msra.mxu0 0
    %963 = vmatprep.subr.bf16.mxu0 0
    %964 = vmatpush1.bf16.msra.mxu0 0
    %965 = vmatprep.subr.bf16.mxu0 0
    %966 = vmatpush1.bf16.msra.mxu0 0
    %967 = vmatprep.subr.bf16.mxu0 0
    %968 = vmatpush1.bf16.msra.mxu0 0
    %969 = vmatprep.subr.bf16.mxu0 0
    %970 = vmatpush1.bf16.msra.mxu0 0
    %971 = vmatprep.mubr.bf16.mxu0 0
    %972 = vmatmul.mubr.bf16.gmra.mrb[0].mxu0 %v746
    %v973 = vpop.f32.mrb[0].mxu0
    %v974 = vadd.f32 0.0, %v973
    %v975 = vpop.f32.mrb[0].mxu0
    %v976 = vadd.f32 0.0, %v975
    %v977 = vpop.f32.mrb[0].mxu0
    %v978 = vpop.f32.mrb[0].mxu0
    %979 = vdwg.mxu0
    %980 = vmatprep.subr.bf16.mxu0 %v878
    %981 = vmatpush1.bf16.msra.mxu0 %v877
    %982 = vmatprep.subr.bf16.mxu0 %v882
    %983 = vmatpush1.bf16.msra.mxu0 %v881
    %984 = vmatprep.subr.bf16.mxu0 %v886
    %985 = vmatpush1.bf16.msra.mxu0 %v885
    %986 = vmatprep.subr.bf16.mxu0 %v890
    %987 = vmatpush1.bf16.msra.mxu0 %v889
    %988 = vmatprep.subr.bf16.mxu0 %v894
    %989 = vmatpush1.bf16.msra.mxu0 %v893
    %990 = vmatprep.subr.bf16.mxu0 %v898
    %991 = vmatpush1.bf16.msra.mxu0 %v897
    %992 = vmatprep.subr.bf16.mxu0 %v902
    %993 = vmatpush1.bf16.msra.mxu0 %v901
    %994 = vmatprep.subr.bf16.mxu0 %v906
    %995 = vmatpush1.bf16.msra.mxu0 %v905
    %996 = vmatprep.subr.bf16.mxu0 0
    %997 = vmatpush1.bf16.msra.mxu0 0
    %998 = vmatprep.subr.bf16.mxu0 0
    %999 = vmatpush1.bf16.msra.mxu0 0
    %1000 = vmatprep.subr.bf16.mxu0 0
    %1001 = vmatpush1.bf16.msra.mxu0 0
    %1002 = vmatprep.subr.bf16.mxu0 0
    %1003 = vmatpush1.bf16.msra.mxu0 0
    %1004 = vmatprep.subr.bf16.mxu0 0
    %1005 = vmatpush1.bf16.msra.mxu0 0
    %1006 = vmatprep.subr.bf16.mxu0 0
    %1007 = vmatpush1.bf16.msra.mxu0 0
    %1008 = vmatprep.subr.bf16.mxu0 0
    %1009 = vmatpush1.bf16.msra.mxu0 0
    %1010 = vmatprep.subr.bf16.mxu0 0
    %1011 = vmatpush1.bf16.msra.mxu0 0
    %1012 = vmatprep.mubr.bf16.mxu0 0
    %1013 = vmatmul.mubr.bf16.gmra.mrb[0].mxu0 %v746
    %v1014 = vpop.f32.mrb[0].mxu0
    %v1015 = vadd.f32 0.0, %v1014
    %v1016 = vpop.f32.mrb[0].mxu0
    %v1017 = vadd.f32 0.0, %v1016
    %v1018 = vpop.f32.mrb[0].mxu0
    %v1019 = vpop.f32.mrb[0].mxu0
    %1020 = vdwg.mxu0
    %v1053 = vunpack.c.l.b16 %v714
    %v1054 = vunpack.c.h.b16 %v714
    %v1055 = vunpack.c.l.b16 %v715
    %v1056 = vunpack.c.h.b16 %v715
    %v1057 = vunpack.c.l.b16 %v716
    %v1058 = vunpack.c.h.b16 %v716
    %v1059 = vunpack.c.l.b16 %v717
    %v1060 = vunpack.c.h.b16 %v717
    %v1061 = vunpack.c.l.b16 %v718
    %v1062 = vunpack.c.h.b16 %v718
    %v1063 = vunpack.c.l.b16 %v719
    %v1064 = vunpack.c.h.b16 %v719
    %v1065 = vunpack.c.l.b16 %v720
    %v1066 = vunpack.c.h.b16 %v720
    %v1067 = vunpack.c.l.b16 %v721
    %v1068 = vunpack.c.h.b16 %v721
    %v1069 = vunpack.c.l.b16 %v722
    %v1070 = vunpack.c.h.b16 %v722
    %v1071 = vunpack.c.l.b16 %v723
    %v1072 = vunpack.c.h.b16 %v723
    %v1073 = vunpack.c.l.b16 %v724
    %v1074 = vunpack.c.h.b16 %v724
    %v1075 = vunpack.c.l.b16 %v725
    %v1076 = vunpack.c.h.b16 %v725
    %v1077 = vunpack.c.l.b16 %v726
    %v1078 = vunpack.c.h.b16 %v726
    %v1079 = vunpack.c.l.b16 %v727
    %v1080 = vunpack.c.h.b16 %v727
    %v1081 = vunpack.c.l.b16 %v728
    %v1082 = vunpack.c.h.b16 %v728
    %v1083 = vunpack.c.l.b16 %v729
    %v1084 = vunpack.c.h.b16 %v729
    %v1085 = vunpack.c.l.b16 %v730
    %v1086 = vunpack.c.h.b16 %v730
    %v1087 = vunpack.c.l.b16 %v731
    %v1088 = vunpack.c.h.b16 %v731
    %v1089 = vunpack.c.l.b16 %v732
    %v1090 = vunpack.c.h.b16 %v732
    %v1091 = vunpack.c.l.b16 %v733
    %v1092 = vunpack.c.h.b16 %v733
    %v1093 = vunpack.c.l.b16 %v734
    %v1094 = vunpack.c.h.b16 %v734
    %v1095 = vunpack.c.l.b16 %v735
    %v1096 = vunpack.c.h.b16 %v735
    %v1097 = vunpack.c.l.b16 %v736
    %v1098 = vunpack.c.h.b16 %v736
    %v1099 = vunpack.c.l.b16 %v737
    %v1100 = vunpack.c.h.b16 %v737
    %v1101 = vunpack.c.l.b16 %v738
    %v1102 = vunpack.c.h.b16 %v738
    %v1103 = vunpack.c.l.b16 %v739
    %v1104 = vunpack.c.h.b16 %v739
    %v1105 = vunpack.c.l.b16 %v740
    %v1106 = vunpack.c.h.b16 %v740
    %v1107 = vunpack.c.l.b16 %v741
    %v1108 = vunpack.c.h.b16 %v741
    %v1109 = vunpack.c.l.b16 %v742
    %v1110 = vunpack.c.h.b16 %v742
    %v1111 = vunpack.c.l.b16 %v743
    %v1112 = vunpack.c.h.b16 %v743
    %v1113 = vunpack.c.l.b16 %v744
    %v1114 = vunpack.c.h.b16 %v744
    %v1115 = vunpack.c.l.b16 %v745
    %v1116 = vunpack.c.h.b16 %v745
    %v1117 = vpack.c.b16 %v1057, %v1053
    %v1118 = vpack.c.b16 %v1058, %v1054
    %v1119 = vpack.c.b16 %v1059, %v1055
    %v1120 = vpack.c.b16 %v1060, %v1056
    %v1121 = vpack.c.b16 %v1065, %v1061
    %v1122 = vpack.c.b16 %v1066, %v1062
    %v1123 = vpack.c.b16 %v1067, %v1063
    %v1124 = vpack.c.b16 %v1068, %v1064
    %v1125 = vpack.c.b16 %v1073, %v1069
    %v1126 = vpack.c.b16 %v1074, %v1070
    %v1127 = vpack.c.b16 %v1075, %v1071
    %v1128 = vpack.c.b16 %v1076, %v1072
    %v1129 = vpack.c.b16 %v1081, %v1077
    %v1130 = vpack.c.b16 %v1082, %v1078
    %v1131 = vpack.c.b16 %v1083, %v1079
    %v1132 = vpack.c.b16 %v1084, %v1080
    %v1133 = vpack.c.b16 %v1089, %v1085
    %v1134 = vpack.c.b16 %v1090, %v1086
    %v1135 = vpack.c.b16 %v1091, %v1087
    %v1136 = vpack.c.b16 %v1092, %v1088
    %v1137 = vpack.c.b16 %v1097, %v1093
    %v1138 = vpack.c.b16 %v1098, %v1094
    %v1139 = vpack.c.b16 %v1099, %v1095
    %v1140 = vpack.c.b16 %v1100, %v1096
    %v1141 = vpack.c.b16 %v1105, %v1101
    %v1142 = vpack.c.b16 %v1106, %v1102
    %v1143 = vpack.c.b16 %v1107, %v1103
    %v1144 = vpack.c.b16 %v1108, %v1104
    %v1145 = vpack.c.b16 %v1113, %v1109
    %v1146 = vpack.c.b16 %v1114, %v1110
    %v1147 = vpack.c.b16 %v1115, %v1111
    %v1148 = vpack.c.b16 %v1116, %v1112
    %1181 = vmatprep.subr.bf16.mxu0 %v1118
    %1182 = vmatpush1.bf16.msra.mxu0 %v1117
    %1183 = vmatprep.subr.bf16.mxu0 %v1122
    %1184 = vmatpush1.bf16.msra.mxu0 %v1121
    %1185 = vmatprep.subr.bf16.mxu0 %v1126
    %1186 = vmatpush1.bf16.msra.mxu0 %v1125
    %1187 = vmatprep.subr.bf16.mxu0 %v1130
    %1188 = vmatpush1.bf16.msra.mxu0 %v1129
    %1189 = vmatprep.subr.bf16.mxu0 %v1134
    %1190 = vmatpush1.bf16.msra.mxu0 %v1133
    %1191 = vmatprep.subr.bf16.mxu0 %v1138
    %1192 = vmatpush1.bf16.msra.mxu0 %v1137
    %1193 = vmatprep.subr.bf16.mxu0 %v1142
    %1194 = vmatpush1.bf16.msra.mxu0 %v1141
    %1195 = vmatprep.subr.bf16.mxu0 %v1146
    %1196 = vmatpush1.bf16.msra.mxu0 %v1145
    %1197 = vmatprep.subr.bf16.mxu0 0
    %1198 = vmatpush1.bf16.msra.mxu0 0
    %1199 = vmatprep.subr.bf16.mxu0 0
    %1200 = vmatpush1.bf16.msra.mxu0 0
    %1201 = vmatprep.subr.bf16.mxu0 0
    %1202 = vmatpush1.bf16.msra.mxu0 0
    %1203 = vmatprep.subr.bf16.mxu0 0
    %1204 = vmatpush1.bf16.msra.mxu0 0
    %1205 = vmatprep.subr.bf16.mxu0 0
    %1206 = vmatpush1.bf16.msra.mxu0 0
    %1207 = vmatprep.subr.bf16.mxu0 0
    %1208 = vmatpush1.bf16.msra.mxu0 0
    %1209 = vmatprep.subr.bf16.mxu0 0
    %1210 = vmatpush1.bf16.msra.mxu0 0
    %1211 = vmatprep.subr.bf16.mxu0 0
    %1212 = vmatpush1.bf16.msra.mxu0 0
    %1213 = vmatprep.mubr.bf16.mxu0 0
    %1214 = vmatmul.mubr.bf16.gmra.mrb[0].mxu0 %v713
    %v1215 = vpop.f32.mrb[0].mxu0
    %v1216 = vadd.f32 %v974, %v1215
    %v1217 = vpop.f32.mrb[0].mxu0
    %v1218 = vadd.f32 %v976, %v1217
    %v1219 = vpop.f32.mrb[0].mxu0
    %v1220 = vpop.f32.mrb[0].mxu0
    %1221 = vdwg.mxu0
    %1222 = vmatprep.subr.bf16.mxu0 %v1120
    %1223 = vmatpush1.bf16.msra.mxu0 %v1119
    %1224 = vmatprep.subr.bf16.mxu0 %v1124
    %1225 = vmatpush1.bf16.msra.mxu0 %v1123
    %1226 = vmatprep.subr.bf16.mxu0 %v1128
    %1227 = vmatpush1.bf16.msra.mxu0 %v1127
    %1228 = vmatprep.subr.bf16.mxu0 %v1132
    %1229 = vmatpush1.bf16.msra.mxu0 %v1131
    %1230 = vmatprep.subr.bf16.mxu0 %v1136
    %1231 = vmatpush1.bf16.msra.mxu0 %v1135
    %1232 = vmatprep.subr.bf16.mxu0 %v1140
    %1233 = vmatpush1.bf16.msra.mxu0 %v1139
    %1234 = vmatprep.subr.bf16.mxu0 %v1144
    %1235 = vmatpush1.bf16.msra.mxu0 %v1143
    %1236 = vmatprep.subr.bf16.mxu0 %v1148
    %1237 = vmatpush1.bf16.msra.mxu0 %v1147
    %1238 = vmatprep.subr.bf16.mxu0 0
    %1239 = vmatpush1.bf16.msra.mxu0 0
    %1240 = vmatprep.subr.bf16.mxu0 0
    %1241 = vmatpush1.bf16.msra.mxu0 0
    %1242 = vmatprep.subr.bf16.mxu0 0
    %1243 = vmatpush1.bf16.msra.mxu0 0
    %1244 = vmatprep.subr.bf16.mxu0 0
    %1245 = vmatpush1.bf16.msra.mxu0 0
    %1246 = vmatprep.subr.bf16.mxu0 0
    %1247 = vmatpush1.bf16.msra.mxu0 0
    %1248 = vmatprep.subr.bf16.mxu0 0
    %1249 = vmatpush1.bf16.msra.mxu0 0
    %1250 = vmatprep.subr.bf16.mxu0 0
    %1251 = vmatpush1.bf16.msra.mxu0 0
    %1252 = vmatprep.subr.bf16.mxu0 0
    %1253 = vmatpush1.bf16.msra.mxu0 0
    %1254 = vmatprep.mubr.bf16.mxu0 0
    %1255 = vmatmul.mubr.bf16.gmra.mrb[0].mxu0 %v713
    %v1256 = vpop.f32.mrb[0].mxu0
    %v1257 = vadd.f32 %v1015, %v1256
    %v1258 = vpop.f32.mrb[0].mxu0
    %v1259 = vadd.f32 %v1017, %v1258
    %v1260 = vpop.f32.mrb[0].mxu0
    %v1261 = vpop.f32.mrb[0].mxu0
    %1262 = vdwg.mxu0
    %v1263 = vld [vmem:[%s6] sm:$0xf]
    %v1265 = vlaneseq
    %v1266 = vshrl.u32 %v1265, 7
    %v1267 = vsub.s32 0, %v1266
    %v1268 = vrot.slane %v1263, %v1267
    %v1269 = vlaneseq
    %v1270 = vshrl.u32 %v1269, 7
    %v1271 = vsub.s32 1, %v1270
    %v1272 = vrot.slane %v1263, %v1271
    %v1273 = vlaneseq
    %v1274 = vshrl.u32 %v1273, 7
    %v1275 = vsub.s32 2, %v1274
    %v1276 = vrot.slane %v1263, %v1275
    %v1277 = vlaneseq
    %v1278 = vshrl.u32 %v1277, 7
    %v1279 = vsub.s32 3, %v1278
    %v1280 = vrot.slane %v1263, %v1279
    %v1285 = vadd.f32 %v1216, %v1268
    %v1286 = vadd.f32 %v1218, %v1272
    %v1287 = vadd.f32 %v1257, %v1276
    %v1288 = vadd.f32 %v1259, %v1280
    %v1289 = vxor.u32 %v1285, 2147483648
    %v1290 = vmul.f32 %v1289, 1.442695
    %v1291 = vpow.pop %v1290
    %v1292 = vadd.f32 %v1291, 1.0
    %v1293 = vrcp.pop %v1292
    %v1294 = vmul.f32 1.0, %v1293
    %v1295 = vxor.u32 %v1286, 2147483648
    %v1296 = vmul.f32 %v1295, 1.442695
    %v1297 = vpow.pop %v1296
    %v1298 = vadd.f32 %v1297, 1.0
    %v1299 = vrcp.pop %v1298
    %v1300 = vmul.f32 1.0, %v1299
    %v1301 = vtanh.pop %v1287
    %v1302 = vxor.u32 %v1288, 2147483648
    %v1303 = vmul.f32 %v1302, 1.442695
    %v1304 = vpow.pop %v1303
    %v1305 = vadd.f32 %v1304, 1.0
    %v1306 = vrcp.pop %v1305
    %v1307 = vmul.f32 1.0, %v1306
    %v1308 = vmul.f32 %v1300, %v112
    %v1309 = vmul.f32 %v1294, %v1301
    %v1310 = vadd.f32 %v1308, %v1309
    %v1311 = vtanh.pop %v1310
    %v1312 = vmul.f32 %v1307, %v1311
    %s1313 = scalar_lea.vmem [#allocation2], 4
    %v1314 = vld [vmem:[%s1313] sm:$0xf]
    %1315 = vmatprep.subr.bf16.mxu0 %v276
    %1316 = vmatpush1.bf16.msra.mxu0 %v275
    %1317 = vmatprep.subr.bf16.mxu0 %v280
    %1318 = vmatpush1.bf16.msra.mxu0 %v279
    %1319 = vmatprep.subr.bf16.mxu0 %v284
    %1320 = vmatpush1.bf16.msra.mxu0 %v283
    %1321 = vmatprep.subr.bf16.mxu0 %v288
    %1322 = vmatpush1.bf16.msra.mxu0 %v287
    %1323 = vmatprep.subr.bf16.mxu0 %v292
    %1324 = vmatpush1.bf16.msra.mxu0 %v291
    %1325 = vmatprep.subr.bf16.mxu0 %v296
    %1326 = vmatpush1.bf16.msra.mxu0 %v295
    %1327 = vmatprep.subr.bf16.mxu0 %v300
    %1328 = vmatpush1.bf16.msra.mxu0 %v299
    %1329 = vmatprep.subr.bf16.mxu0 %v304
    %1330 = vmatpush1.bf16.msra.mxu0 %v303
    %1331 = vmatprep.subr.bf16.mxu0 0
    %1332 = vmatpush1.bf16.msra.mxu0 0
    %1333 = vmatprep.subr.bf16.mxu0 0
    %1334 = vmatpush1.bf16.msra.mxu0 0
    %1335 = vmatprep.subr.bf16.mxu0 0
    %1336 = vmatpush1.bf16.msra.mxu0 0
    %1337 = vmatprep.subr.bf16.mxu0 0
    %1338 = vmatpush1.bf16.msra.mxu0 0
    %1339 = vmatprep.subr.bf16.mxu0 0
    %1340 = vmatpush1.bf16.msra.mxu0 0
    %1341 = vmatprep.subr.bf16.mxu0 0
    %1342 = vmatpush1.bf16.msra.mxu0 0
    %1343 = vmatprep.subr.bf16.mxu0 0
    %1344 = vmatpush1.bf16.msra.mxu0 0
    %1345 = vmatprep.subr.bf16.mxu0 0
    %1346 = vmatpush1.bf16.msra.mxu0 0
    %1347 = vmatprep.mubr.bf16.mxu0 0
    %1348 = vmatmul.mubr.bf16.gmra.mrb[0].mxu0 %v713
    %v1349 = vpop.f32.mrb[0].mxu0
    %v1350 = vadd.f32 0.0, %v1349
    %v1351 = vpop.f32.mrb[0].mxu0
    %v1352 = vadd.f32 0.0, %v1351
    %v1353 = vpop.f32.mrb[0].mxu0
    %v1354 = vpop.f32.mrb[0].mxu0
    %1355 = vdwg.mxu0
    %1356 = vmatprep.subr.bf16.mxu0 %v278
    %1357 = vmatpush1.bf16.msra.mxu0 %v277
    %1358 = vmatprep.subr.bf16.mxu0 %v282
    %1359 = vmatpush1.bf16.msra.mxu0 %v281
    %1360 = vmatprep.subr.bf16.mxu0 %v286
    %1361 = vmatpush1.bf16.msra.mxu0 %v285
    %1362 = vmatprep.subr.bf16.mxu0 %v290
    %1363 = vmatpush1.bf16.msra.mxu0 %v289
    %1364 = vmatprep.subr.bf16.mxu0 %v294
    %1365 = vmatpush1.bf16.msra.mxu0 %v293
    %1366 = vmatprep.subr.bf16.mxu0 %v298
    %1367 = vmatpush1.bf16.msra.mxu0 %v297
    %1368 = vmatprep.subr.bf16.mxu0 %v302
    %1369 = vmatpush1.bf16.msra.mxu0 %v301
    %1370 = vmatprep.subr.bf16.mxu0 %v306
    %1371 = vmatpush1.bf16.msra.mxu0 %v305
    %1372 = vmatprep.subr.bf16.mxu0 0
    %1373 = vmatpush1.bf16.msra.mxu0 0
    %1374 = vmatprep.subr.bf16.mxu0 0
    %1375 = vmatpush1.bf16.msra.mxu0 0
    %1376 = vmatprep.subr.bf16.mxu0 0
    %1377 = vmatpush1.bf16.msra.mxu0 0
    %1378 = vmatprep.subr.bf16.mxu0 0
    %1379 = vmatpush1.bf16.msra.mxu0 0
    %1380 = vmatprep.subr.bf16.mxu0 0
    %1381 = vmatpush1.bf16.msra.mxu0 0
    %1382 = vmatprep.subr.bf16.mxu0 0
    %1383 = vmatpush1.bf16.msra.mxu0 0
    %1384 = vmatprep.subr.bf16.mxu0 0
    %1385 = vmatpush1.bf16.msra.mxu0 0
    %1386 = vmatprep.subr.bf16.mxu0 0
    %1387 = vmatpush1.bf16.msra.mxu0 0
    %1388 = vmatprep.mubr.bf16.mxu0 0
    %1389 = vmatmul.mubr.bf16.gmra.mrb[0].mxu0 %v713
    %v1390 = vpop.f32.mrb[0].mxu0
    %v1391 = vadd.f32 0.0, %v1390
    %v1392 = vpop.f32.mrb[0].mxu0
    %v1393 = vadd.f32 0.0, %v1392
    %v1394 = vpop.f32.mrb[0].mxu0
    %v1395 = vpop.f32.mrb[0].mxu0
    %1396 = vdwg.mxu0
    %1397 = vmatprep.subr.bf16.mxu0 %v518
    %1398 = vmatpush1.bf16.msra.mxu0 %v517
    %1399 = vmatprep.subr.bf16.mxu0 %v522
    %1400 = vmatpush1.bf16.msra.mxu0 %v521
    %1401 = vmatprep.subr.bf16.mxu0 %v526
    %1402 = vmatpush1.bf16.msra.mxu0 %v525
    %1403 = vmatprep.subr.bf16.mxu0 %v530
    %1404 = vmatpush1.bf16.msra.mxu0 %v529
    %1405 = vmatprep.subr.bf16.mxu0 %v534
    %1406 = vmatpush1.bf16.msra.mxu0 %v533
    %1407 = vmatprep.subr.bf16.mxu0 %v538
    %1408 = vmatpush1.bf16.msra.mxu0 %v537
    %1409 = vmatprep.subr.bf16.mxu0 %v542
    %1410 = vmatpush1.bf16.msra.mxu0 %v541
    %1411 = vmatprep.subr.bf16.mxu0 %v546
    %1412 = vmatpush1.bf16.msra.mxu0 %v545
    %1413 = vmatprep.subr.bf16.mxu0 0
    %1414 = vmatpush1.bf16.msra.mxu0 0
    %1415 = vmatprep.subr.bf16.mxu0 0
    %1416 = vmatpush1.bf16.msra.mxu0 0
    %1417 = vmatprep.subr.bf16.mxu0 0
    %1418 = vmatpush1.bf16.msra.mxu0 0
    %1419 = vmatprep.subr.bf16.mxu0 0
    %1420 = vmatpush1.bf16.msra.mxu0 0
    %1421 = vmatprep.subr.bf16.mxu0 0
    %1422 = vmatpush1.bf16.msra.mxu0 0
    %1423 = vmatprep.subr.bf16.mxu0 0
    %1424 = vmatpush1.bf16.msra.mxu0 0
    %1425 = vmatprep.subr.bf16.mxu0 0
    %1426 = vmatpush1.bf16.msra.mxu0 0
    %1427 = vmatprep.subr.bf16.mxu0 0
    %1428 = vmatpush1.bf16.msra.mxu0 0
    %1429 = vmatprep.mubr.bf16.mxu0 0
    %1430 = vmatmul.mubr.bf16.gmra.mrb[0].mxu0 %v1314
    %v1431 = vpop.f32.mrb[0].mxu0
    %v1432 = vadd.f32 %v1350, %v1431
    %v1433 = vpop.f32.mrb[0].mxu0
    %v1434 = vadd.f32 %v1352, %v1433
    %v1435 = vpop.f32.mrb[0].mxu0
    %v1436 = vpop.f32.mrb[0].mxu0
    %1437 = vdwg.mxu0
    %1438 = vmatprep.subr.bf16.mxu0 %v520
    %1439 = vmatpush1.bf16.msra.mxu0 %v519
    %1440 = vmatprep.subr.bf16.mxu0 %v524
    %1441 = vmatpush1.bf16.msra.mxu0 %v523
    %1442 = vmatprep.subr.bf16.mxu0 %v528
    %1443 = vmatpush1.bf16.msra.mxu0 %v527
    %1444 = vmatprep.subr.bf16.mxu0 %v532
    %1445 = vmatpush1.bf16.msra.mxu0 %v531
    %1446 = vmatprep.subr.bf16.mxu0 %v536
    %1447 = vmatpush1.bf16.msra.mxu0 %v535
    %1448 = vmatprep.subr.bf16.mxu0 %v540
    %1449 = vmatpush1.bf16.msra.mxu0 %v539
    %1450 = vmatprep.subr.bf16.mxu0 %v544
    %1451 = vmatpush1.bf16.msra.mxu0 %v543
    %1452 = vmatprep.subr.bf16.mxu0 %v548
    %1453 = vmatpush1.bf16.msra.mxu0 %v547
    %1454 = vmatprep.subr.bf16.mxu0 0
    %1455 = vmatpush1.bf16.msra.mxu0 0
    %1456 = vmatprep.subr.bf16.mxu0 0
    %1457 = vmatpush1.bf16.msra.mxu0 0
    %1458 = vmatprep.subr.bf16.mxu0 0
    %1459 = vmatpush1.bf16.msra.mxu0 0
    %1460 = vmatprep.subr.bf16.mxu0 0
    %1461 = vmatpush1.bf16.msra.mxu0 0
    %1462 = vmatprep.subr.bf16.mxu0 0
    %1463 = vmatpush1.bf16.msra.mxu0 0
    %1464 = vmatprep.subr.bf16.mxu0 0
    %1465 = vmatpush1.bf16.msra.mxu0 0
    %1466 = vmatprep.subr.bf16.mxu0 0
    %1467 = vmatpush1.bf16.msra.mxu0 0
    %1468 = vmatprep.subr.bf16.mxu0 0
    %1469 = vmatpush1.bf16.msra.mxu0 0
    %1470 = vmatprep.mubr.bf16.mxu0 0
    %1471 = vmatmul.mubr.bf16.gmra.mrb[0].mxu0 %v1314
    %v1472 = vpop.f32.mrb[0].mxu0
    %v1473 = vadd.f32 %v1391, %v1472
    %v1474 = vpop.f32.mrb[0].mxu0
    %v1475 = vadd.f32 %v1393, %v1474
    %v1476 = vpop.f32.mrb[0].mxu0
    %v1477 = vpop.f32.mrb[0].mxu0
    %1478 = vdwg.mxu0
    %v1479 = vadd.f32 %v1432, %v668
    %v1480 = vadd.f32 %v1434, %v672
    %v1481 = vadd.f32 %v1473, %v676
    %v1482 = vadd.f32 %v1475, %v680
    %v1483 = vxor.u32 %v1479, 2147483648
    %v1484 = vmul.f32 %v1483, 1.442695
    %v1485 = vpow.pop %v1484
    %v1486 = vadd.f32 %v1485, 1.0
    %v1487 = vrcp.pop %v1486
    %v1488 = vmul.f32 1.0, %v1487
    %v1489 = vxor.u32 %v1480, 2147483648
    %v1490 = vmul.f32 %v1489, 1.442695
    %v1491 = vpow.pop %v1490
    %v1492 = vadd.f32 %v1491, 1.0
    %v1493 = vrcp.pop %v1492
    %v1494 = vmul.f32 1.0, %v1493
    %v1495 = vtanh.pop %v1481
    %v1496 = vxor.u32 %v1482, 2147483648
    %v1497 = vmul.f32 %v1496, 1.442695
    %v1498 = vpow.pop %v1497
    %v1499 = vadd.f32 %v1498, 1.0
    %v1500 = vrcp.pop %v1499
    %v1501 = vmul.f32 1.0, %v1500
    %v1502 = vmul.f32 %v1494, %v710
    %v1503 = vmul.f32 %v1488, %v1495
    %v1504 = vadd.f32 %v1502, %v1503
    %v1505 = vtanh.pop %v1504
    %v1506 = vmul.f32 %v1501, %v1505
    %v1507 = vpack.c.bf16 %v1506, %v1506
    %v1508 = vpack.c.bf16 %v1312, %v1312
    %1509 = vmatprep.subr.bf16.mxu0 %v876
    %1510 = vmatpush1.bf16.msra.mxu0 %v875
    %1511 = vmatprep.subr.bf16.mxu0 %v880
    %1512 = vmatpush1.bf16.msra.mxu0 %v879
    %1513 = vmatprep.subr.bf16.mxu0 %v884
    %1514 = vmatpush1.bf16.msra.mxu0 %v883
    %1515 = vmatprep.subr.bf16.mxu0 %v888
    %1516 = vmatpush1.bf16.msra.mxu0 %v887
    %1517 = vmatprep.subr.bf16.mxu0 %v892
    %1518 = vmatpush1.bf16.msra.mxu0 %v891
    %1519 = vmatprep.subr.bf16.mxu0 %v896
    %1520 = vmatpush1.bf16.msra.mxu0 %v895
    %1521 = vmatprep.subr.bf16.mxu0 %v900
    %1522 = vmatpush1.bf16.msra.mxu0 %v899
    %1523 = vmatprep.subr.bf16.mxu0 %v904
    %1524 = vmatpush1.bf16.msra.mxu0 %v903
    %1525 = vmatprep.subr.bf16.mxu0 0
    %1526 = vmatpush1.bf16.msra.mxu0 0
    %1527 = vmatprep.subr.bf16.mxu0 0
    %1528 = vmatpush1.bf16.msra.mxu0 0
    %1529 = vmatprep.subr.bf16.mxu0 0
    %1530 = vmatpush1.bf16.msra.mxu0 0
    %1531 = vmatprep.subr.bf16.mxu0 0
    %1532 = vmatpush1.bf16.msra.mxu0 0
    %1533 = vmatprep.subr.bf16.mxu0 0
    %1534 = vmatpush1.bf16.msra.mxu0 0
    %1535 = vmatprep.subr.bf16.mxu0 0
    %1536 = vmatpush1.bf16.msra.mxu0 0
    %1537 = vmatprep.subr.bf16.mxu0 0
    %1538 = vmatpush1.bf16.msra.mxu0 0
    %1539 = vmatprep.subr.bf16.mxu0 0
    %1540 = vmatpush1.bf16.msra.mxu0 0
    %1541 = vmatprep.mubr.bf16.mxu0 0
    %1542 = vmatmul.mubr.bf16.gmra.mrb[0].mxu0 %v1508
    %v1543 = vpop.f32.mrb[0].mxu0
    %v1544 = vadd.f32 0.0, %v1543
    %v1545 = vpop.f32.mrb[0].mxu0
    %v1546 = vadd.f32 0.0, %v1545
    %v1547 = vpop.f32.mrb[0].mxu0
    %v1548 = vpop.f32.mrb[0].mxu0
    %1549 = vdwg.mxu0
    %1550 = vmatprep.subr.bf16.mxu0 %v878
    %1551 = vmatpush1.bf16.msra.mxu0 %v877
    %1552 = vmatprep.subr.bf16.mxu0 %v882
    %1553 = vmatpush1.bf16.msra.mxu0 %v881
    %1554 = vmatprep.subr.bf16.mxu0 %v886
    %1555 = vmatpush1.bf16.msra.mxu0 %v885
    %1556 = vmatprep.subr.bf16.mxu0 %v890
    %1557 = vmatpush1.bf16.msra.mxu0 %v889
    %1558 = vmatprep.subr.bf16.mxu0 %v894
    %1559 = vmatpush1.bf16.msra.mxu0 %v893
    %1560 = vmatprep.subr.bf16.mxu0 %v898
    %1561 = vmatpush1.bf16.msra.mxu0 %v897
    %1562 = vmatprep.subr.bf16.mxu0 %v902
    %1563 = vmatpush1.bf16.msra.mxu0 %v901
    %1564 = vmatprep.subr.bf16.mxu0 %v906
    %1565 = vmatpush1.bf16.msra.mxu0 %v905
    %1566 = vmatprep.subr.bf16.mxu0 0
    %1567 = vmatpush1.bf16.msra.mxu0 0
    %1568 = vmatprep.subr.bf16.mxu0 0
    %1569 = vmatpush1.bf16.msra.mxu0 0
    %1570 = vmatprep.subr.bf16.mxu0 0
    %1571 = vmatpush1.bf16.msra.mxu0 0
    %1572 = vmatprep.subr.bf16.mxu0 0
    %1573 = vmatpush1.bf16.msra.mxu0 0
    %1574 = vmatprep.subr.bf16.mxu0 0
    %1575 = vmatpush1.bf16.msra.mxu0 0
    %1576 = vmatprep.subr.bf16.mxu0 0
    %1577 = vmatpush1.bf16.msra.mxu0 0
    %1578 = vmatprep.subr.bf16.mxu0 0
    %1579 = vmatpush1.bf16.msra.mxu0 0
    %1580 = vmatprep.subr.bf16.mxu0 0
    %1581 = vmatpush1.bf16.msra.mxu0 0
    %1582 = vmatprep.mubr.bf16.mxu0 0
    %1583 = vmatmul.mubr.bf16.gmra.mrb[0].mxu0 %v1508
    %v1584 = vpop.f32.mrb[0].mxu0
    %v1585 = vadd.f32 0.0, %v1584
    %v1586 = vpop.f32.mrb[0].mxu0
    %v1587 = vadd.f32 0.0, %v1586
    %v1588 = vpop.f32.mrb[0].mxu0
    %v1589 = vpop.f32.mrb[0].mxu0
    %1590 = vdwg.mxu0
    %1591 = vmatprep.subr.bf16.mxu0 %v1118
    %1592 = vmatpush1.bf16.msra.mxu0 %v1117
    %1593 = vmatprep.subr.bf16.mxu0 %v1122
    %1594 = vmatpush1.bf16.msra.mxu0 %v1121
    %1595 = vmatprep.subr.bf16.mxu0 %v1126
    %1596 = vmatpush1.bf16.msra.mxu0 %v1125
    %1597 = vmatprep.subr.bf16.mxu0 %v1130
    %1598 = vmatpush1.bf16.msra.mxu0 %v1129
    %1599 = vmatprep.subr.bf16.mxu0 %v1134
    %1600 = vmatpush1.bf16.msra.mxu0 %v1133
    %1601 = vmatprep.subr.bf16.mxu0 %v1138
    %1602 = vmatpush1.bf16.msra.mxu0 %v1137
    %1603 = vmatprep.subr.bf16.mxu0 %v1142
    %1604 = vmatpush1.bf16.msra.mxu0 %v1141
    %1605 = vmatprep.subr.bf16.mxu0 %v1146
    %1606 = vmatpush1.bf16.msra.mxu0 %v1145
    %1607 = vmatprep.subr.bf16.mxu0 0
    %1608 = vmatpush1.bf16.msra.mxu0 0
    %1609 = vmatprep.subr.bf16.mxu0 0
    %1610 = vmatpush1.bf16.msra.mxu0 0
    %1611 = vmatprep.subr.bf16.mxu0 0
    %1612 = vmatpush1.bf16.msra.mxu0 0
    %1613 = vmatprep.subr.bf16.mxu0 0
    %1614 = vmatpush1.bf16.msra.mxu0 0
    %1615 = vmatprep.subr.bf16.mxu0 0
    %1616 = vmatpush1.bf16.msra.mxu0 0
    %1617 = vmatprep.subr.bf16.mxu0 0
    %1618 = vmatpush1.bf16.msra.mxu0 0
    %1619 = vmatprep.subr.bf16.mxu0 0
    %1620 = vmatpush1.bf16.msra.mxu0 0
    %1621 = vmatprep.subr.bf16.mxu0 0
    %1622 = vmatpush1.bf16.msra.mxu0 0
    %1623 = vmatprep.mubr.bf16.mxu0 0
    %1624 = vmatmul.mubr.bf16.gmra.mrb[0].mxu0 %v1507
    %v1625 = vpop.f32.mrb[0].mxu0
    %v1626 = vadd.f32 %v1544, %v1625
    %v1627 = vpop.f32.mrb[0].mxu0
    %v1628 = vadd.f32 %v1546, %v1627
    %v1629 = vpop.f32.mrb[0].mxu0
    %v1630 = vpop.f32.mrb[0].mxu0
    %1631 = vdwg.mxu0
    %1632 = vmatprep.subr.bf16.mxu0 %v1120
    %1633 = vmatpush1.bf16.msra.mxu0 %v1119
    %1634 = vmatprep.subr.bf16.mxu0 %v1124
    %1635 = vmatpush1.bf16.msra.mxu0 %v1123
    %1636 = vmatprep.subr.bf16.mxu0 %v1128
    %1637 = vmatpush1.bf16.msra.mxu0 %v1127
    %1638 = vmatprep.subr.bf16.mxu0 %v1132
    %1639 = vmatpush1.bf16.msra.mxu0 %v1131
    %1640 = vmatprep.subr.bf16.mxu0 %v1136
    %1641 = vmatpush1.bf16.msra.mxu0 %v1135
    %1642 = vmatprep.subr.bf16.mxu0 %v1140
    %1643 = vmatpush1.bf16.msra.mxu0 %v1139
    %1644 = vmatprep.subr.bf16.mxu0 %v1144
    %1645 = vmatpush1.bf16.msra.mxu0 %v1143
    %1646 = vmatprep.subr.bf16.mxu0 %v1148
    %1647 = vmatpush1.bf16.msra.mxu0 %v1147
    %1648 = vmatprep.subr.bf16.mxu0 0
    %1649 = vmatpush1.bf16.msra.mxu0 0
    %1650 = vmatprep.subr.bf16.mxu0 0
    %1651 = vmatpush1.bf16.msra.mxu0 0
    %1652 = vmatprep.subr.bf16.mxu0 0
    %1653 = vmatpush1.bf16.msra.mxu0 0
    %1654 = vmatprep.subr.bf16.mxu0 0
    %1655 = vmatpush1.bf16.msra.mxu0 0
    %1656 = vmatprep.subr.bf16.mxu0 0
    %1657 = vmatpush1.bf16.msra.mxu0 0
    %1658 = vmatprep.subr.bf16.mxu0 0
    %1659 = vmatpush1.bf16.msra.mxu0 0
    %1660 = vmatprep.subr.bf16.mxu0 0
    %1661 = vmatpush1.bf16.msra.mxu0 0
    %1662 = vmatprep.subr.bf16.mxu0 0
    %1663 = vmatpush1.bf16.msra.mxu0 0
    %1664 = vmatprep.mubr.bf16.mxu0 0
    %1665 = vmatmul.mubr.bf16.gmra.mrb[0].mxu0 %v1507
    %v1666 = vpop.f32.mrb[0].mxu0
    %v1667 = vadd.f32 %v1585, %v1666
    %v1668 = vpop.f32.mrb[0].mxu0
    %v1669 = vadd.f32 %v1587, %v1668
    %v1670 = vpop.f32.mrb[0].mxu0
    %v1671 = vpop.f32.mrb[0].mxu0
    %1672 = vdwg.mxu0
    %v1673 = vadd.f32 %v1626, %v1268
    %v1674 = vadd.f32 %v1628, %v1272
    %v1675 = vadd.f32 %v1667, %v1276
    %v1676 = vadd.f32 %v1669, %v1280
    %v1677 = vxor.u32 %v1673, 2147483648
    %v1678 = vmul.f32 %v1677, 1.442695
    %v1679 = vpow.pop %v1678
    %v1680 = vadd.f32 %v1679, 1.0
    %v1681 = vrcp.pop %v1680
    %v1682 = vmul.f32 1.0, %v1681
    %v1683 = vxor.u32 %v1674, 2147483648
    %v1684 = vmul.f32 %v1683, 1.442695
    %v1685 = vpow.pop %v1684
    %v1686 = vadd.f32 %v1685, 1.0
    %v1687 = vrcp.pop %v1686
    %v1688 = vmul.f32 1.0, %v1687
    %v1689 = vtanh.pop %v1675
    %v1690 = vxor.u32 %v1676, 2147483648
    %v1691 = vmul.f32 %v1690, 1.442695
    %v1692 = vpow.pop %v1691
    %v1693 = vadd.f32 %v1692, 1.0
    %v1694 = vrcp.pop %v1693
    %v1695 = vmul.f32 1.0, %v1694
    %v1696 = vmul.f32 %v1688, %v1310
    %v1697 = vmul.f32 %v1682, %v1689
    %v1698 = vadd.f32 %v1696, %v1697
    %v1699 = vtanh.pop %v1698
    %v1700 = vmul.f32 %v1695, %v1699
    %s1701 = scalar_lea.vmem [#allocation2], 8
    %v1702 = vld [vmem:[%s1701] sm:$0xf]
    %1703 = vmatprep.subr.bf16.mxu0 %v276
    %1704 = vmatpush1.bf16.msra.mxu0 %v275
    %1705 = vmatprep.subr.bf16.mxu0 %v280
    %1706 = vmatpush1.bf16.msra.mxu0 %v279
    %1707 = vmatprep.subr.bf16.mxu0 %v284
    %1708 = vmatpush1.bf16.msra.mxu0 %v283
    %1709 = vmatprep.subr.bf16.mxu0 %v288
    %1710 = vmatpush1.bf16.msra.mxu0 %v287
    %1711 = vmatprep.subr.bf16.mxu0 %v292
    %1712 = vmatpush1.bf16.msra.mxu0 %v291
    %1713 = vmatprep.subr.bf16.mxu0 %v296
    %1714 = vmatpush1.bf16.msra.mxu0 %v295
    %1715 = vmatprep.subr.bf16.mxu0 %v300
    %1716 = vmatpush1.bf16.msra.mxu0 %v299
    %1717 = vmatprep.subr.bf16.mxu0 %v304
    %1718 = vmatpush1.bf16.msra.mxu0 %v303
    %1719 = vmatprep.subr.bf16.mxu0 0
    %1720 = vmatpush1.bf16.msra.mxu0 0
    %1721 = vmatprep.subr.bf16.mxu0 0
    %1722 = vmatpush1.bf16.msra.mxu0 0
    %1723 = vmatprep.subr.bf16.mxu0 0
    %1724 = vmatpush1.bf16.msra.mxu0 0
    %1725 = vmatprep.subr.bf16.mxu0 0
    %1726 = vmatpush1.bf16.msra.mxu0 0
    %1727 = vmatprep.subr.bf16.mxu0 0
    %1728 = vmatpush1.bf16.msra.mxu0 0
    %1729 = vmatprep.subr.bf16.mxu0 0
    %1730 = vmatpush1.bf16.msra.mxu0 0
    %1731 = vmatprep.subr.bf16.mxu0 0
    %1732 = vmatpush1.bf16.msra.mxu0 0
    %1733 = vmatprep.subr.bf16.mxu0 0
    %1734 = vmatpush1.bf16.msra.mxu0 0
    %1735 = vmatprep.mubr.bf16.mxu0 0
    %1736 = vmatmul.mubr.bf16.gmra.mrb[0].mxu0 %v1507
    %v1737 = vpop.f32.mrb[0].mxu0
    %v1738 = vadd.f32 0.0, %v1737
    %v1739 = vpop.f32.mrb[0].mxu0
    %v1740 = vadd.f32 0.0, %v1739
    %v1741 = vpop.f32.mrb[0].mxu0
    %v1742 = vpop.f32.mrb[0].mxu0
    %1743 = vdwg.mxu0
    %1744 = vmatprep.subr.bf16.mxu0 %v278
    %1745 = vmatpush1.bf16.msra.mxu0 %v277
    %1746 = vmatprep.subr.bf16.mxu0 %v282
    %1747 = vmatpush1.bf16.msra.mxu0 %v281
    %1748 = vmatprep.subr.bf16.mxu0 %v286
    %1749 = vmatpush1.bf16.msra.mxu0 %v285
    %1750 = vmatprep.subr.bf16.mxu0 %v290
    %1751 = vmatpush1.bf16.msra.mxu0 %v289
    %1752 = vmatprep.subr.bf16.mxu0 %v294
    %1753 = vmatpush1.bf16.msra.mxu0 %v293
    %1754 = vmatprep.subr.bf16.mxu0 %v298
    %1755 = vmatpush1.bf16.msra.mxu0 %v297
    %1756 = vmatprep.subr.bf16.mxu0 %v302
    %1757 = vmatpush1.bf16.msra.mxu0 %v301
    %1758 = vmatprep.subr.bf16.mxu0 %v306
    %1759 = vmatpush1.bf16.msra.mxu0 %v305
    %1760 = vmatprep.subr.bf16.mxu0 0
    %1761 = vmatpush1.bf16.msra.mxu0 0
    %1762 = vmatprep.subr.bf16.mxu0 0
    %1763 = vmatpush1.bf16.msra.mxu0 0
    %1764 = vmatprep.subr.bf16.mxu0 0
    %1765 = vmatpush1.bf16.msra.mxu0 0
    %1766 = vmatprep.subr.bf16.mxu0 0
    %1767 = vmatpush1.bf16.msra.mxu0 0
    %1768 = vmatprep.subr.bf16.mxu0 0
    %1769 = vmatpush1.bf16.msra.mxu0 0
    %1770 = vmatprep.subr.bf16.mxu0 0
    %1771 = vmatpush1.bf16.msra.mxu0 0
    %1772 = vmatprep.subr.bf16.mxu0 0
    %1773 = vmatpush1.bf16.msra.mxu0 0
    %1774 = vmatprep.subr.bf16.mxu0 0
    %1775 = vmatpush1.bf16.msra.mxu0 0
    %1776 = vmatprep.mubr.bf16.mxu0 0
    %1777 = vmatmul.mubr.bf16.gmra.mrb[0].mxu0 %v1507
    %v1778 = vpop.f32.mrb[0].mxu0
    %v1779 = vadd.f32 0.0, %v1778
    %v1780 = vpop.f32.mrb[0].mxu0
    %v1781 = vadd.f32 0.0, %v1780
    %v1782 = vpop.f32.mrb[0].mxu0
    %v1783 = vpop.f32.mrb[0].mxu0
    %1784 = vdwg.mxu0
    %1785 = vmatprep.subr.bf16.mxu0 %v518
    %1786 = vmatpush1.bf16.msra.mxu0 %v517
    %1787 = vmatprep.subr.bf16.mxu0 %v522
    %1788 = vmatpush1.bf16.msra.mxu0 %v521
    %1789 = vmatprep.subr.bf16.mxu0 %v526
    %1790 = vmatpush1.bf16.msra.mxu0 %v525
    %1791 = vmatprep.subr.bf16.mxu0 %v530
    %1792 = vmatpush1.bf16.msra.mxu0 %v529
    %1793 = vmatprep.subr.bf16.mxu0 %v534
    %1794 = vmatpush1.bf16.msra.mxu0 %v533
    %1795 = vmatprep.subr.bf16.mxu0 %v538
    %1796 = vmatpush1.bf16.msra.mxu0 %v537
    %1797 = vmatprep.subr.bf16.mxu0 %v542
    %1798 = vmatpush1.bf16.msra.mxu0 %v541
    %1799 = vmatprep.subr.bf16.mxu0 %v546
    %1800 = vmatpush1.bf16.msra.mxu0 %v545
    %1801 = vmatprep.subr.bf16.mxu0 0
    %1802 = vmatpush1.bf16.msra.mxu0 0
    %1803 = vmatprep.subr.bf16.mxu0 0
    %1804 = vmatpush1.bf16.msra.mxu0 0
    %1805 = vmatprep.subr.bf16.mxu0 0
    %1806 = vmatpush1.bf16.msra.mxu0 0
    %1807 = vmatprep.subr.bf16.mxu0 0
    %1808 = vmatpush1.bf16.msra.mxu0 0
    %1809 = vmatprep.subr.bf16.mxu0 0
    %1810 = vmatpush1.bf16.msra.mxu0 0
    %1811 = vmatprep.subr.bf16.mxu0 0
    %1812 = vmatpush1.bf16.msra.mxu0 0
    %1813 = vmatprep.subr.bf16.mxu0 0
    %1814 = vmatpush1.bf16.msra.mxu0 0
    %1815 = vmatprep.subr.bf16.mxu0 0
    %1816 = vmatpush1.bf16.msra.mxu0 0
    %1817 = vmatprep.mubr.bf16.mxu0 0
    %1818 = vmatmul.mubr.bf16.gmra.mrb[0].mxu0 %v1702
    %v1819 = vpop.f32.mrb[0].mxu0
    %v1820 = vadd.f32 %v1738, %v1819
    %v1821 = vpop.f32.mrb[0].mxu0
    %v1822 = vadd.f32 %v1740, %v1821
    %v1823 = vpop.f32.mrb[0].mxu0
    %v1824 = vpop.f32.mrb[0].mxu0
    %1825 = vdwg.mxu0
    %1826 = vmatprep.subr.bf16.mxu0 %v520
    %1827 = vmatpush1.bf16.msra.mxu0 %v519
    %1828 = vmatprep.subr.bf16.mxu0 %v524
    %1829 = vmatpush1.bf16.msra.mxu0 %v523
    %1830 = vmatprep.subr.bf16.mxu0 %v528
    %1831 = vmatpush1.bf16.msra.mxu0 %v527
    %1832 = vmatprep.subr.bf16.mxu0 %v532
    %1833 = vmatpush1.bf16.msra.mxu0 %v531
    %1834 = vmatprep.subr.bf16.mxu0 %v536
    %1835 = vmatpush1.bf16.msra.mxu0 %v535
    %1836 = vmatprep.subr.bf16.mxu0 %v540
    %1837 = vmatpush1.bf16.msra.mxu0 %v539
    %1838 = vmatprep.subr.bf16.mxu0 %v544
    %1839 = vmatpush1.bf16.msra.mxu0 %v543
    %1840 = vmatprep.subr.bf16.mxu0 %v548
    %1841 = vmatpush1.bf16.msra.mxu0 %v547
    %1842 = vmatprep.subr.bf16.mxu0 0
    %1843 = vmatpush1.bf16.msra.mxu0 0
    %1844 = vmatprep.subr.bf16.mxu0 0
    %1845 = vmatpush1.bf16.msra.mxu0 0
    %1846 = vmatprep.subr.bf16.mxu0 0
    %1847 = vmatpush1.bf16.msra.mxu0 0
    %1848 = vmatprep.subr.bf16.mxu0 0
    %1849 = vmatpush1.bf16.msra.mxu0 0
    %1850 = vmatprep.subr.bf16.mxu0 0
    %1851 = vmatpush1.bf16.msra.mxu0 0
    %1852 = vmatprep.subr.bf16.mxu0 0
    %1853 = vmatpush1.bf16.msra.mxu0 0
    %1854 = vmatprep.subr.bf16.mxu0 0
    %1855 = vmatpush1.bf16.msra.mxu0 0
    %1856 = vmatprep.subr.bf16.mxu0 0
    %1857 = vmatpush1.bf16.msra.mxu0 0
    %1858 = vmatprep.mubr.bf16.mxu0 0
    %1859 = vmatmul.mubr.bf16.gmra.mrb[0].mxu0 %v1702
    %v1860 = vpop.f32.mrb[0].mxu0
    %v1861 = vadd.f32 %v1779, %v1860
    %v1862 = vpop.f32.mrb[0].mxu0
    %v1863 = vadd.f32 %v1781, %v1862
    %v1864 = vpop.f32.mrb[0].mxu0
    %v1865 = vpop.f32.mrb[0].mxu0
    %1866 = vdwg.mxu0
    %v1867 = vadd.f32 %v1820, %v668
    %v1868 = vadd.f32 %v1822, %v672
    %v1869 = vadd.f32 %v1861, %v676
    %v1870 = vadd.f32 %v1863, %v680
    %v1871 = vxor.u32 %v1867, 2147483648
    %v1872 = vmul.f32 %v1871, 1.442695
    %v1873 = vpow.pop %v1872
    %v1874 = vadd.f32 %v1873, 1.0
    %v1875 = vrcp.pop %v1874
    %v1876 = vmul.f32 1.0, %v1875
    %v1877 = vxor.u32 %v1868, 2147483648
    %v1878 = vmul.f32 %v1877, 1.442695
    %v1879 = vpow.pop %v1878
    %v1880 = vadd.f32 %v1879, 1.0
    %v1881 = vrcp.pop %v1880
    %v1882 = vmul.f32 1.0, %v1881
    %v1883 = vtanh.pop %v1869
    %v1884 = vxor.u32 %v1870, 2147483648
    %v1885 = vmul.f32 %v1884, 1.442695
    %v1886 = vpow.pop %v1885
    %v1887 = vadd.f32 %v1886, 1.0
    %v1888 = vrcp.pop %v1887
    %v1889 = vmul.f32 1.0, %v1888
    %v1890 = vmul.f32 %v1882, %v1504
    %v1891 = vmul.f32 %v1876, %v1883
    %v1892 = vadd.f32 %v1890, %v1891
    %v1893 = vtanh.pop %v1892
    %v1894 = vmul.f32 %v1889, %v1893
    %v1895 = vpack.c.bf16 %v1894, %v1894
    %v1896 = vpack.c.bf16 %v1700, %v1700
    %1897 = vmatprep.subr.bf16.mxu0 %v876
    %1898 = vmatpush1.bf16.msra.mxu0 %v875
    %1899 = vmatprep.subr.bf16.mxu0 %v880
    %1900 = vmatpush1.bf16.msra.mxu0 %v879
    %1901 = vmatprep.subr.bf16.mxu0 %v884
    %1902 = vmatpush1.bf16.msra.mxu0 %v883
    %1903 = vmatprep.subr.bf16.mxu0 %v888
    %1904 = vmatpush1.bf16.msra.mxu0 %v887
    %1905 = vmatprep.subr.bf16.mxu0 %v892
    %1906 = vmatpush1.bf16.msra.mxu0 %v891
    %1907 = vmatprep.subr.bf16.mxu0 %v896
    %1908 = vmatpush1.bf16.msra.mxu0 %v895
    %1909 = vmatprep.subr.bf16.mxu0 %v900
    %1910 = vmatpush1.bf16.msra.mxu0 %v899
    %1911 = vmatprep.subr.bf16.mxu0 %v904
    %1912 = vmatpush1.bf16.msra.mxu0 %v903
    %1913 = vmatprep.subr.bf16.mxu0 0
    %1914 = vmatpush1.bf16.msra.mxu0 0
    %1915 = vmatprep.subr.bf16.mxu0 0
    %1916 = vmatpush1.bf16.msra.mxu0 0
    %1917 = vmatprep.subr.bf16.mxu0 0
    %1918 = vmatpush1.bf16.msra.mxu0 0
    %1919 = vmatprep.subr.bf16.mxu0 0
    %1920 = vmatpush1.bf16.msra.mxu0 0
    %1921 = vmatprep.subr.bf16.mxu0 0
    %1922 = vmatpush1.bf16.msra.mxu0 0
    %1923 = vmatprep.subr.bf16.mxu0 0
    %1924 = vmatpush1.bf16.msra.mxu0 0
    %1925 = vmatprep.subr.bf16.mxu0 0
    %1926 = vmatpush1.bf16.msra.mxu0 0
    %1927 = vmatprep.subr.bf16.mxu0 0
    %1928 = vmatpush1.bf16.msra.mxu0 0
    %1929 = vmatprep.mubr.bf16.mxu0 0
    %1930 = vmatmul.mubr.bf16.gmra.mrb[0].mxu0 %v1896
    %v1931 = vpop.f32.mrb[0].mxu0
    %v1932 = vadd.f32 0.0, %v1931
    %v1933 = vpop.f32.mrb[0].mxu0
    %v1934 = vadd.f32 0.0, %v1933
    %v1935 = vpop.f32.mrb[0].mxu0
    %v1936 = vpop.f32.mrb[0].mxu0
    %1937 = vdwg.mxu0
    %1938 = vmatprep.subr.bf16.mxu0 %v878
    %1939 = vmatpush1.bf16.msra.mxu0 %v877
    %1940 = vmatprep.subr.bf16.mxu0 %v882
    %1941 = vmatpush1.bf16.msra.mxu0 %v881
    %1942 = vmatprep.subr.bf16.mxu0 %v886
    %1943 = vmatpush1.bf16.msra.mxu0 %v885
    %1944 = vmatprep.subr.bf16.mxu0 %v890
    %1945 = vmatpush1.bf16.msra.mxu0 %v889
    %1946 = vmatprep.subr.bf16.mxu0 %v894
    %1947 = vmatpush1.bf16.msra.mxu0 %v893
    %1948 = vmatprep.subr.bf16.mxu0 %v898
    %1949 = vmatpush1.bf16.msra.mxu0 %v897
    %1950 = vmatprep.subr.bf16.mxu0 %v902
    %1951 = vmatpush1.bf16.msra.mxu0 %v901
    %1952 = vmatprep.subr.bf16.mxu0 %v906
    %1953 = vmatpush1.bf16.msra.mxu0 %v905
    %1954 = vmatprep.subr.bf16.mxu0 0
    %1955 = vmatpush1.bf16.msra.mxu0 0
    %1956 = vmatprep.subr.bf16.mxu0 0
    %1957 = vmatpush1.bf16.msra.mxu0 0
    %1958 = vmatprep.subr.bf16.mxu0 0
    %1959 = vmatpush1.bf16.msra.mxu0 0
    %1960 = vmatprep.subr.bf16.mxu0 0
    %1961 = vmatpush1.bf16.msra.mxu0 0
    %1962 = vmatprep.subr.bf16.mxu0 0
    %1963 = vmatpush1.bf16.msra.mxu0 0
    %1964 = vmatprep.subr.bf16.mxu0 0
    %1965 = vmatpush1.bf16.msra.mxu0 0
    %1966 = vmatprep.subr.bf16.mxu0 0
    %1967 = vmatpush1.bf16.msra.mxu0 0
    %1968 = vmatprep.subr.bf16.mxu0 0
    %1969 = vmatpush1.bf16.msra.mxu0 0
    %1970 = vmatprep.mubr.bf16.mxu0 0
    %1971 = vmatmul.mubr.bf16.gmra.mrb[0].mxu0 %v1896
    %v1972 = vpop.f32.mrb[0].mxu0
    %v1973 = vadd.f32 0.0, %v1972
    %v1974 = vpop.f32.mrb[0].mxu0
    %v1975 = vadd.f32 0.0, %v1974
    %v1976 = vpop.f32.mrb[0].mxu0
    %v1977 = vpop.f32.mrb[0].mxu0
    %1978 = vdwg.mxu0
    %1979 = vmatprep.subr.bf16.mxu0 %v1118
    %1980 = vmatpush1.bf16.msra.mxu0 %v1117
    %1981 = vmatprep.subr.bf16.mxu0 %v1122
    %1982 = vmatpush1.bf16.msra.mxu0 %v1121
    %1983 = vmatprep.subr.bf16.mxu0 %v1126
    %1984 = vmatpush1.bf16.msra.mxu0 %v1125
    %1985 = vmatprep.subr.bf16.mxu0 %v1130
    %1986 = vmatpush1.bf16.msra.mxu0 %v1129
    %1987 = vmatprep.subr.bf16.mxu0 %v1134
    %1988 = vmatpush1.bf16.msra.mxu0 %v1133
    %1989 = vmatprep.subr.bf16.mxu0 %v1138
    %1990 = vmatpush1.bf16.msra.mxu0 %v1137
    %1991 = vmatprep.subr.bf16.mxu0 %v1142
    %1992 = vmatpush1.bf16.msra.mxu0 %v1141
    %1993 = vmatprep.subr.bf16.mxu0 %v1146
    %1994 = vmatpush1.bf16.msra.mxu0 %v1145
    %1995 = vmatprep.subr.bf16.mxu0 0
    %1996 = vmatpush1.bf16.msra.mxu0 0
    %1997 = vmatprep.subr.bf16.mxu0 0
    %1998 = vmatpush1.bf16.msra.mxu0 0
    %1999 = vmatprep.subr.bf16.mxu0 0
    %2000 = vmatpush1.bf16.msra.mxu0 0
    %2001 = vmatprep.subr.bf16.mxu0 0
    %2002 = vmatpush1.bf16.msra.mxu0 0
    %2003 = vmatprep.subr.bf16.mxu0 0
    %2004 = vmatpush1.bf16.msra.mxu0 0
    %2005 = vmatprep.subr.bf16.mxu0 0
    %2006 = vmatpush1.bf16.msra.mxu0 0
    %2007 = vmatprep.subr.bf16.mxu0 0
    %2008 = vmatpush1.bf16.msra.mxu0 0
    %2009 = vmatprep.subr.bf16.mxu0 0
    %2010 = vmatpush1.bf16.msra.mxu0 0
    %2011 = vmatprep.mubr.bf16.mxu0 0
    %2012 = vmatmul.mubr.bf16.gmra.mrb[0].mxu0 %v1895
    %v2013 = vpop.f32.mrb[0].mxu0
    %v2014 = vadd.f32 %v1932, %v2013
    %v2015 = vpop.f32.mrb[0].mxu0
    %v2016 = vadd.f32 %v1934, %v2015
    %v2017 = vpop.f32.mrb[0].mxu0
    %v2018 = vpop.f32.mrb[0].mxu0
    %2019 = vdwg.mxu0
    %2020 = vmatprep.subr.bf16.mxu0 %v1120
    %2021 = vmatpush1.bf16.msra.mxu0 %v1119
    %2022 = vmatprep.subr.bf16.mxu0 %v1124
    %2023 = vmatpush1.bf16.msra.mxu0 %v1123
    %2024 = vmatprep.subr.bf16.mxu0 %v1128
    %2025 = vmatpush1.bf16.msra.mxu0 %v1127
    %2026 = vmatprep.subr.bf16.mxu0 %v1132
    %2027 = vmatpush1.bf16.msra.mxu0 %v1131
    %2028 = vmatprep.subr.bf16.mxu0 %v1136
    %2029 = vmatpush1.bf16.msra.mxu0 %v1135
    %2030 = vmatprep.subr.bf16.mxu0 %v1140
    %2031 = vmatpush1.bf16.msra.mxu0 %v1139
    %2032 = vmatprep.subr.bf16.mxu0 %v1144
    %2033 = vmatpush1.bf16.msra.mxu0 %v1143
    %2034 = vmatprep.subr.bf16.mxu0 %v1148
    %2035 = vmatpush1.bf16.msra.mxu0 %v1147
    %2036 = vmatprep.subr.bf16.mxu0 0
    %2037 = vmatpush1.bf16.msra.mxu0 0
    %2038 = vmatprep.subr.bf16.mxu0 0
    %2039 = vmatpush1.bf16.msra.mxu0 0
    %2040 = vmatprep.subr.bf16.mxu0 0
    %2041 = vmatpush1.bf16.msra.mxu0 0
    %2042 = vmatprep.subr.bf16.mxu0 0
    %2043 = vmatpush1.bf16.msra.mxu0 0
    %2044 = vmatprep.subr.bf16.mxu0 0
    %2045 = vmatpush1.bf16.msra.mxu0 0
    %2046 = vmatprep.subr.bf16.mxu0 0
    %2047 = vmatpush1.bf16.msra.mxu0 0
    %2048 = vmatprep.subr.bf16.mxu0 0
    %2049 = vmatpush1.bf16.msra.mxu0 0
    %2050 = vmatprep.subr.bf16.mxu0 0
    %2051 = vmatpush1.bf16.msra.mxu0 0
    %2052 = vmatprep.mubr.bf16.mxu0 0
    %2053 = vmatmul.mubr.bf16.gmra.mrb[0].mxu0 %v1895
    %v2054 = vpop.f32.mrb[0].mxu0
    %v2055 = vadd.f32 %v1973, %v2054
    %v2056 = vpop.f32.mrb[0].mxu0
    %v2057 = vadd.f32 %v1975, %v2056
    %v2058 = vpop.f32.mrb[0].mxu0
    %v2059 = vpop.f32.mrb[0].mxu0
    %2060 = vdwg.mxu0
    %v2061 = vadd.f32 %v2014, %v1268
    %v2062 = vadd.f32 %v2016, %v1272
    %v2063 = vadd.f32 %v2055, %v1276
    %v2064 = vadd.f32 %v2057, %v1280
    %v2065 = vxor.u32 %v2061, 2147483648
    %v2066 = vmul.f32 %v2065, 1.442695
    %v2067 = vpow.pop %v2066
    %v2068 = vadd.f32 %v2067, 1.0
    %v2069 = vrcp.pop %v2068
    %v2070 = vmul.f32 1.0, %v2069
    %v2071 = vxor.u32 %v2062, 2147483648
    %v2072 = vmul.f32 %v2071, 1.442695
    %v2073 = vpow.pop %v2072
    %v2074 = vadd.f32 %v2073, 1.0
    %v2075 = vrcp.pop %v2074
    %v2076 = vmul.f32 1.0, %v2075
    %v2077 = vtanh.pop %v2063
    %v2078 = vxor.u32 %v2064, 2147483648
    %v2079 = vmul.f32 %v2078, 1.442695
    %v2080 = vpow.pop %v2079
    %v2081 = vadd.f32 %v2080, 1.0
    %v2082 = vrcp.pop %v2081
    %v2083 = vmul.f32 1.0, %v2082
    %v2084 = vmul.f32 %v2076, %v1698
    %v2085 = vmul.f32 %v2070, %v2077
    %v2086 = vadd.f32 %v2084, %v2085
    %v2087 = vtanh.pop %v2086
    %v2088 = vmul.f32 %v2083, %v2087
    %s2089 = scalar_lea.vmem [#allocation2], 12
    %v2090 = vld [vmem:[%s2089] sm:$0xf]
    %2091 = vmatprep.subr.bf16.mxu0 %v276
    %2092 = vmatpush1.bf16.msra.mxu0 %v275
    %2093 = vmatprep.subr.bf16.mxu0 %v280
    %2094 = vmatpush1.bf16.msra.mxu0 %v279
    %2095 = vmatprep.subr.bf16.mxu0 %v284
    %2096 = vmatpush1.bf16.msra.mxu0 %v283
    %2097 = vmatprep.subr.bf16.mxu0 %v288
    %2098 = vmatpush1.bf16.msra.mxu0 %v287
    %2099 = vmatprep.subr.bf16.mxu0 %v292
    %2100 = vmatpush1.bf16.msra.mxu0 %v291
    %2101 = vmatprep.subr.bf16.mxu0 %v296
    %2102 = vmatpush1.bf16.msra.mxu0 %v295
    %2103 = vmatprep.subr.bf16.mxu0 %v300
    %2104 = vmatpush1.bf16.msra.mxu0 %v299
    %2105 = vmatprep.subr.bf16.mxu0 %v304
    %2106 = vmatpush1.bf16.msra.mxu0 %v303
    %2107 = vmatprep.subr.bf16.mxu0 0
    %2108 = vmatpush1.bf16.msra.mxu0 0
    %2109 = vmatprep.subr.bf16.mxu0 0
    %2110 = vmatpush1.bf16.msra.mxu0 0
    %2111 = vmatprep.subr.bf16.mxu0 0
    %2112 = vmatpush1.bf16.msra.mxu0 0
    %2113 = vmatprep.subr.bf16.mxu0 0
    %2114 = vmatpush1.bf16.msra.mxu0 0
    %2115 = vmatprep.subr.bf16.mxu0 0
    %2116 = vmatpush1.bf16.msra.mxu0 0
    %2117 = vmatprep.subr.bf16.mxu0 0
    %2118 = vmatpush1.bf16.msra.mxu0 0
    %2119 = vmatprep.subr.bf16.mxu0 0
    %2120 = vmatpush1.bf16.msra.mxu0 0
    %2121 = vmatprep.subr.bf16.mxu0 0
    %2122 = vmatpush1.bf16.msra.mxu0 0
    %2123 = vmatprep.mubr.bf16.mxu0 0
    %2124 = vmatmul.mubr.bf16.gmra.mrb[0].mxu0 %v1895
    %v2125 = vpop.f32.mrb[0].mxu0
    %v2126 = vadd.f32 0.0, %v2125
    %v2127 = vpop.f32.mrb[0].mxu0
    %v2128 = vadd.f32 0.0, %v2127
    %v2129 = vpop.f32.mrb[0].mxu0
    %v2130 = vpop.f32.mrb[0].mxu0
    %2131 = vdwg.mxu0
    %2132 = vmatprep.subr.bf16.mxu0 %v278
    %2133 = vmatpush1.bf16.msra.mxu0 %v277
    %2134 = vmatprep.subr.bf16.mxu0 %v282
    %2135 = vmatpush1.bf16.msra.mxu0 %v281
    %2136 = vmatprep.subr.bf16.mxu0 %v286
    %2137 = vmatpush1.bf16.msra.mxu0 %v285
    %2138 = vmatprep.subr.bf16.mxu0 %v290
    %2139 = vmatpush1.bf16.msra.mxu0 %v289
    %2140 = vmatprep.subr.bf16.mxu0 %v294
    %2141 = vmatpush1.bf16.msra.mxu0 %v293
    %2142 = vmatprep.subr.bf16.mxu0 %v298
    %2143 = vmatpush1.bf16.msra.mxu0 %v297
    %2144 = vmatprep.subr.bf16.mxu0 %v302
    %2145 = vmatpush1.bf16.msra.mxu0 %v301
    %2146 = vmatprep.subr.bf16.mxu0 %v306
    %2147 = vmatpush1.bf16.msra.mxu0 %v305
    %2148 = vmatprep.subr.bf16.mxu0 0
    %2149 = vmatpush1.bf16.msra.mxu0 0
    %2150 = vmatprep.subr.bf16.mxu0 0
    %2151 = vmatpush1.bf16.msra.mxu0 0
    %2152 = vmatprep.subr.bf16.mxu0 0
    %2153 = vmatpush1.bf16.msra.mxu0 0
    %2154 = vmatprep.subr.bf16.mxu0 0
    %2155 = vmatpush1.bf16.msra.mxu0 0
    %2156 = vmatprep.subr.bf16.mxu0 0
    %2157 = vmatpush1.bf16.msra.mxu0 0
    %2158 = vmatprep.subr.bf16.mxu0 0
    %2159 = vmatpush1.bf16.msra.mxu0 0
    %2160 = vmatprep.subr.bf16.mxu0 0
    %2161 = vmatpush1.bf16.msra.mxu0 0
    %2162 = vmatprep.subr.bf16.mxu0 0
    %2163 = vmatpush1.bf16.msra.mxu0 0
    %2164 = vmatprep.mubr.bf16.mxu0 0
    %2165 = vmatmul.mubr.bf16.gmra.mrb[0].mxu0 %v1895
    %v2166 = vpop.f32.mrb[0].mxu0
    %v2167 = vadd.f32 0.0, %v2166
    %v2168 = vpop.f32.mrb[0].mxu0
    %v2169 = vadd.f32 0.0, %v2168
    %v2170 = vpop.f32.mrb[0].mxu0
    %v2171 = vpop.f32.mrb[0].mxu0
    %2172 = vdwg.mxu0
    %2173 = vmatprep.subr.bf16.mxu0 %v518
    %2174 = vmatpush1.bf16.msra.mxu0 %v517
    %2175 = vmatprep.subr.bf16.mxu0 %v522
    %2176 = vmatpush1.bf16.msra.mxu0 %v521
    %2177 = vmatprep.subr.bf16.mxu0 %v526
    %2178 = vmatpush1.bf16.msra.mxu0 %v525
    %2179 = vmatprep.subr.bf16.mxu0 %v530
    %2180 = vmatpush1.bf16.msra.mxu0 %v529
    %2181 = vmatprep.subr.bf16.mxu0 %v534
    %2182 = vmatpush1.bf16.msra.mxu0 %v533
    %2183 = vmatprep.subr.bf16.mxu0 %v538
    %2184 = vmatpush1.bf16.msra.mxu0 %v537
    %2185 = vmatprep.subr.bf16.mxu0 %v542
    %2186 = vmatpush1.bf16.msra.mxu0 %v541
    %2187 = vmatprep.subr.bf16.mxu0 %v546
    %2188 = vmatpush1.bf16.msra.mxu0 %v545
    %2189 = vmatprep.subr.bf16.mxu0 0
    %2190 = vmatpush1.bf16.msra.mxu0 0
    %2191 = vmatprep.subr.bf16.mxu0 0
    %2192 = vmatpush1.bf16.msra.mxu0 0
    %2193 = vmatprep.subr.bf16.mxu0 0
    %2194 = vmatpush1.bf16.msra.mxu0 0
    %2195 = vmatprep.subr.bf16.mxu0 0
    %2196 = vmatpush1.bf16.msra.mxu0 0
    %2197 = vmatprep.subr.bf16.mxu0 0
    %2198 = vmatpush1.bf16.msra.mxu0 0
    %2199 = vmatprep.subr.bf16.mxu0 0
    %2200 = vmatpush1.bf16.msra.mxu0 0
    %2201 = vmatprep.subr.bf16.mxu0 0
    %2202 = vmatpush1.bf16.msra.mxu0 0
    %2203 = vmatprep.subr.bf16.mxu0 0
    %2204 = vmatpush1.bf16.msra.mxu0 0
    %2205 = vmatprep.mubr.bf16.mxu0 0
    %2206 = vmatmul.mubr.bf16.gmra.mrb[0].mxu0 %v2090
    %v2207 = vpop.f32.mrb[0].mxu0
    %v2208 = vadd.f32 %v2126, %v2207
    %v2209 = vpop.f32.mrb[0].mxu0
    %v2210 = vadd.f32 %v2128, %v2209
    %v2211 = vpop.f32.mrb[0].mxu0
    %v2212 = vpop.f32.mrb[0].mxu0
    %2213 = vdwg.mxu0
    %2214 = vmatprep.subr.bf16.mxu0 %v520
    %2215 = vmatpush1.bf16.msra.mxu0 %v519
    %2216 = vmatprep.subr.bf16.mxu0 %v524
    %2217 = vmatpush1.bf16.msra.mxu0 %v523
    %2218 = vmatprep.subr.bf16.mxu0 %v528
    %2219 = vmatpush1.bf16.msra.mxu0 %v527
    %2220 = vmatprep.subr.bf16.mxu0 %v532
    %2221 = vmatpush1.bf16.msra.mxu0 %v531
    %2222 = vmatprep.subr.bf16.mxu0 %v536
    %2223 = vmatpush1.bf16.msra.mxu0 %v535
    %2224 = vmatprep.subr.bf16.mxu0 %v540
    %2225 = vmatpush1.bf16.msra.mxu0 %v539
    %2226 = vmatprep.subr.bf16.mxu0 %v544
    %2227 = vmatpush1.bf16.msra.mxu0 %v543
    %2228 = vmatprep.subr.bf16.mxu0 %v548
    %2229 = vmatpush1.bf16.msra.mxu0 %v547
    %2230 = vmatprep.subr.bf16.mxu0 0
    %2231 = vmatpush1.bf16.msra.mxu0 0
    %2232 = vmatprep.subr.bf16.mxu0 0
    %2233 = vmatpush1.bf16.msra.mxu0 0
    %2234 = vmatprep.subr.bf16.mxu0 0
    %2235 = vmatpush1.bf16.msra.mxu0 0
    %2236 = vmatprep.subr.bf16.mxu0 0
    %2237 = vmatpush1.bf16.msra.mxu0 0
    %2238 = vmatprep.subr.bf16.mxu0 0
    %2239 = vmatpush1.bf16.msra.mxu0 0
    %2240 = vmatprep.subr.bf16.mxu0 0
    %2241 = vmatpush1.bf16.msra.mxu0 0
    %2242 = vmatprep.subr.bf16.mxu0 0
    %2243 = vmatpush1.bf16.msra.mxu0 0
    %2244 = vmatprep.subr.bf16.mxu0 0
    %2245 = vmatpush1.bf16.msra.mxu0 0
    %2246 = vmatprep.mubr.bf16.mxu0 0
    %2247 = vmatmul.mubr.bf16.gmra.mrb[0].mxu0 %v2090
    %v2248 = vpop.f32.mrb[0].mxu0
    %v2249 = vadd.f32 %v2167, %v2248
    %v2250 = vpop.f32.mrb[0].mxu0
    %v2251 = vadd.f32 %v2169, %v2250
    %v2252 = vpop.f32.mrb[0].mxu0
    %v2253 = vpop.f32.mrb[0].mxu0
    %2254 = vdwg.mxu0
    %v2255 = vadd.f32 %v2208, %v668
    %v2256 = vadd.f32 %v2210, %v672
    %v2257 = vadd.f32 %v2249, %v676
    %v2258 = vadd.f32 %v2251, %v680
    %v2259 = vxor.u32 %v2255, 2147483648
    %v2260 = vmul.f32 %v2259, 1.442695
    %v2261 = vpow.pop %v2260
    %v2262 = vadd.f32 %v2261, 1.0
    %v2263 = vrcp.pop %v2262
    %v2264 = vmul.f32 1.0, %v2263
    %v2265 = vxor.u32 %v2256, 2147483648
    %v2266 = vmul.f32 %v2265, 1.442695
    %v2267 = vpow.pop %v2266
    %v2268 = vadd.f32 %v2267, 1.0
    %v2269 = vrcp.pop %v2268
    %v2270 = vmul.f32 1.0, %v2269
    %v2271 = vtanh.pop %v2257
    %v2272 = vxor.u32 %v2258, 2147483648
    %v2273 = vmul.f32 %v2272, 1.442695
    %v2274 = vpow.pop %v2273
    %v2275 = vadd.f32 %v2274, 1.0
    %v2276 = vrcp.pop %v2275
    %v2277 = vmul.f32 1.0, %v2276
    %v2278 = vmul.f32 %v2270, %v1892
    %v2279 = vmul.f32 %v2264, %v2271
    %v2280 = vadd.f32 %v2278, %v2279
    %v2281 = vtanh.pop %v2280
    %v2282 = vmul.f32 %v2277, %v2281
    %v2283 = vpack.c.bf16 %v2282, %v2282
    %v2284 = vpack.c.bf16 %v2088, %v2088
    %2285 = vmatprep.subr.bf16.mxu0 %v876
    %2286 = vmatpush1.bf16.msra.mxu0 %v875
    %2287 = vmatprep.subr.bf16.mxu0 %v880
    %2288 = vmatpush1.bf16.msra.mxu0 %v879
    %2289 = vmatprep.subr.bf16.mxu0 %v884
    %2290 = vmatpush1.bf16.msra.mxu0 %v883
    %2291 = vmatprep.subr.bf16.mxu0 %v888
    %2292 = vmatpush1.bf16.msra.mxu0 %v887
    %2293 = vmatprep.subr.bf16.mxu0 %v892
    %2294 = vmatpush1.bf16.msra.mxu0 %v891
    %2295 = vmatprep.subr.bf16.mxu0 %v896
    %2296 = vmatpush1.bf16.msra.mxu0 %v895
    %2297 = vmatprep.subr.bf16.mxu0 %v900
    %2298 = vmatpush1.bf16.msra.mxu0 %v899
    %2299 = vmatprep.subr.bf16.mxu0 %v904
    %2300 = vmatpush1.bf16.msra.mxu0 %v903
    %2301 = vmatprep.subr.bf16.mxu0 0
    %2302 = vmatpush1.bf16.msra.mxu0 0
    %2303 = vmatprep.subr.bf16.mxu0 0
    %2304 = vmatpush1.bf16.msra.mxu0 0
    %2305 = vmatprep.subr.bf16.mxu0 0
    %2306 = vmatpush1.bf16.msra.mxu0 0
    %2307 = vmatprep.subr.bf16.mxu0 0
    %2308 = vmatpush1.bf16.msra.mxu0 0
    %2309 = vmatprep.subr.bf16.mxu0 0
    %2310 = vmatpush1.bf16.msra.mxu0 0
    %2311 = vmatprep.subr.bf16.mxu0 0
    %2312 = vmatpush1.bf16.msra.mxu0 0
    %2313 = vmatprep.subr.bf16.mxu0 0
    %2314 = vmatpush1.bf16.msra.mxu0 0
    %2315 = vmatprep.subr.bf16.mxu0 0
    %2316 = vmatpush1.bf16.msra.mxu0 0
    %2317 = vmatprep.mubr.bf16.mxu0 0
    %2318 = vmatmul.mubr.bf16.gmra.mrb[0].mxu0 %v2284
    %v2319 = vpop.f32.mrb[0].mxu0
    %v2320 = vadd.f32 0.0, %v2319
    %v2321 = vpop.f32.mrb[0].mxu0
    %v2322 = vadd.f32 0.0, %v2321
    %v2323 = vpop.f32.mrb[0].mxu0
    %v2324 = vpop.f32.mrb[0].mxu0
    %2325 = vdwg.mxu0
    %2326 = vmatprep.subr.bf16.mxu0 %v878
    %2327 = vmatpush1.bf16.msra.mxu0 %v877
    %2328 = vmatprep.subr.bf16.mxu0 %v882
    %2329 = vmatpush1.bf16.msra.mxu0 %v881
    %2330 = vmatprep.subr.bf16.mxu0 %v886
    %2331 = vmatpush1.bf16.msra.mxu0 %v885
    %2332 = vmatprep.subr.bf16.mxu0 %v890
    %2333 = vmatpush1.bf16.msra.mxu0 %v889
    %2334 = vmatprep.subr.bf16.mxu0 %v894
    %2335 = vmatpush1.bf16.msra.mxu0 %v893
    %2336 = vmatprep.subr.bf16.mxu0 %v898
    %2337 = vmatpush1.bf16.msra.mxu0 %v897
    %2338 = vmatprep.subr.bf16.mxu0 %v902
    %2339 = vmatpush1.bf16.msra.mxu0 %v901
    %2340 = vmatprep.subr.bf16.mxu0 %v906
    %2341 = vmatpush1.bf16.msra.mxu0 %v905
    %2342 = vmatprep.subr.bf16.mxu0 0
    %2343 = vmatpush1.bf16.msra.mxu0 0
    %2344 = vmatprep.subr.bf16.mxu0 0
    %2345 = vmatpush1.bf16.msra.mxu0 0
    %2346 = vmatprep.subr.bf16.mxu0 0
    %2347 = vmatpush1.bf16.msra.mxu0 0
    %2348 = vmatprep.subr.bf16.mxu0 0
    %2349 = vmatpush1.bf16.msra.mxu0 0
    %2350 = vmatprep.subr.bf16.mxu0 0
    %2351 = vmatpush1.bf16.msra.mxu0 0
    %2352 = vmatprep.subr.bf16.mxu0 0
    %2353 = vmatpush1.bf16.msra.mxu0 0
    %2354 = vmatprep.subr.bf16.mxu0 0
    %2355 = vmatpush1.bf16.msra.mxu0 0
    %2356 = vmatprep.subr.bf16.mxu0 0
    %2357 = vmatpush1.bf16.msra.mxu0 0
    %2358 = vmatprep.mubr.bf16.mxu0 0
    %2359 = vmatmul.mubr.bf16.gmra.mrb[0].mxu0 %v2284
    %v2360 = vpop.f32.mrb[0].mxu0
    %v2361 = vadd.f32 0.0, %v2360
    %v2362 = vpop.f32.mrb[0].mxu0
    %v2363 = vadd.f32 0.0, %v2362
    %v2364 = vpop.f32.mrb[0].mxu0
    %v2365 = vpop.f32.mrb[0].mxu0
    %2366 = vdwg.mxu0
    %2367 = vmatprep.subr.bf16.mxu0 %v1118
    %2368 = vmatpush1.bf16.msra.mxu0 %v1117
    %2369 = vmatprep.subr.bf16.mxu0 %v1122
    %2370 = vmatpush1.bf16.msra.mxu0 %v1121
    %2371 = vmatprep.subr.bf16.mxu0 %v1126
    %2372 = vmatpush1.bf16.msra.mxu0 %v1125
    %2373 = vmatprep.subr.bf16.mxu0 %v1130
    %2374 = vmatpush1.bf16.msra.mxu0 %v1129
    %2375 = vmatprep.subr.bf16.mxu0 %v1134
    %2376 = vmatpush1.bf16.msra.mxu0 %v1133
    %2377 = vmatprep.subr.bf16.mxu0 %v1138
    %2378 = vmatpush1.bf16.msra.mxu0 %v1137
    %2379 = vmatprep.subr.bf16.mxu0 %v1142
    %2380 = vmatpush1.bf16.msra.mxu0 %v1141
    %2381 = vmatprep.subr.bf16.mxu0 %v1146
    %2382 = vmatpush1.bf16.msra.mxu0 %v1145
    %2383 = vmatprep.subr.bf16.mxu0 0
    %2384 = vmatpush1.bf16.msra.mxu0 0
    %2385 = vmatprep.subr.bf16.mxu0 0
    %2386 = vmatpush1.bf16.msra.mxu0 0
    %2387 = vmatprep.subr.bf16.mxu0 0
    %2388 = vmatpush1.bf16.msra.mxu0 0
    %2389 = vmatprep.subr.bf16.mxu0 0
    %2390 = vmatpush1.bf16.msra.mxu0 0
    %2391 = vmatprep.subr.bf16.mxu0 0
    %2392 = vmatpush1.bf16.msra.mxu0 0
    %2393 = vmatprep.subr.bf16.mxu0 0
    %2394 = vmatpush1.bf16.msra.mxu0 0
    %2395 = vmatprep.subr.bf16.mxu0 0
    %2396 = vmatpush1.bf16.msra.mxu0 0
    %2397 = vmatprep.subr.bf16.mxu0 0
    %2398 = vmatpush1.bf16.msra.mxu0 0
    %2399 = vmatprep.mubr.bf16.mxu0 0
    %2400 = vmatmul.mubr.bf16.gmra.mrb[0].mxu0 %v2283
    %v2401 = vpop.f32.mrb[0].mxu0
    %v2402 = vadd.f32 %v2320, %v2401
    %v2403 = vpop.f32.mrb[0].mxu0
    %v2404 = vadd.f32 %v2322, %v2403
    %v2405 = vpop.f32.mrb[0].mxu0
    %v2406 = vpop.f32.mrb[0].mxu0
    %2407 = vdwg.mxu0
    %2408 = vmatprep.subr.bf16.mxu0 %v1120
    %2409 = vmatpush1.bf16.msra.mxu0 %v1119
    %2410 = vmatprep.subr.bf16.mxu0 %v1124
    %2411 = vmatpush1.bf16.msra.mxu0 %v1123
    %2412 = vmatprep.subr.bf16.mxu0 %v1128
    %2413 = vmatpush1.bf16.msra.mxu0 %v1127
    %2414 = vmatprep.subr.bf16.mxu0 %v1132
    %2415 = vmatpush1.bf16.msra.mxu0 %v1131
    %2416 = vmatprep.subr.bf16.mxu0 %v1136
    %2417 = vmatpush1.bf16.msra.mxu0 %v1135
    %2418 = vmatprep.subr.bf16.mxu0 %v1140
    %2419 = vmatpush1.bf16.msra.mxu0 %v1139
    %2420 = vmatprep.subr.bf16.mxu0 %v1144
    %2421 = vmatpush1.bf16.msra.mxu0 %v1143
    %2422 = vmatprep.subr.bf16.mxu0 %v1148
    %2423 = vmatpush1.bf16.msra.mxu0 %v1147
    %2424 = vmatprep.subr.bf16.mxu0 0
    %2425 = vmatpush1.bf16.msra.mxu0 0
    %2426 = vmatprep.subr.bf16.mxu0 0
    %2427 = vmatpush1.bf16.msra.mxu0 0
    %2428 = vmatprep.subr.bf16.mxu0 0
    %2429 = vmatpush1.bf16.msra.mxu0 0
    %2430 = vmatprep.subr.bf16.mxu0 0
    %2431 = vmatpush1.bf16.msra.mxu0 0
    %2432 = vmatprep.subr.bf16.mxu0 0
    %2433 = vmatpush1.bf16.msra.mxu0 0
    %2434 = vmatprep.subr.bf16.mxu0 0
    %2435 = vmatpush1.bf16.msra.mxu0 0
    %2436 = vmatprep.subr.bf16.mxu0 0
    %2437 = vmatpush1.bf16.msra.mxu0 0
    %2438 = vmatprep.subr.bf16.mxu0 0
    %2439 = vmatpush1.bf16.msra.mxu0 0
    %2440 = vmatprep.mubr.bf16.mxu0 0
    %2441 = vmatmul.mubr.bf16.gmra.mrb[0].mxu0 %v2283
    %v2442 = vpop.f32.mrb[0].mxu0
    %v2443 = vadd.f32 %v2361, %v2442
    %v2444 = vpop.f32.mrb[0].mxu0
    %v2445 = vadd.f32 %v2363, %v2444
    %v2446 = vpop.f32.mrb[0].mxu0
    %v2447 = vpop.f32.mrb[0].mxu0
    %2448 = vdwg.mxu0
    %v2449 = vadd.f32 %v2402, %v1268
    %v2450 = vadd.f32 %v2404, %v1272
    %v2451 = vadd.f32 %v2443, %v1276
    %v2452 = vadd.f32 %v2445, %v1280
    %v2453 = vxor.u32 %v2449, 2147483648
    %v2454 = vmul.f32 %v2453, 1.442695
    %v2455 = vpow.pop %v2454
    %v2456 = vadd.f32 %v2455, 1.0
    %v2457 = vrcp.pop %v2456
    %v2458 = vmul.f32 1.0, %v2457
    %v2459 = vxor.u32 %v2450, 2147483648
    %v2460 = vmul.f32 %v2459, 1.442695
    %v2461 = vpow.pop %v2460
    %v2462 = vadd.f32 %v2461, 1.0
    %v2463 = vrcp.pop %v2462
    %v2464 = vmul.f32 1.0, %v2463
    %v2465 = vtanh.pop %v2451
    %v2466 = vxor.u32 %v2452, 2147483648
    %v2467 = vmul.f32 %v2466, 1.442695
    %v2468 = vpow.pop %v2467
    %v2469 = vadd.f32 %v2468, 1.0
    %v2470 = vrcp.pop %v2469
    %v2471 = vmul.f32 1.0, %v2470
    %v2472 = vmul.f32 %v2464, %v2086
    %v2473 = vmul.f32 %v2458, %v2465
    %v2474 = vadd.f32 %v2472, %v2473
    %v2475 = vtanh.pop %v2474
    %v2476 = vmul.f32 %v2471, %v2475
    %s2477 = scalar_lea.vmem [#allocation2], 16
    %v2478 = vld [vmem:[%s2477] sm:$0xf]
    %2479 = vmatprep.subr.bf16.mxu0 %v276
    %2480 = vmatpush1.bf16.msra.mxu0 %v275
    %2481 = vmatprep.subr.bf16.mxu0 %v280
    %2482 = vmatpush1.bf16.msra.mxu0 %v279
    %2483 = vmatprep.subr.bf16.mxu0 %v284
    %2484 = vmatpush1.bf16.msra.mxu0 %v283
    %2485 = vmatprep.subr.bf16.mxu0 %v288
    %2486 = vmatpush1.bf16.msra.mxu0 %v287
    %2487 = vmatprep.subr.bf16.mxu0 %v292
    %2488 = vmatpush1.bf16.msra.mxu0 %v291
    %2489 = vmatprep.subr.bf16.mxu0 %v296
    %2490 = vmatpush1.bf16.msra.mxu0 %v295
    %2491 = vmatprep.subr.bf16.mxu0 %v300
    %2492 = vmatpush1.bf16.msra.mxu0 %v299
    %2493 = vmatprep.subr.bf16.mxu0 %v304
    %2494 = vmatpush1.bf16.msra.mxu0 %v303
    %2495 = vmatprep.subr.bf16.mxu0 0
    %2496 = vmatpush1.bf16.msra.mxu0 0
    %2497 = vmatprep.subr.bf16.mxu0 0
    %2498 = vmatpush1.bf16.msra.mxu0 0
    %2499 = vmatprep.subr.bf16.mxu0 0
    %2500 = vmatpush1.bf16.msra.mxu0 0
    %2501 = vmatprep.subr.bf16.mxu0 0
    %2502 = vmatpush1.bf16.msra.mxu0 0
    %2503 = vmatprep.subr.bf16.mxu0 0
    %2504 = vmatpush1.bf16.msra.mxu0 0
    %2505 = vmatprep.subr.bf16.mxu0 0
    %2506 = vmatpush1.bf16.msra.mxu0 0
    %2507 = vmatprep.subr.bf16.mxu0 0
    %2508 = vmatpush1.bf16.msra.mxu0 0
    %2509 = vmatprep.subr.bf16.mxu0 0
    %2510 = vmatpush1.bf16.msra.mxu0 0
    %2511 = vmatprep.mubr.bf16.mxu0 0
    %2512 = vmatmul.mubr.bf16.gmra.mrb[0].mxu0 %v2283
    %v2513 = vpop.f32.mrb[0].mxu0
    %v2514 = vadd.f32 0.0, %v2513
    %v2515 = vpop.f32.mrb[0].mxu0
    %v2516 = vadd.f32 0.0, %v2515
    %v2517 = vpop.f32.mrb[0].mxu0
    %v2518 = vpop.f32.mrb[0].mxu0
    %2519 = vdwg.mxu0
    %2520 = vmatprep.subr.bf16.mxu0 %v278
    %2521 = vmatpush1.bf16.msra.mxu0 %v277
    %2522 = vmatprep.subr.bf16.mxu0 %v282
    %2523 = vmatpush1.bf16.msra.mxu0 %v281
    %2524 = vmatprep.subr.bf16.mxu0 %v286
    %2525 = vmatpush1.bf16.msra.mxu0 %v285
    %2526 = vmatprep.subr.bf16.mxu0 %v290
    %2527 = vmatpush1.bf16.msra.mxu0 %v289
    %2528 = vmatprep.subr.bf16.mxu0 %v294
    %2529 = vmatpush1.bf16.msra.mxu0 %v293
    %2530 = vmatprep.subr.bf16.mxu0 %v298
    %2531 = vmatpush1.bf16.msra.mxu0 %v297
    %2532 = vmatprep.subr.bf16.mxu0 %v302
    %2533 = vmatpush1.bf16.msra.mxu0 %v301
    %2534 = vmatprep.subr.bf16.mxu0 %v306
    %2535 = vmatpush1.bf16.msra.mxu0 %v305
    %2536 = vmatprep.subr.bf16.mxu0 0
    %2537 = vmatpush1.bf16.msra.mxu0 0
    %2538 = vmatprep.subr.bf16.mxu0 0
    %2539 = vmatpush1.bf16.msra.mxu0 0
    %2540 = vmatprep.subr.bf16.mxu0 0
    %2541 = vmatpush1.bf16.msra.mxu0 0
    %2542 = vmatprep.subr.bf16.mxu0 0
    %2543 = vmatpush1.bf16.msra.mxu0 0
    %2544 = vmatprep.subr.bf16.mxu0 0
    %2545 = vmatpush1.bf16.msra.mxu0 0
    %2546 = vmatprep.subr.bf16.mxu0 0
    %2547 = vmatpush1.bf16.msra.mxu0 0
    %2548 = vmatprep.subr.bf16.mxu0 0
    %2549 = vmatpush1.bf16.msra.mxu0 0
    %2550 = vmatprep.subr.bf16.mxu0 0
    %2551 = vmatpush1.bf16.msra.mxu0 0
    %2552 = vmatprep.mubr.bf16.mxu0 0
    %2553 = vmatmul.mubr.bf16.gmra.mrb[0].mxu0 %v2283
    %v2554 = vpop.f32.mrb[0].mxu0
    %v2555 = vadd.f32 0.0, %v2554
    %v2556 = vpop.f32.mrb[0].mxu0
    %v2557 = vadd.f32 0.0, %v2556
    %v2558 = vpop.f32.mrb[0].mxu0
    %v2559 = vpop.f32.mrb[0].mxu0
    %2560 = vdwg.mxu0
    %2561 = vmatprep.subr.bf16.mxu0 %v518
    %2562 = vmatpush1.bf16.msra.mxu0 %v517
    %2563 = vmatprep.subr.bf16.mxu0 %v522
    %2564 = vmatpush1.bf16.msra.mxu0 %v521
    %2565 = vmatprep.subr.bf16.mxu0 %v526
    %2566 = vmatpush1.bf16.msra.mxu0 %v525
    %2567 = vmatprep.subr.bf16.mxu0 %v530
    %2568 = vmatpush1.bf16.msra.mxu0 %v529
    %2569 = vmatprep.subr.bf16.mxu0 %v534
    %2570 = vmatpush1.bf16.msra.mxu0 %v533
    %2571 = vmatprep.subr.bf16.mxu0 %v538
    %2572 = vmatpush1.bf16.msra.mxu0 %v537
    %2573 = vmatprep.subr.bf16.mxu0 %v542
    %2574 = vmatpush1.bf16.msra.mxu0 %v541
    %2575 = vmatprep.subr.bf16.mxu0 %v546
    %2576 = vmatpush1.bf16.msra.mxu0 %v545
    %2577 = vmatprep.subr.bf16.mxu0 0
    %2578 = vmatpush1.bf16.msra.mxu0 0
    %2579 = vmatprep.subr.bf16.mxu0 0
    %2580 = vmatpush1.bf16.msra.mxu0 0
    %2581 = vmatprep.subr.bf16.mxu0 0
    %2582 = vmatpush1.bf16.msra.mxu0 0
    %2583 = vmatprep.subr.bf16.mxu0 0
    %2584 = vmatpush1.bf16.msra.mxu0 0
    %2585 = vmatprep.subr.bf16.mxu0 0
    %2586 = vmatpush1.bf16.msra.mxu0 0
    %2587 = vmatprep.subr.bf16.mxu0 0
    %2588 = vmatpush1.bf16.msra.mxu0 0
    %2589 = vmatprep.subr.bf16.mxu0 0
    %2590 = vmatpush1.bf16.msra.mxu0 0
    %2591 = vmatprep.subr.bf16.mxu0 0
    %2592 = vmatpush1.bf16.msra.mxu0 0
    %2593 = vmatprep.mubr.bf16.mxu0 0
    %2594 = vmatmul.mubr.bf16.gmra.mrb[0].mxu0 %v2478
    %v2595 = vpop.f32.mrb[0].mxu0
    %v2596 = vadd.f32 %v2514, %v2595
    %v2597 = vpop.f32.mrb[0].mxu0
    %v2598 = vadd.f32 %v2516, %v2597
    %v2599 = vpop.f32.mrb[0].mxu0
    %v2600 = vpop.f32.mrb[0].mxu0
    %2601 = vdwg.mxu0
    %2602 = vmatprep.subr.bf16.mxu0 %v520
    %2603 = vmatpush1.bf16.msra.mxu0 %v519
    %2604 = vmatprep.subr.bf16.mxu0 %v524
    %2605 = vmatpush1.bf16.msra.mxu0 %v523
    %2606 = vmatprep.subr.bf16.mxu0 %v528
    %2607 = vmatpush1.bf16.msra.mxu0 %v527
    %2608 = vmatprep.subr.bf16.mxu0 %v532
    %2609 = vmatpush1.bf16.msra.mxu0 %v531
    %2610 = vmatprep.subr.bf16.mxu0 %v536
    %2611 = vmatpush1.bf16.msra.mxu0 %v535
    %2612 = vmatprep.subr.bf16.mxu0 %v540
    %2613 = vmatpush1.bf16.msra.mxu0 %v539
    %2614 = vmatprep.subr.bf16.mxu0 %v544
    %2615 = vmatpush1.bf16.msra.mxu0 %v543
    %2616 = vmatprep.subr.bf16.mxu0 %v548
    %2617 = vmatpush1.bf16.msra.mxu0 %v547
    %2618 = vmatprep.subr.bf16.mxu0 0
    %2619 = vmatpush1.bf16.msra.mxu0 0
    %2620 = vmatprep.subr.bf16.mxu0 0
    %2621 = vmatpush1.bf16.msra.mxu0 0
    %2622 = vmatprep.subr.bf16.mxu0 0
    %2623 = vmatpush1.bf16.msra.mxu0 0
    %2624 = vmatprep.subr.bf16.mxu0 0
    %2625 = vmatpush1.bf16.msra.mxu0 0
    %2626 = vmatprep.subr.bf16.mxu0 0
    %2627 = vmatpush1.bf16.msra.mxu0 0
    %2628 = vmatprep.subr.bf16.mxu0 0
    %2629 = vmatpush1.bf16.msra.mxu0 0
    %2630 = vmatprep.subr.bf16.mxu0 0
    %2631 = vmatpush1.bf16.msra.mxu0 0
    %2632 = vmatprep.subr.bf16.mxu0 0
    %2633 = vmatpush1.bf16.msra.mxu0 0
    %2634 = vmatprep.mubr.bf16.mxu0 0
    %2635 = vmatmul.mubr.bf16.gmra.mrb[0].mxu0 %v2478
    %v2636 = vpop.f32.mrb[0].mxu0
    %v2637 = vadd.f32 %v2555, %v2636
    %v2638 = vpop.f32.mrb[0].mxu0
    %v2639 = vadd.f32 %v2557, %v2638
    %v2640 = vpop.f32.mrb[0].mxu0
    %v2641 = vpop.f32.mrb[0].mxu0
    %2642 = vdwg.mxu0
    %v2643 = vadd.f32 %v2596, %v668
    %v2644 = vadd.f32 %v2598, %v672
    %v2645 = vadd.f32 %v2637, %v676
    %v2646 = vadd.f32 %v2639, %v680
    %v2647 = vxor.u32 %v2643, 2147483648
    %v2648 = vmul.f32 %v2647, 1.442695
    %v2649 = vpow.pop %v2648
    %v2650 = vadd.f32 %v2649, 1.0
    %v2651 = vrcp.pop %v2650
    %v2652 = vmul.f32 1.0, %v2651
    %v2653 = vxor.u32 %v2644, 2147483648
    %v2654 = vmul.f32 %v2653, 1.442695
    %v2655 = vpow.pop %v2654
    %v2656 = vadd.f32 %v2655, 1.0
    %v2657 = vrcp.pop %v2656
    %v2658 = vmul.f32 1.0, %v2657
    %v2659 = vtanh.pop %v2645
    %v2660 = vxor.u32 %v2646, 2147483648
    %v2661 = vmul.f32 %v2660, 1.442695
    %v2662 = vpow.pop %v2661
    %v2663 = vadd.f32 %v2662, 1.0
    %v2664 = vrcp.pop %v2663
    %v2665 = vmul.f32 1.0, %v2664
    %v2666 = vmul.f32 %v2658, %v2280
    %v2667 = vmul.f32 %v2652, %v2659
    %v2668 = vadd.f32 %v2666, %v2667
    %v2669 = vtanh.pop %v2668
    %v2670 = vmul.f32 %v2665, %v2669
    %v2671 = vpack.c.bf16 %v2670, %v2670
    %v2672 = vpack.c.bf16 %v2476, %v2476
    %2673 = vmatprep.subr.bf16.mxu0 %v876
    %2674 = vmatpush1.bf16.msra.mxu0 %v875
    %2675 = vmatprep.subr.bf16.mxu0 %v880
    %2676 = vmatpush1.bf16.msra.mxu0 %v879
    %2677 = vmatprep.subr.bf16.mxu0 %v884
    %2678 = vmatpush1.bf16.msra.mxu0 %v883
    %2679 = vmatprep.subr.bf16.mxu0 %v888
    %2680 = vmatpush1.bf16.msra.mxu0 %v887
    %2681 = vmatprep.subr.bf16.mxu0 %v892
    %2682 = vmatpush1.bf16.msra.mxu0 %v891
    %2683 = vmatprep.subr.bf16.mxu0 %v896
    %2684 = vmatpush1.bf16.msra.mxu0 %v895
    %2685 = vmatprep.subr.bf16.mxu0 %v900
    %2686 = vmatpush1.bf16.msra.mxu0 %v899
    %2687 = vmatprep.subr.bf16.mxu0 %v904
    %2688 = vmatpush1.bf16.msra.mxu0 %v903
    %2689 = vmatprep.subr.bf16.mxu0 0
    %2690 = vmatpush1.bf16.msra.mxu0 0
    %2691 = vmatprep.subr.bf16.mxu0 0
    %2692 = vmatpush1.bf16.msra.mxu0 0
    %2693 = vmatprep.subr.bf16.mxu0 0
    %2694 = vmatpush1.bf16.msra.mxu0 0
    %2695 = vmatprep.subr.bf16.mxu0 0
    %2696 = vmatpush1.bf16.msra.mxu0 0
    %2697 = vmatprep.subr.bf16.mxu0 0
    %2698 = vmatpush1.bf16.msra.mxu0 0
    %2699 = vmatprep.subr.bf16.mxu0 0
    %2700 = vmatpush1.bf16.msra.mxu0 0
    %2701 = vmatprep.subr.bf16.mxu0 0
    %2702 = vmatpush1.bf16.msra.mxu0 0
    %2703 = vmatprep.subr.bf16.mxu0 0
    %2704 = vmatpush1.bf16.msra.mxu0 0
    %2705 = vmatprep.mubr.bf16.mxu0 0
    %2706 = vmatmul.mubr.bf16.gmra.mrb[0].mxu0 %v2672
    %v2707 = vpop.f32.mrb[0].mxu0
    %v2708 = vadd.f32 0.0, %v2707
    %v2709 = vpop.f32.mrb[0].mxu0
    %v2710 = vadd.f32 0.0, %v2709
    %v2711 = vpop.f32.mrb[0].mxu0
    %v2712 = vpop.f32.mrb[0].mxu0
    %2713 = vdwg.mxu0
    %2714 = vmatprep.subr.bf16.mxu0 %v878
    %2715 = vmatpush1.bf16.msra.mxu0 %v877
    %2716 = vmatprep.subr.bf16.mxu0 %v882
    %2717 = vmatpush1.bf16.msra.mxu0 %v881
    %2718 = vmatprep.subr.bf16.mxu0 %v886
    %2719 = vmatpush1.bf16.msra.mxu0 %v885
    %2720 = vmatprep.subr.bf16.mxu0 %v890
    %2721 = vmatpush1.bf16.msra.mxu0 %v889
    %2722 = vmatprep.subr.bf16.mxu0 %v894
    %2723 = vmatpush1.bf16.msra.mxu0 %v893
    %2724 = vmatprep.subr.bf16.mxu0 %v898
    %2725 = vmatpush1.bf16.msra.mxu0 %v897
    %2726 = vmatprep.subr.bf16.mxu0 %v902
    %2727 = vmatpush1.bf16.msra.mxu0 %v901
    %2728 = vmatprep.subr.bf16.mxu0 %v906
    %2729 = vmatpush1.bf16.msra.mxu0 %v905
    %2730 = vmatprep.subr.bf16.mxu0 0
    %2731 = vmatpush1.bf16.msra.mxu0 0
    %2732 = vmatprep.subr.bf16.mxu0 0
    %2733 = vmatpush1.bf16.msra.mxu0 0
    %2734 = vmatprep.subr.bf16.mxu0 0
    %2735 = vmatpush1.bf16.msra.mxu0 0
    %2736 = vmatprep.subr.bf16.mxu0 0
    %2737 = vmatpush1.bf16.msra.mxu0 0
    %2738 = vmatprep.subr.bf16.mxu0 0
    %2739 = vmatpush1.bf16.msra.mxu0 0
    %2740 = vmatprep.subr.bf16.mxu0 0
    %2741 = vmatpush1.bf16.msra.mxu0 0
    %2742 = vmatprep.subr.bf16.mxu0 0
    %2743 = vmatpush1.bf16.msra.mxu0 0
    %2744 = vmatprep.subr.bf16.mxu0 0
    %2745 = vmatpush1.bf16.msra.mxu0 0
    %2746 = vmatprep.mubr.bf16.mxu0 0
    %2747 = vmatmul.mubr.bf16.gmra.mrb[0].mxu0 %v2672
    %v2748 = vpop.f32.mrb[0].mxu0
    %v2749 = vadd.f32 0.0, %v2748
    %v2750 = vpop.f32.mrb[0].mxu0
    %v2751 = vadd.f32 0.0, %v2750
    %v2752 = vpop.f32.mrb[0].mxu0
    %v2753 = vpop.f32.mrb[0].mxu0
    %2754 = vdwg.mxu0
    %2755 = vmatprep.subr.bf16.mxu0 %v1118
    %2756 = vmatpush1.bf16.msra.mxu0 %v1117
    %2757 = vmatprep.subr.bf16.mxu0 %v1122
    %2758 = vmatpush1.bf16.msra.mxu0 %v1121
    %2759 = vmatprep.subr.bf16.mxu0 %v1126
    %2760 = vmatpush1.bf16.msra.mxu0 %v1125
    %2761 = vmatprep.subr.bf16.mxu0 %v1130
    %2762 = vmatpush1.bf16.msra.mxu0 %v1129
    %2763 = vmatprep.subr.bf16.mxu0 %v1134
    %2764 = vmatpush1.bf16.msra.mxu0 %v1133
    %2765 = vmatprep.subr.bf16.mxu0 %v1138
    %2766 = vmatpush1.bf16.msra.mxu0 %v1137
    %2767 = vmatprep.subr.bf16.mxu0 %v1142
    %2768 = vmatpush1.bf16.msra.mxu0 %v1141
    %2769 = vmatprep.subr.bf16.mxu0 %v1146
    %2770 = vmatpush1.bf16.msra.mxu0 %v1145
    %2771 = vmatprep.subr.bf16.mxu0 0
    %2772 = vmatpush1.bf16.msra.mxu0 0
    %2773 = vmatprep.subr.bf16.mxu0 0
    %2774 = vmatpush1.bf16.msra.mxu0 0
    %2775 = vmatprep.subr.bf16.mxu0 0
    %2776 = vmatpush1.bf16.msra.mxu0 0
    %2777 = vmatprep.subr.bf16.mxu0 0
    %2778 = vmatpush1.bf16.msra.mxu0 0
    %2779 = vmatprep.subr.bf16.mxu0 0
    %2780 = vmatpush1.bf16.msra.mxu0 0
    %2781 = vmatprep.subr.bf16.mxu0 0
    %2782 = vmatpush1.bf16.msra.mxu0 0
    %2783 = vmatprep.subr.bf16.mxu0 0
    %2784 = vmatpush1.bf16.msra.mxu0 0
    %2785 = vmatprep.subr.bf16.mxu0 0
    %2786 = vmatpush1.bf16.msra.mxu0 0
    %2787 = vmatprep.mubr.bf16.mxu0 0
    %2788 = vmatmul.mubr.bf16.gmra.mrb[0].mxu0 %v2671
    %v2789 = vpop.f32.mrb[0].mxu0
    %v2790 = vadd.f32 %v2708, %v2789
    %v2791 = vpop.f32.mrb[0].mxu0
    %v2792 = vadd.f32 %v2710, %v2791
    %v2793 = vpop.f32.mrb[0].mxu0
    %v2794 = vpop.f32.mrb[0].mxu0
    %2795 = vdwg.mxu0
    %2796 = vmatprep.subr.bf16.mxu0 %v1120
    %2797 = vmatpush1.bf16.msra.mxu0 %v1119
    %2798 = vmatprep.subr.bf16.mxu0 %v1124
    %2799 = vmatpush1.bf16.msra.mxu0 %v1123
    %2800 = vmatprep.subr.bf16.mxu0 %v1128
    %2801 = vmatpush1.bf16.msra.mxu0 %v1127
    %2802 = vmatprep.subr.bf16.mxu0 %v1132
    %2803 = vmatpush1.bf16.msra.mxu0 %v1131
    %2804 = vmatprep.subr.bf16.mxu0 %v1136
    %2805 = vmatpush1.bf16.msra.mxu0 %v1135
    %2806 = vmatprep.subr.bf16.mxu0 %v1140
    %2807 = vmatpush1.bf16.msra.mxu0 %v1139
    %2808 = vmatprep.subr.bf16.mxu0 %v1144
    %2809 = vmatpush1.bf16.msra.mxu0 %v1143
    %2810 = vmatprep.subr.bf16.mxu0 %v1148
    %2811 = vmatpush1.bf16.msra.mxu0 %v1147
    %2812 = vmatprep.subr.bf16.mxu0 0
    %2813 = vmatpush1.bf16.msra.mxu0 0
    %2814 = vmatprep.subr.bf16.mxu0 0
    %2815 = vmatpush1.bf16.msra.mxu0 0
    %2816 = vmatprep.subr.bf16.mxu0 0
    %2817 = vmatpush1.bf16.msra.mxu0 0
    %2818 = vmatprep.subr.bf16.mxu0 0
    %2819 = vmatpush1.bf16.msra.mxu0 0
    %2820 = vmatprep.subr.bf16.mxu0 0
    %2821 = vmatpush1.bf16.msra.mxu0 0
    %2822 = vmatprep.subr.bf16.mxu0 0
    %2823 = vmatpush1.bf16.msra.mxu0 0
    %2824 = vmatprep.subr.bf16.mxu0 0
    %2825 = vmatpush1.bf16.msra.mxu0 0
    %2826 = vmatprep.subr.bf16.mxu0 0
    %2827 = vmatpush1.bf16.msra.mxu0 0
    %2828 = vmatprep.mubr.bf16.mxu0 0
    %2829 = vmatmul.mubr.bf16.gmra.mrb[0].mxu0 %v2671
    %v2830 = vpop.f32.mrb[0].mxu0
    %v2831 = vadd.f32 %v2749, %v2830
    %v2832 = vpop.f32.mrb[0].mxu0
    %v2833 = vadd.f32 %v2751, %v2832
    %v2834 = vpop.f32.mrb[0].mxu0
    %v2835 = vpop.f32.mrb[0].mxu0
    %2836 = vdwg.mxu0
    %v2837 = vadd.f32 %v2790, %v1268
    %v2838 = vadd.f32 %v2792, %v1272
    %v2839 = vadd.f32 %v2831, %v1276
    %v2840 = vadd.f32 %v2833, %v1280
    %v2841 = vxor.u32 %v2837, 2147483648
    %v2842 = vmul.f32 %v2841, 1.442695
    %v2843 = vpow.pop %v2842
    %v2844 = vadd.f32 %v2843, 1.0
    %v2845 = vrcp.pop %v2844
    %v2846 = vmul.f32 1.0, %v2845
    %v2847 = vxor.u32 %v2838, 2147483648
    %v2848 = vmul.f32 %v2847, 1.442695
    %v2849 = vpow.pop %v2848
    %v2850 = vadd.f32 %v2849, 1.0
    %v2851 = vrcp.pop %v2850
    %v2852 = vmul.f32 1.0, %v2851
    %v2853 = vtanh.pop %v2839
    %v2854 = vxor.u32 %v2840, 2147483648
    %v2855 = vmul.f32 %v2854, 1.442695
    %v2856 = vpow.pop %v2855
    %v2857 = vadd.f32 %v2856, 1.0
    %v2858 = vrcp.pop %v2857
    %v2859 = vmul.f32 1.0, %v2858
    %v2860 = vmul.f32 %v2852, %v2474
    %v2861 = vmul.f32 %v2846, %v2853
    %v2862 = vadd.f32 %v2860, %v2861
    %v2863 = vtanh.pop %v2862
    %v2864 = vmul.f32 %v2859, %v2863
    %s2865 = scalar_lea.vmem [#allocation2], 20
    %v2866 = vld [vmem:[%s2865] sm:$0xf]
    %2867 = vmatprep.subr.bf16.mxu0 %v276
    %2868 = vmatpush1.bf16.msra.mxu0 %v275
    %2869 = vmatprep.subr.bf16.mxu0 %v280
    %2870 = vmatpush1.bf16.msra.mxu0 %v279
    %2871 = vmatprep.subr.bf16.mxu0 %v284
    %2872 = vmatpush1.bf16.msra.mxu0 %v283
    %2873 = vmatprep.subr.bf16.mxu0 %v288
    %2874 = vmatpush1.bf16.msra.mxu0 %v287
    %2875 = vmatprep.subr.bf16.mxu0 %v292
    %2876 = vmatpush1.bf16.msra.mxu0 %v291
    %2877 = vmatprep.subr.bf16.mxu0 %v296
    %2878 = vmatpush1.bf16.msra.mxu0 %v295
    %2879 = vmatprep.subr.bf16.mxu0 %v300
    %2880 = vmatpush1.bf16.msra.mxu0 %v299
    %2881 = vmatprep.subr.bf16.mxu0 %v304
    %2882 = vmatpush1.bf16.msra.mxu0 %v303
    %2883 = vmatprep.subr.bf16.mxu0 0
    %2884 = vmatpush1.bf16.msra.mxu0 0
    %2885 = vmatprep.subr.bf16.mxu0 0
    %2886 = vmatpush1.bf16.msra.mxu0 0
    %2887 = vmatprep.subr.bf16.mxu0 0
    %2888 = vmatpush1.bf16.msra.mxu0 0
    %2889 = vmatprep.subr.bf16.mxu0 0
    %2890 = vmatpush1.bf16.msra.mxu0 0
    %2891 = vmatprep.subr.bf16.mxu0 0
    %2892 = vmatpush1.bf16.msra.mxu0 0
    %2893 = vmatprep.subr.bf16.mxu0 0
    %2894 = vmatpush1.bf16.msra.mxu0 0
    %2895 = vmatprep.subr.bf16.mxu0 0
    %2896 = vmatpush1.bf16.msra.mxu0 0
    %2897 = vmatprep.subr.bf16.mxu0 0
    %2898 = vmatpush1.bf16.msra.mxu0 0
    %2899 = vmatprep.mubr.bf16.mxu0 0
    %2900 = vmatmul.mubr.bf16.gmra.mrb[0].mxu0 %v2671
    %v2901 = vpop.f32.mrb[0].mxu0
    %v2902 = vadd.f32 0.0, %v2901
    %v2903 = vpop.f32.mrb[0].mxu0
    %v2904 = vadd.f32 0.0, %v2903
    %v2905 = vpop.f32.mrb[0].mxu0
    %v2906 = vpop.f32.mrb[0].mxu0
    %2907 = vdwg.mxu0
    %2908 = vmatprep.subr.bf16.mxu0 %v278
    %2909 = vmatpush1.bf16.msra.mxu0 %v277
    %2910 = vmatprep.subr.bf16.mxu0 %v282
    %2911 = vmatpush1.bf16.msra.mxu0 %v281
    %2912 = vmatprep.subr.bf16.mxu0 %v286
    %2913 = vmatpush1.bf16.msra.mxu0 %v285
    %2914 = vmatprep.subr.bf16.mxu0 %v290
    %2915 = vmatpush1.bf16.msra.mxu0 %v289
    %2916 = vmatprep.subr.bf16.mxu0 %v294
    %2917 = vmatpush1.bf16.msra.mxu0 %v293
    %2918 = vmatprep.subr.bf16.mxu0 %v298
    %2919 = vmatpush1.bf16.msra.mxu0 %v297
    %2920 = vmatprep.subr.bf16.mxu0 %v302
    %2921 = vmatpush1.bf16.msra.mxu0 %v301
    %2922 = vmatprep.subr.bf16.mxu0 %v306
    %2923 = vmatpush1.bf16.msra.mxu0 %v305
    %2924 = vmatprep.subr.bf16.mxu0 0
    %2925 = vmatpush1.bf16.msra.mxu0 0
    %2926 = vmatprep.subr.bf16.mxu0 0
    %2927 = vmatpush1.bf16.msra.mxu0 0
    %2928 = vmatprep.subr.bf16.mxu0 0
    %2929 = vmatpush1.bf16.msra.mxu0 0
    %2930 = vmatprep.subr.bf16.mxu0 0
    %2931 = vmatpush1.bf16.msra.mxu0 0
    %2932 = vmatprep.subr.bf16.mxu0 0
    %2933 = vmatpush1.bf16.msra.mxu0 0
    %2934 = vmatprep.subr.bf16.mxu0 0
    %2935 = vmatpush1.bf16.msra.mxu0 0
    %2936 = vmatprep.subr.bf16.mxu0 0
    %2937 = vmatpush1.bf16.msra.mxu0 0
    %2938 = vmatprep.subr.bf16.mxu0 0
    %2939 = vmatpush1.bf16.msra.mxu0 0
    %2940 = vmatprep.mubr.bf16.mxu0 0
    %2941 = vmatmul.mubr.bf16.gmra.mrb[0].mxu0 %v2671
    %v2942 = vpop.f32.mrb[0].mxu0
    %v2943 = vadd.f32 0.0, %v2942
    %v2944 = vpop.f32.mrb[0].mxu0
    %v2945 = vadd.f32 0.0, %v2944
    %v2946 = vpop.f32.mrb[0].mxu0
    %v2947 = vpop.f32.mrb[0].mxu0
    %2948 = vdwg.mxu0
    %2949 = vmatprep.subr.bf16.mxu0 %v518
    %2950 = vmatpush1.bf16.msra.mxu0 %v517
    %2951 = vmatprep.subr.bf16.mxu0 %v522
    %2952 = vmatpush1.bf16.msra.mxu0 %v521
    %2953 = vmatprep.subr.bf16.mxu0 %v526
    %2954 = vmatpush1.bf16.msra.mxu0 %v525
    %2955 = vmatprep.subr.bf16.mxu0 %v530
    %2956 = vmatpush1.bf16.msra.mxu0 %v529
    %2957 = vmatprep.subr.bf16.mxu0 %v534
    %2958 = vmatpush1.bf16.msra.mxu0 %v533
    %2959 = vmatprep.subr.bf16.mxu0 %v538
    %2960 = vmatpush1.bf16.msra.mxu0 %v537
    %2961 = vmatprep.subr.bf16.mxu0 %v542
    %2962 = vmatpush1.bf16.msra.mxu0 %v541
    %2963 = vmatprep.subr.bf16.mxu0 %v546
    %2964 = vmatpush1.bf16.msra.mxu0 %v545
    %2965 = vmatprep.subr.bf16.mxu0 0
    %2966 = vmatpush1.bf16.msra.mxu0 0
    %2967 = vmatprep.subr.bf16.mxu0 0
    %2968 = vmatpush1.bf16.msra.mxu0 0
    %2969 = vmatprep.subr.bf16.mxu0 0
    %2970 = vmatpush1.bf16.msra.mxu0 0
    %2971 = vmatprep.subr.bf16.mxu0 0
    %2972 = vmatpush1.bf16.msra.mxu0 0
    %2973 = vmatprep.subr.bf16.mxu0 0
    %2974 = vmatpush1.bf16.msra.mxu0 0
    %2975 = vmatprep.subr.bf16.mxu0 0
    %2976 = vmatpush1.bf16.msra.mxu0 0
    %2977 = vmatprep.subr.bf16.mxu0 0
    %2978 = vmatpush1.bf16.msra.mxu0 0
    %2979 = vmatprep.subr.bf16.mxu0 0
    %2980 = vmatpush1.bf16.msra.mxu0 0
    %2981 = vmatprep.mubr.bf16.mxu0 0
    %2982 = vmatmul.mubr.bf16.gmra.mrb[0].mxu0 %v2866
    %v2983 = vpop.f32.mrb[0].mxu0
    %v2984 = vadd.f32 %v2902, %v2983
    %v2985 = vpop.f32.mrb[0].mxu0
    %v2986 = vadd.f32 %v2904, %v2985
    %v2987 = vpop.f32.mrb[0].mxu0
    %v2988 = vpop.f32.mrb[0].mxu0
    %2989 = vdwg.mxu0
    %2990 = vmatprep.subr.bf16.mxu0 %v520
    %2991 = vmatpush1.bf16.msra.mxu0 %v519
    %2992 = vmatprep.subr.bf16.mxu0 %v524
    %2993 = vmatpush1.bf16.msra.mxu0 %v523
    %2994 = vmatprep.subr.bf16.mxu0 %v528
    %2995 = vmatpush1.bf16.msra.mxu0 %v527
    %2996 = vmatprep.subr.bf16.mxu0 %v532
    %2997 = vmatpush1.bf16.msra.mxu0 %v531
    %2998 = vmatprep.subr.bf16.mxu0 %v536
    %2999 = vmatpush1.bf16.msra.mxu0 %v535
    %3000 = vmatprep.subr.bf16.mxu0 %v540
    %3001 = vmatpush1.bf16.msra.mxu0 %v539
    %3002 = vmatprep.subr.bf16.mxu0 %v544
    %3003 = vmatpush1.bf16.msra.mxu0 %v543
    %3004 = vmatprep.subr.bf16.mxu0 %v548
    %3005 = vmatpush1.bf16.msra.mxu0 %v547
    %3006 = vmatprep.subr.bf16.mxu0 0
    %3007 = vmatpush1.bf16.msra.mxu0 0
    %3008 = vmatprep.subr.bf16.mxu0 0
    %3009 = vmatpush1.bf16.msra.mxu0 0
    %3010 = vmatprep.subr.bf16.mxu0 0
    %3011 = vmatpush1.bf16.msra.mxu0 0
    %3012 = vmatprep.subr.bf16.mxu0 0
    %3013 = vmatpush1.bf16.msra.mxu0 0
    %3014 = vmatprep.subr.bf16.mxu0 0
    %3015 = vmatpush1.bf16.msra.mxu0 0
    %3016 = vmatprep.subr.bf16.mxu0 0
    %3017 = vmatpush1.bf16.msra.mxu0 0
    %3018 = vmatprep.subr.bf16.mxu0 0
    %3019 = vmatpush1.bf16.msra.mxu0 0
    %3020 = vmatprep.subr.bf16.mxu0 0
    %3021 = vmatpush1.bf16.msra.mxu0 0
    %3022 = vmatprep.mubr.bf16.mxu0 0
    %3023 = vmatmul.mubr.bf16.gmra.mrb[0].mxu0 %v2866
    %v3024 = vpop.f32.mrb[0].mxu0
    %v3025 = vadd.f32 %v2943, %v3024
    %v3026 = vpop.f32.mrb[0].mxu0
    %v3027 = vadd.f32 %v2945, %v3026
    %v3028 = vpop.f32.mrb[0].mxu0
    %v3029 = vpop.f32.mrb[0].mxu0
    %3030 = vdwg.mxu0
    %v3031 = vadd.f32 %v2984, %v668
    %v3032 = vadd.f32 %v2986, %v672
    %v3033 = vadd.f32 %v3025, %v676
    %v3034 = vadd.f32 %v3027, %v680
    %v3035 = vxor.u32 %v3031, 2147483648
    %v3036 = vmul.f32 %v3035, 1.442695
    %v3037 = vpow.pop %v3036
    %v3038 = vadd.f32 %v3037, 1.0
    %v3039 = vrcp.pop %v3038
    %v3040 = vmul.f32 1.0, %v3039
    %v3041 = vxor.u32 %v3032, 2147483648
    %v3042 = vmul.f32 %v3041, 1.442695
    %v3043 = vpow.pop %v3042
    %v3044 = vadd.f32 %v3043, 1.0
    %v3045 = vrcp.pop %v3044
    %v3046 = vmul.f32 1.0, %v3045
    %v3047 = vtanh.pop %v3033
    %v3048 = vxor.u32 %v3034, 2147483648
    %v3049 = vmul.f32 %v3048, 1.442695
    %v3050 = vpow.pop %v3049
    %v3051 = vadd.f32 %v3050, 1.0
    %v3052 = vrcp.pop %v3051
    %v3053 = vmul.f32 1.0, %v3052
    %v3054 = vmul.f32 %v3046, %v2668
    %v3055 = vmul.f32 %v3040, %v3047
    %v3056 = vadd.f32 %v3054, %v3055
    %v3057 = vtanh.pop %v3056
    %v3058 = vmul.f32 %v3053, %v3057
    %v3059 = vpack.c.bf16 %v3058, %v3058
    %v3060 = vpack.c.bf16 %v2864, %v2864
    %3061 = vmatprep.subr.bf16.mxu0 %v876
    %3062 = vmatpush1.bf16.msra.mxu0 %v875
    %3063 = vmatprep.subr.bf16.mxu0 %v880
    %3064 = vmatpush1.bf16.msra.mxu0 %v879
    %3065 = vmatprep.subr.bf16.mxu0 %v884
    %3066 = vmatpush1.bf16.msra.mxu0 %v883
    %3067 = vmatprep.subr.bf16.mxu0 %v888
    %3068 = vmatpush1.bf16.msra.mxu0 %v887
    %3069 = vmatprep.subr.bf16.mxu0 %v892
    %3070 = vmatpush1.bf16.msra.mxu0 %v891
    %3071 = vmatprep.subr.bf16.mxu0 %v896
    %3072 = vmatpush1.bf16.msra.mxu0 %v895
    %3073 = vmatprep.subr.bf16.mxu0 %v900
    %3074 = vmatpush1.bf16.msra.mxu0 %v899
    %3075 = vmatprep.subr.bf16.mxu0 %v904
    %3076 = vmatpush1.bf16.msra.mxu0 %v903
    %3077 = vmatprep.subr.bf16.mxu0 0
    %3078 = vmatpush1.bf16.msra.mxu0 0
    %3079 = vmatprep.subr.bf16.mxu0 0
    %3080 = vmatpush1.bf16.msra.mxu0 0
    %3081 = vmatprep.subr.bf16.mxu0 0
    %3082 = vmatpush1.bf16.msra.mxu0 0
    %3083 = vmatprep.subr.bf16.mxu0 0
    %3084 = vmatpush1.bf16.msra.mxu0 0
    %3085 = vmatprep.subr.bf16.mxu0 0
    %3086 = vmatpush1.bf16.msra.mxu0 0
    %3087 = vmatprep.subr.bf16.mxu0 0
    %3088 = vmatpush1.bf16.msra.mxu0 0
    %3089 = vmatprep.subr.bf16.mxu0 0
    %3090 = vmatpush1.bf16.msra.mxu0 0
    %3091 = vmatprep.subr.bf16.mxu0 0
    %3092 = vmatpush1.bf16.msra.mxu0 0
    %3093 = vmatprep.mubr.bf16.mxu0 0
    %3094 = vmatmul.mubr.bf16.gmra.mrb[0].mxu0 %v3060
    %v3095 = vpop.f32.mrb[0].mxu0
    %v3096 = vadd.f32 0.0, %v3095
    %v3097 = vpop.f32.mrb[0].mxu0
    %v3098 = vadd.f32 0.0, %v3097
    %v3099 = vpop.f32.mrb[0].mxu0
    %v3100 = vpop.f32.mrb[0].mxu0
    %3101 = vdwg.mxu0
    %3102 = vmatprep.subr.bf16.mxu0 %v878
    %3103 = vmatpush1.bf16.msra.mxu0 %v877
    %3104 = vmatprep.subr.bf16.mxu0 %v882
    %3105 = vmatpush1.bf16.msra.mxu0 %v881
    %3106 = vmatprep.subr.bf16.mxu0 %v886
    %3107 = vmatpush1.bf16.msra.mxu0 %v885
    %3108 = vmatprep.subr.bf16.mxu0 %v890
    %3109 = vmatpush1.bf16.msra.mxu0 %v889
    %3110 = vmatprep.subr.bf16.mxu0 %v894
    %3111 = vmatpush1.bf16.msra.mxu0 %v893
    %3112 = vmatprep.subr.bf16.mxu0 %v898
    %3113 = vmatpush1.bf16.msra.mxu0 %v897
    %3114 = vmatprep.subr.bf16.mxu0 %v902
    %3115 = vmatpush1.bf16.msra.mxu0 %v901
    %3116 = vmatprep.subr.bf16.mxu0 %v906
    %3117 = vmatpush1.bf16.msra.mxu0 %v905
    %3118 = vmatprep.subr.bf16.mxu0 0
    %3119 = vmatpush1.bf16.msra.mxu0 0
    %3120 = vmatprep.subr.bf16.mxu0 0
    %3121 = vmatpush1.bf16.msra.mxu0 0
    %3122 = vmatprep.subr.bf16.mxu0 0
    %3123 = vmatpush1.bf16.msra.mxu0 0
    %3124 = vmatprep.subr.bf16.mxu0 0
    %3125 = vmatpush1.bf16.msra.mxu0 0
    %3126 = vmatprep.subr.bf16.mxu0 0
    %3127 = vmatpush1.bf16.msra.mxu0 0
    %3128 = vmatprep.subr.bf16.mxu0 0
    %3129 = vmatpush1.bf16.msra.mxu0 0
    %3130 = vmatprep.subr.bf16.mxu0 0
    %3131 = vmatpush1.bf16.msra.mxu0 0
    %3132 = vmatprep.subr.bf16.mxu0 0
    %3133 = vmatpush1.bf16.msra.mxu0 0
    %3134 = vmatprep.mubr.bf16.mxu0 0
    %3135 = vmatmul.mubr.bf16.gmra.mrb[0].mxu0 %v3060
    %v3136 = vpop.f32.mrb[0].mxu0
    %v3137 = vadd.f32 0.0, %v3136
    %v3138 = vpop.f32.mrb[0].mxu0
    %v3139 = vadd.f32 0.0, %v3138
    %v3140 = vpop.f32.mrb[0].mxu0
    %v3141 = vpop.f32.mrb[0].mxu0
    %3142 = vdwg.mxu0
    %3143 = vmatprep.subr.bf16.mxu0 %v1118
    %3144 = vmatpush1.bf16.msra.mxu0 %v1117
    %3145 = vmatprep.subr.bf16.mxu0 %v1122
    %3146 = vmatpush1.bf16.msra.mxu0 %v1121
    %3147 = vmatprep.subr.bf16.mxu0 %v1126
    %3148 = vmatpush1.bf16.msra.mxu0 %v1125
    %3149 = vmatprep.subr.bf16.mxu0 %v1130
    %3150 = vmatpush1.bf16.msra.mxu0 %v1129
    %3151 = vmatprep.subr.bf16.mxu0 %v1134
    %3152 = vmatpush1.bf16.msra.mxu0 %v1133
    %3153 = vmatprep.subr.bf16.mxu0 %v1138
    %3154 = vmatpush1.bf16.msra.mxu0 %v1137
    %3155 = vmatprep.subr.bf16.mxu0 %v1142
    %3156 = vmatpush1.bf16.msra.mxu0 %v1141
    %3157 = vmatprep.subr.bf16.mxu0 %v1146
    %3158 = vmatpush1.bf16.msra.mxu0 %v1145
    %3159 = vmatprep.subr.bf16.mxu0 0
    %3160 = vmatpush1.bf16.msra.mxu0 0
    %3161 = vmatprep.subr.bf16.mxu0 0
    %3162 = vmatpush1.bf16.msra.mxu0 0
    %3163 = vmatprep.subr.bf16.mxu0 0
    %3164 = vmatpush1.bf16.msra.mxu0 0
    %3165 = vmatprep.subr.bf16.mxu0 0
    %3166 = vmatpush1.bf16.msra.mxu0 0
    %3167 = vmatprep.subr.bf16.mxu0 0
    %3168 = vmatpush1.bf16.msra.mxu0 0
    %3169 = vmatprep.subr.bf16.mxu0 0
    %3170 = vmatpush1.bf16.msra.mxu0 0
    %3171 = vmatprep.subr.bf16.mxu0 0
    %3172 = vmatpush1.bf16.msra.mxu0 0
    %3173 = vmatprep.subr.bf16.mxu0 0
    %3174 = vmatpush1.bf16.msra.mxu0 0
    %3175 = vmatprep.mubr.bf16.mxu0 0
    %3176 = vmatmul.mubr.bf16.gmra.mrb[0].mxu0 %v3059
    %v3177 = vpop.f32.mrb[0].mxu0
    %v3178 = vadd.f32 %v3096, %v3177
    %v3179 = vpop.f32.mrb[0].mxu0
    %v3180 = vadd.f32 %v3098, %v3179
    %v3181 = vpop.f32.mrb[0].mxu0
    %v3182 = vpop.f32.mrb[0].mxu0
    %3183 = vdwg.mxu0
    %3184 = vmatprep.subr.bf16.mxu0 %v1120
    %3185 = vmatpush1.bf16.msra.mxu0 %v1119
    %3186 = vmatprep.subr.bf16.mxu0 %v1124
    %3187 = vmatpush1.bf16.msra.mxu0 %v1123
    %3188 = vmatprep.subr.bf16.mxu0 %v1128
    %3189 = vmatpush1.bf16.msra.mxu0 %v1127
    %3190 = vmatprep.subr.bf16.mxu0 %v1132
    %3191 = vmatpush1.bf16.msra.mxu0 %v1131
    %3192 = vmatprep.subr.bf16.mxu0 %v1136
    %3193 = vmatpush1.bf16.msra.mxu0 %v1135
    %3194 = vmatprep.subr.bf16.mxu0 %v1140
    %3195 = vmatpush1.bf16.msra.mxu0 %v1139
    %3196 = vmatprep.subr.bf16.mxu0 %v1144
    %3197 = vmatpush1.bf16.msra.mxu0 %v1143
    %3198 = vmatprep.subr.bf16.mxu0 %v1148
    %3199 = vmatpush1.bf16.msra.mxu0 %v1147
    %3200 = vmatprep.subr.bf16.mxu0 0
    %3201 = vmatpush1.bf16.msra.mxu0 0
    %3202 = vmatprep.subr.bf16.mxu0 0
    %3203 = vmatpush1.bf16.msra.mxu0 0
    %3204 = vmatprep.subr.bf16.mxu0 0
    %3205 = vmatpush1.bf16.msra.mxu0 0
    %3206 = vmatprep.subr.bf16.mxu0 0
    %3207 = vmatpush1.bf16.msra.mxu0 0
    %3208 = vmatprep.subr.bf16.mxu0 0
    %3209 = vmatpush1.bf16.msra.mxu0 0
    %3210 = vmatprep.subr.bf16.mxu0 0
    %3211 = vmatpush1.bf16.msra.mxu0 0
    %3212 = vmatprep.subr.bf16.mxu0 0
    %3213 = vmatpush1.bf16.msra.mxu0 0
    %3214 = vmatprep.subr.bf16.mxu0 0
    %3215 = vmatpush1.bf16.msra.mxu0 0
    %3216 = vmatprep.mubr.bf16.mxu0 0
    %3217 = vmatmul.mubr.bf16.gmra.mrb[0].mxu0 %v3059
    %v3218 = vpop.f32.mrb[0].mxu0
    %v3219 = vadd.f32 %v3137, %v3218
    %v3220 = vpop.f32.mrb[0].mxu0
    %v3221 = vadd.f32 %v3139, %v3220
    %v3222 = vpop.f32.mrb[0].mxu0
    %v3223 = vpop.f32.mrb[0].mxu0
    %3224 = vdwg.mxu0
    %v3225 = vadd.f32 %v3178, %v1268
    %v3226 = vadd.f32 %v3180, %v1272
    %v3227 = vadd.f32 %v3219, %v1276
    %v3228 = vadd.f32 %v3221, %v1280
    %v3229 = vxor.u32 %v3225, 2147483648
    %v3230 = vmul.f32 %v3229, 1.442695
    %v3231 = vpow.pop %v3230
    %v3232 = vadd.f32 %v3231, 1.0
    %v3233 = vrcp.pop %v3232
    %v3234 = vmul.f32 1.0, %v3233
    %v3235 = vxor.u32 %v3226, 2147483648
    %v3236 = vmul.f32 %v3235, 1.442695
    %v3237 = vpow.pop %v3236
    %v3238 = vadd.f32 %v3237, 1.0
    %v3239 = vrcp.pop %v3238
    %v3240 = vmul.f32 1.0, %v3239
    %v3241 = vtanh.pop %v3227
    %v3242 = vxor.u32 %v3228, 2147483648
    %v3243 = vmul.f32 %v3242, 1.442695
    %v3244 = vpow.pop %v3243
    %v3245 = vadd.f32 %v3244, 1.0
    %v3246 = vrcp.pop %v3245
    %v3247 = vmul.f32 1.0, %v3246
    %v3248 = vmul.f32 %v3240, %v2862
    %v3249 = vmul.f32 %v3234, %v3241
    %v3250 = vadd.f32 %v3248, %v3249
    %v3251 = vtanh.pop %v3250
    %v3252 = vmul.f32 %v3247, %v3251
    %s3253 = scalar_lea.vmem [#allocation2], 24
    %v3254 = vld [vmem:[%s3253] sm:$0xf]
    %3255 = vmatprep.subr.bf16.mxu0 %v276
    %3256 = vmatpush1.bf16.msra.mxu0 %v275
    %3257 = vmatprep.subr.bf16.mxu0 %v280
    %3258 = vmatpush1.bf16.msra.mxu0 %v279
    %3259 = vmatprep.subr.bf16.mxu0 %v284
    %3260 = vmatpush1.bf16.msra.mxu0 %v283
    %3261 = vmatprep.subr.bf16.mxu0 %v288
    %3262 = vmatpush1.bf16.msra.mxu0 %v287
    %3263 = vmatprep.subr.bf16.mxu0 %v292
    %3264 = vmatpush1.bf16.msra.mxu0 %v291
    %3265 = vmatprep.subr.bf16.mxu0 %v296
    %3266 = vmatpush1.bf16.msra.mxu0 %v295
    %3267 = vmatprep.subr.bf16.mxu0 %v300
    %3268 = vmatpush1.bf16.msra.mxu0 %v299
    %3269 = vmatprep.subr.bf16.mxu0 %v304
    %3270 = vmatpush1.bf16.msra.mxu0 %v303
    %3271 = vmatprep.subr.bf16.mxu0 0
    %3272 = vmatpush1.bf16.msra.mxu0 0
    %3273 = vmatprep.subr.bf16.mxu0 0
    %3274 = vmatpush1.bf16.msra.mxu0 0
    %3275 = vmatprep.subr.bf16.mxu0 0
    %3276 = vmatpush1.bf16.msra.mxu0 0
    %3277 = vmatprep.subr.bf16.mxu0 0
    %3278 = vmatpush1.bf16.msra.mxu0 0
    %3279 = vmatprep.subr.bf16.mxu0 0
    %3280 = vmatpush1.bf16.msra.mxu0 0
    %3281 = vmatprep.subr.bf16.mxu0 0
    %3282 = vmatpush1.bf16.msra.mxu0 0
    %3283 = vmatprep.subr.bf16.mxu0 0
    %3284 = vmatpush1.bf16.msra.mxu0 0
    %3285 = vmatprep.subr.bf16.mxu0 0
    %3286 = vmatpush1.bf16.msra.mxu0 0
    %3287 = vmatprep.mubr.bf16.mxu0 0
    %3288 = vmatmul.mubr.bf16.gmra.mrb[0].mxu0 %v3059
    %v3289 = vpop.f32.mrb[0].mxu0
    %v3290 = vadd.f32 0.0, %v3289
    %v3291 = vpop.f32.mrb[0].mxu0
    %v3292 = vadd.f32 0.0, %v3291
    %v3293 = vpop.f32.mrb[0].mxu0
    %v3294 = vpop.f32.mrb[0].mxu0
    %3295 = vdwg.mxu0
    %3296 = vmatprep.subr.bf16.mxu0 %v278
    %3297 = vmatpush1.bf16.msra.mxu0 %v277
    %3298 = vmatprep.subr.bf16.mxu0 %v282
    %3299 = vmatpush1.bf16.msra.mxu0 %v281
    %3300 = vmatprep.subr.bf16.mxu0 %v286
    %3301 = vmatpush1.bf16.msra.mxu0 %v285
    %3302 = vmatprep.subr.bf16.mxu0 %v290
    %3303 = vmatpush1.bf16.msra.mxu0 %v289
    %3304 = vmatprep.subr.bf16.mxu0 %v294
    %3305 = vmatpush1.bf16.msra.mxu0 %v293
    %3306 = vmatprep.subr.bf16.mxu0 %v298
    %3307 = vmatpush1.bf16.msra.mxu0 %v297
    %3308 = vmatprep.subr.bf16.mxu0 %v302
    %3309 = vmatpush1.bf16.msra.mxu0 %v301
    %3310 = vmatprep.subr.bf16.mxu0 %v306
    %3311 = vmatpush1.bf16.msra.mxu0 %v305
    %3312 = vmatprep.subr.bf16.mxu0 0
    %3313 = vmatpush1.bf16.msra.mxu0 0
    %3314 = vmatprep.subr.bf16.mxu0 0
    %3315 = vmatpush1.bf16.msra.mxu0 0
    %3316 = vmatprep.subr.bf16.mxu0 0
    %3317 = vmatpush1.bf16.msra.mxu0 0
    %3318 = vmatprep.subr.bf16.mxu0 0
    %3319 = vmatpush1.bf16.msra.mxu0 0
    %3320 = vmatprep.subr.bf16.mxu0 0
    %3321 = vmatpush1.bf16.msra.mxu0 0
    %3322 = vmatprep.subr.bf16.mxu0 0
    %3323 = vmatpush1.bf16.msra.mxu0 0
    %3324 = vmatprep.subr.bf16.mxu0 0
    %3325 = vmatpush1.bf16.msra.mxu0 0
    %3326 = vmatprep.subr.bf16.mxu0 0
    %3327 = vmatpush1.bf16.msra.mxu0 0
    %3328 = vmatprep.mubr.bf16.mxu0 0
    %3329 = vmatmul.mubr.bf16.gmra.mrb[0].mxu0 %v3059
    %v3330 = vpop.f32.mrb[0].mxu0
    %v3331 = vadd.f32 0.0, %v3330
    %v3332 = vpop.f32.mrb[0].mxu0
    %v3333 = vadd.f32 0.0, %v3332
    %v3334 = vpop.f32.mrb[0].mxu0
    %v3335 = vpop.f32.mrb[0].mxu0
    %3336 = vdwg.mxu0
    %3337 = vmatprep.subr.bf16.mxu0 %v518
    %3338 = vmatpush1.bf16.msra.mxu0 %v517
    %3339 = vmatprep.subr.bf16.mxu0 %v522
    %3340 = vmatpush1.bf16.msra.mxu0 %v521
    %3341 = vmatprep.subr.bf16.mxu0 %v526
    %3342 = vmatpush1.bf16.msra.mxu0 %v525
    %3343 = vmatprep.subr.bf16.mxu0 %v530
    %3344 = vmatpush1.bf16.msra.mxu0 %v529
    %3345 = vmatprep.subr.bf16.mxu0 %v534
    %3346 = vmatpush1.bf16.msra.mxu0 %v533
    %3347 = vmatprep.subr.bf16.mxu0 %v538
    %3348 = vmatpush1.bf16.msra.mxu0 %v537
    %3349 = vmatprep.subr.bf16.mxu0 %v542
    %3350 = vmatpush1.bf16.msra.mxu0 %v541
    %3351 = vmatprep.subr.bf16.mxu0 %v546
    %3352 = vmatpush1.bf16.msra.mxu0 %v545
    %3353 = vmatprep.subr.bf16.mxu0 0
    %3354 = vmatpush1.bf16.msra.mxu0 0
    %3355 = vmatprep.subr.bf16.mxu0 0
    %3356 = vmatpush1.bf16.msra.mxu0 0
    %3357 = vmatprep.subr.bf16.mxu0 0
    %3358 = vmatpush1.bf16.msra.mxu0 0
    %3359 = vmatprep.subr.bf16.mxu0 0
    %3360 = vmatpush1.bf16.msra.mxu0 0
    %3361 = vmatprep.subr.bf16.mxu0 0
    %3362 = vmatpush1.bf16.msra.mxu0 0
    %3363 = vmatprep.subr.bf16.mxu0 0
    %3364 = vmatpush1.bf16.msra.mxu0 0
    %3365 = vmatprep.subr.bf16.mxu0 0
    %3366 = vmatpush1.bf16.msra.mxu0 0
    %3367 = vmatprep.subr.bf16.mxu0 0
    %3368 = vmatpush1.bf16.msra.mxu0 0
    %3369 = vmatprep.mubr.bf16.mxu0 0
    %3370 = vmatmul.mubr.bf16.gmra.mrb[0].mxu0 %v3254
    %v3371 = vpop.f32.mrb[0].mxu0
    %v3372 = vadd.f32 %v3290, %v3371
    %v3373 = vpop.f32.mrb[0].mxu0
    %v3374 = vadd.f32 %v3292, %v3373
    %v3375 = vpop.f32.mrb[0].mxu0
    %v3376 = vpop.f32.mrb[0].mxu0
    %3377 = vdwg.mxu0
    %3378 = vmatprep.subr.bf16.mxu0 %v520
    %3379 = vmatpush1.bf16.msra.mxu0 %v519
    %3380 = vmatprep.subr.bf16.mxu0 %v524
    %3381 = vmatpush1.bf16.msra.mxu0 %v523
    %3382 = vmatprep.subr.bf16.mxu0 %v528
    %3383 = vmatpush1.bf16.msra.mxu0 %v527
    %3384 = vmatprep.subr.bf16.mxu0 %v532
    %3385 = vmatpush1.bf16.msra.mxu0 %v531
    %3386 = vmatprep.subr.bf16.mxu0 %v536
    %3387 = vmatpush1.bf16.msra.mxu0 %v535
    %3388 = vmatprep.subr.bf16.mxu0 %v540
    %3389 = vmatpush1.bf16.msra.mxu0 %v539
    %3390 = vmatprep.subr.bf16.mxu0 %v544
    %3391 = vmatpush1.bf16.msra.mxu0 %v543
    %3392 = vmatprep.subr.bf16.mxu0 %v548
    %3393 = vmatpush1.bf16.msra.mxu0 %v547
    %3394 = vmatprep.subr.bf16.mxu0 0
    %3395 = vmatpush1.bf16.msra.mxu0 0
    %3396 = vmatprep.subr.bf16.mxu0 0
    %3397 = vmatpush1.bf16.msra.mxu0 0
    %3398 = vmatprep.subr.bf16.mxu0 0
    %3399 = vmatpush1.bf16.msra.mxu0 0
    %3400 = vmatprep.subr.bf16.mxu0 0
    %3401 = vmatpush1.bf16.msra.mxu0 0
    %3402 = vmatprep.subr.bf16.mxu0 0
    %3403 = vmatpush1.bf16.msra.mxu0 0
    %3404 = vmatprep.subr.bf16.mxu0 0
    %3405 = vmatpush1.bf16.msra.mxu0 0
    %3406 = vmatprep.subr.bf16.mxu0 0
    %3407 = vmatpush1.bf16.msra.mxu0 0
    %3408 = vmatprep.subr.bf16.mxu0 0
    %3409 = vmatpush1.bf16.msra.mxu0 0
    %3410 = vmatprep.mubr.bf16.mxu0 0
    %3411 = vmatmul.mubr.bf16.gmra.mrb[0].mxu0 %v3254
    %v3412 = vpop.f32.mrb[0].mxu0
    %v3413 = vadd.f32 %v3331, %v3412
    %v3414 = vpop.f32.mrb[0].mxu0
    %v3415 = vadd.f32 %v3333, %v3414
    %v3416 = vpop.f32.mrb[0].mxu0
    %v3417 = vpop.f32.mrb[0].mxu0
    %3418 = vdwg.mxu0
    %v3419 = vadd.f32 %v3372, %v668
    %v3420 = vadd.f32 %v3374, %v672
    %v3421 = vadd.f32 %v3413, %v676
    %v3422 = vadd.f32 %v3415, %v680
    %v3423 = vxor.u32 %v3419, 2147483648
    %v3424 = vmul.f32 %v3423, 1.442695
    %v3425 = vpow.pop %v3424
    %v3426 = vadd.f32 %v3425, 1.0
    %v3427 = vrcp.pop %v3426
    %v3428 = vmul.f32 1.0, %v3427
    %v3429 = vxor.u32 %v3420, 2147483648
    %v3430 = vmul.f32 %v3429, 1.442695
    %v3431 = vpow.pop %v3430
    %v3432 = vadd.f32 %v3431, 1.0
    %v3433 = vrcp.pop %v3432
    %v3434 = vmul.f32 1.0, %v3433
    %v3435 = vtanh.pop %v3421
    %v3436 = vxor.u32 %v3422, 2147483648
    %v3437 = vmul.f32 %v3436, 1.442695
    %v3438 = vpow.pop %v3437
    %v3439 = vadd.f32 %v3438, 1.0
    %v3440 = vrcp.pop %v3439
    %v3441 = vmul.f32 1.0, %v3440
    %v3442 = vmul.f32 %v3434, %v3056
    %v3443 = vmul.f32 %v3428, %v3435
    %v3444 = vadd.f32 %v3442, %v3443
    %v3445 = vtanh.pop %v3444
    %v3446 = vmul.f32 %v3441, %v3445
    %v3447 = vpack.c.bf16 %v3446, %v3446
    %v3448 = vpack.c.bf16 %v3252, %v3252
    %3449 = vmatprep.subr.bf16.mxu0 %v876
    %3450 = vmatpush1.bf16.msra.mxu0 %v875
    %3451 = vmatprep.subr.bf16.mxu0 %v880
    %3452 = vmatpush1.bf16.msra.mxu0 %v879
    %3453 = vmatprep.subr.bf16.mxu0 %v884
    %3454 = vmatpush1.bf16.msra.mxu0 %v883
    %3455 = vmatprep.subr.bf16.mxu0 %v888
    %3456 = vmatpush1.bf16.msra.mxu0 %v887
    %3457 = vmatprep.subr.bf16.mxu0 %v892
    %3458 = vmatpush1.bf16.msra.mxu0 %v891
    %3459 = vmatprep.subr.bf16.mxu0 %v896
    %3460 = vmatpush1.bf16.msra.mxu0 %v895
    %3461 = vmatprep.subr.bf16.mxu0 %v900
    %3462 = vmatpush1.bf16.msra.mxu0 %v899
    %3463 = vmatprep.subr.bf16.mxu0 %v904
    %3464 = vmatpush1.bf16.msra.mxu0 %v903
    %3465 = vmatprep.subr.bf16.mxu0 0
    %3466 = vmatpush1.bf16.msra.mxu0 0
    %3467 = vmatprep.subr.bf16.mxu0 0
    %3468 = vmatpush1.bf16.msra.mxu0 0
    %3469 = vmatprep.subr.bf16.mxu0 0
    %3470 = vmatpush1.bf16.msra.mxu0 0
    %3471 = vmatprep.subr.bf16.mxu0 0
    %3472 = vmatpush1.bf16.msra.mxu0 0
    %3473 = vmatprep.subr.bf16.mxu0 0
    %3474 = vmatpush1.bf16.msra.mxu0 0
    %3475 = vmatprep.subr.bf16.mxu0 0
    %3476 = vmatpush1.bf16.msra.mxu0 0
    %3477 = vmatprep.subr.bf16.mxu0 0
    %3478 = vmatpush1.bf16.msra.mxu0 0
    %3479 = vmatprep.subr.bf16.mxu0 0
    %3480 = vmatpush1.bf16.msra.mxu0 0
    %3481 = vmatprep.mubr.bf16.mxu0 0
    %3482 = vmatmul.mubr.bf16.gmra.mrb[0].mxu0 %v3448
    %v3483 = vpop.f32.mrb[0].mxu0
    %v3484 = vadd.f32 0.0, %v3483
    %v3485 = vpop.f32.mrb[0].mxu0
    %v3486 = vadd.f32 0.0, %v3485
    %v3487 = vpop.f32.mrb[0].mxu0
    %v3488 = vpop.f32.mrb[0].mxu0
    %3489 = vdwg.mxu0
    %3490 = vmatprep.subr.bf16.mxu0 %v878
    %3491 = vmatpush1.bf16.msra.mxu0 %v877
    %3492 = vmatprep.subr.bf16.mxu0 %v882
    %3493 = vmatpush1.bf16.msra.mxu0 %v881
    %3494 = vmatprep.subr.bf16.mxu0 %v886
    %3495 = vmatpush1.bf16.msra.mxu0 %v885
    %3496 = vmatprep.subr.bf16.mxu0 %v890
    %3497 = vmatpush1.bf16.msra.mxu0 %v889
    %3498 = vmatprep.subr.bf16.mxu0 %v894
    %3499 = vmatpush1.bf16.msra.mxu0 %v893
    %3500 = vmatprep.subr.bf16.mxu0 %v898
    %3501 = vmatpush1.bf16.msra.mxu0 %v897
    %3502 = vmatprep.subr.bf16.mxu0 %v902
    %3503 = vmatpush1.bf16.msra.mxu0 %v901
    %3504 = vmatprep.subr.bf16.mxu0 %v906
    %3505 = vmatpush1.bf16.msra.mxu0 %v905
    %3506 = vmatprep.subr.bf16.mxu0 0
    %3507 = vmatpush1.bf16.msra.mxu0 0
    %3508 = vmatprep.subr.bf16.mxu0 0
    %3509 = vmatpush1.bf16.msra.mxu0 0
    %3510 = vmatprep.subr.bf16.mxu0 0
    %3511 = vmatpush1.bf16.msra.mxu0 0
    %3512 = vmatprep.subr.bf16.mxu0 0
    %3513 = vmatpush1.bf16.msra.mxu0 0
    %3514 = vmatprep.subr.bf16.mxu0 0
    %3515 = vmatpush1.bf16.msra.mxu0 0
    %3516 = vmatprep.subr.bf16.mxu0 0
    %3517 = vmatpush1.bf16.msra.mxu0 0
    %3518 = vmatprep.subr.bf16.mxu0 0
    %3519 = vmatpush1.bf16.msra.mxu0 0
    %3520 = vmatprep.subr.bf16.mxu0 0
    %3521 = vmatpush1.bf16.msra.mxu0 0
    %3522 = vmatprep.mubr.bf16.mxu0 0
    %3523 = vmatmul.mubr.bf16.gmra.mrb[0].mxu0 %v3448
    %v3524 = vpop.f32.mrb[0].mxu0
    %v3525 = vadd.f32 0.0, %v3524
    %v3526 = vpop.f32.mrb[0].mxu0
    %v3527 = vadd.f32 0.0, %v3526
    %v3528 = vpop.f32.mrb[0].mxu0
    %v3529 = vpop.f32.mrb[0].mxu0
    %3530 = vdwg.mxu0
    %3531 = vmatprep.subr.bf16.mxu0 %v1118
    %3532 = vmatpush1.bf16.msra.mxu0 %v1117
    %3533 = vmatprep.subr.bf16.mxu0 %v1122
    %3534 = vmatpush1.bf16.msra.mxu0 %v1121
    %3535 = vmatprep.subr.bf16.mxu0 %v1126
    %3536 = vmatpush1.bf16.msra.mxu0 %v1125
    %3537 = vmatprep.subr.bf16.mxu0 %v1130
    %3538 = vmatpush1.bf16.msra.mxu0 %v1129
    %3539 = vmatprep.subr.bf16.mxu0 %v1134
    %3540 = vmatpush1.bf16.msra.mxu0 %v1133
    %3541 = vmatprep.subr.bf16.mxu0 %v1138
    %3542 = vmatpush1.bf16.msra.mxu0 %v1137
    %3543 = vmatprep.subr.bf16.mxu0 %v1142
    %3544 = vmatpush1.bf16.msra.mxu0 %v1141
    %3545 = vmatprep.subr.bf16.mxu0 %v1146
    %3546 = vmatpush1.bf16.msra.mxu0 %v1145
    %3547 = vmatprep.subr.bf16.mxu0 0
    %3548 = vmatpush1.bf16.msra.mxu0 0
    %3549 = vmatprep.subr.bf16.mxu0 0
    %3550 = vmatpush1.bf16.msra.mxu0 0
    %3551 = vmatprep.subr.bf16.mxu0 0
    %3552 = vmatpush1.bf16.msra.mxu0 0
    %3553 = vmatprep.subr.bf16.mxu0 0
    %3554 = vmatpush1.bf16.msra.mxu0 0
    %3555 = vmatprep.subr.bf16.mxu0 0
    %3556 = vmatpush1.bf16.msra.mxu0 0
    %3557 = vmatprep.subr.bf16.mxu0 0
    %3558 = vmatpush1.bf16.msra.mxu0 0
    %3559 = vmatprep.subr.bf16.mxu0 0
    %3560 = vmatpush1.bf16.msra.mxu0 0
    %3561 = vmatprep.subr.bf16.mxu0 0
    %3562 = vmatpush1.bf16.msra.mxu0 0
    %3563 = vmatprep.mubr.bf16.mxu0 0
    %3564 = vmatmul.mubr.bf16.gmra.mrb[0].mxu0 %v3447
    %v3565 = vpop.f32.mrb[0].mxu0
    %v3566 = vadd.f32 %v3484, %v3565
    %v3567 = vpop.f32.mrb[0].mxu0
    %v3568 = vadd.f32 %v3486, %v3567
    %v3569 = vpop.f32.mrb[0].mxu0
    %v3570 = vpop.f32.mrb[0].mxu0
    %3571 = vdwg.mxu0
    %3572 = vmatprep.subr.bf16.mxu0 %v1120
    %3573 = vmatpush1.bf16.msra.mxu0 %v1119
    %3574 = vmatprep.subr.bf16.mxu0 %v1124
    %3575 = vmatpush1.bf16.msra.mxu0 %v1123
    %3576 = vmatprep.subr.bf16.mxu0 %v1128
    %3577 = vmatpush1.bf16.msra.mxu0 %v1127
    %3578 = vmatprep.subr.bf16.mxu0 %v1132
    %3579 = vmatpush1.bf16.msra.mxu0 %v1131
    %3580 = vmatprep.subr.bf16.mxu0 %v1136
    %3581 = vmatpush1.bf16.msra.mxu0 %v1135
    %3582 = vmatprep.subr.bf16.mxu0 %v1140
    %3583 = vmatpush1.bf16.msra.mxu0 %v1139
    %3584 = vmatprep.subr.bf16.mxu0 %v1144
    %3585 = vmatpush1.bf16.msra.mxu0 %v1143
    %3586 = vmatprep.subr.bf16.mxu0 %v1148
    %3587 = vmatpush1.bf16.msra.mxu0 %v1147
    %3588 = vmatprep.subr.bf16.mxu0 0
    %3589 = vmatpush1.bf16.msra.mxu0 0
    %3590 = vmatprep.subr.bf16.mxu0 0
    %3591 = vmatpush1.bf16.msra.mxu0 0
    %3592 = vmatprep.subr.bf16.mxu0 0
    %3593 = vmatpush1.bf16.msra.mxu0 0
    %3594 = vmatprep.subr.bf16.mxu0 0
    %3595 = vmatpush1.bf16.msra.mxu0 0
    %3596 = vmatprep.subr.bf16.mxu0 0
    %3597 = vmatpush1.bf16.msra.mxu0 0
    %3598 = vmatprep.subr.bf16.mxu0 0
    %3599 = vmatpush1.bf16.msra.mxu0 0
    %3600 = vmatprep.subr.bf16.mxu0 0
    %3601 = vmatpush1.bf16.msra.mxu0 0
    %3602 = vmatprep.subr.bf16.mxu0 0
    %3603 = vmatpush1.bf16.msra.mxu0 0
    %3604 = vmatprep.mubr.bf16.mxu0 0
    %3605 = vmatmul.mubr.bf16.gmra.mrb[0].mxu0 %v3447
    %v3606 = vpop.f32.mrb[0].mxu0
    %v3607 = vadd.f32 %v3525, %v3606
    %v3608 = vpop.f32.mrb[0].mxu0
    %v3609 = vadd.f32 %v3527, %v3608
    %v3610 = vpop.f32.mrb[0].mxu0
    %v3611 = vpop.f32.mrb[0].mxu0
    %3612 = vdwg.mxu0
    %v3613 = vadd.f32 %v3566, %v1268
    %v3614 = vadd.f32 %v3568, %v1272
    %v3615 = vadd.f32 %v3607, %v1276
    %v3616 = vadd.f32 %v3609, %v1280
    %v3617 = vxor.u32 %v3613, 2147483648
    %v3618 = vmul.f32 %v3617, 1.442695
    %v3619 = vpow.pop %v3618
    %v3620 = vadd.f32 %v3619, 1.0
    %v3621 = vrcp.pop %v3620
    %v3622 = vmul.f32 1.0, %v3621
    %v3623 = vxor.u32 %v3614, 2147483648
    %v3624 = vmul.f32 %v3623, 1.442695
    %v3625 = vpow.pop %v3624
    %v3626 = vadd.f32 %v3625, 1.0
    %v3627 = vrcp.pop %v3626
    %v3628 = vmul.f32 1.0, %v3627
    %v3629 = vtanh.pop %v3615
    %v3630 = vxor.u32 %v3616, 2147483648
    %v3631 = vmul.f32 %v3630, 1.442695
    %v3632 = vpow.pop %v3631
    %v3633 = vadd.f32 %v3632, 1.0
    %v3634 = vrcp.pop %v3633
    %v3635 = vmul.f32 1.0, %v3634
    %v3636 = vmul.f32 %v3628, %v3250
    %v3637 = vmul.f32 %v3622, %v3629
    %v3638 = vadd.f32 %v3636, %v3637
    %v3639 = vtanh.pop %v3638
    %v3640 = vmul.f32 %v3635, %v3639
    %s3641 = scalar_lea.vmem [#allocation2], 28
    %v3642 = vld [vmem:[%s3641] sm:$0xf]
    %3643 = vmatprep.subr.bf16.mxu0 %v276
    %3644 = vmatpush1.bf16.msra.mxu0 %v275
    %3645 = vmatprep.subr.bf16.mxu0 %v280
    %3646 = vmatpush1.bf16.msra.mxu0 %v279
    %3647 = vmatprep.subr.bf16.mxu0 %v284
    %3648 = vmatpush1.bf16.msra.mxu0 %v283
    %3649 = vmatprep.subr.bf16.mxu0 %v288
    %3650 = vmatpush1.bf16.msra.mxu0 %v287
    %3651 = vmatprep.subr.bf16.mxu0 %v292
    %3652 = vmatpush1.bf16.msra.mxu0 %v291
    %3653 = vmatprep.subr.bf16.mxu0 %v296
    %3654 = vmatpush1.bf16.msra.mxu0 %v295
    %3655 = vmatprep.subr.bf16.mxu0 %v300
    %3656 = vmatpush1.bf16.msra.mxu0 %v299
    %3657 = vmatprep.subr.bf16.mxu0 %v304
    %3658 = vmatpush1.bf16.msra.mxu0 %v303
    %3659 = vmatprep.subr.bf16.mxu0 0
    %3660 = vmatpush1.bf16.msra.mxu0 0
    %3661 = vmatprep.subr.bf16.mxu0 0
    %3662 = vmatpush1.bf16.msra.mxu0 0
    %3663 = vmatprep.subr.bf16.mxu0 0
    %3664 = vmatpush1.bf16.msra.mxu0 0
    %3665 = vmatprep.subr.bf16.mxu0 0
    %3666 = vmatpush1.bf16.msra.mxu0 0
    %3667 = vmatprep.subr.bf16.mxu0 0
    %3668 = vmatpush1.bf16.msra.mxu0 0
    %3669 = vmatprep.subr.bf16.mxu0 0
    %3670 = vmatpush1.bf16.msra.mxu0 0
    %3671 = vmatprep.subr.bf16.mxu0 0
    %3672 = vmatpush1.bf16.msra.mxu0 0
    %3673 = vmatprep.subr.bf16.mxu0 0
    %3674 = vmatpush1.bf16.msra.mxu0 0
    %3675 = vmatprep.mubr.bf16.mxu0 0
    %3676 = vmatmul.mubr.bf16.gmra.mrb[0].mxu0 %v3447
    %v3677 = vpop.f32.mrb[0].mxu0
    %v3678 = vadd.f32 0.0, %v3677
    %v3679 = vpop.f32.mrb[0].mxu0
    %v3680 = vadd.f32 0.0, %v3679
    %v3681 = vpop.f32.mrb[0].mxu0
    %v3682 = vpop.f32.mrb[0].mxu0
    %3683 = vdwg.mxu0
    %3684 = vmatprep.subr.bf16.mxu0 %v278
    %3685 = vmatpush1.bf16.msra.mxu0 %v277
    %3686 = vmatprep.subr.bf16.mxu0 %v282
    %3687 = vmatpush1.bf16.msra.mxu0 %v281
    %3688 = vmatprep.subr.bf16.mxu0 %v286
    %3689 = vmatpush1.bf16.msra.mxu0 %v285
    %3690 = vmatprep.subr.bf16.mxu0 %v290
    %3691 = vmatpush1.bf16.msra.mxu0 %v289
    %3692 = vmatprep.subr.bf16.mxu0 %v294
    %3693 = vmatpush1.bf16.msra.mxu0 %v293
    %3694 = vmatprep.subr.bf16.mxu0 %v298
    %3695 = vmatpush1.bf16.msra.mxu0 %v297
    %3696 = vmatprep.subr.bf16.mxu0 %v302
    %3697 = vmatpush1.bf16.msra.mxu0 %v301
    %3698 = vmatprep.subr.bf16.mxu0 %v306
    %3699 = vmatpush1.bf16.msra.mxu0 %v305
    %3700 = vmatprep.subr.bf16.mxu0 0
    %3701 = vmatpush1.bf16.msra.mxu0 0
    %3702 = vmatprep.subr.bf16.mxu0 0
    %3703 = vmatpush1.bf16.msra.mxu0 0
    %3704 = vmatprep.subr.bf16.mxu0 0
    %3705 = vmatpush1.bf16.msra.mxu0 0
    %3706 = vmatprep.subr.bf16.mxu0 0
    %3707 = vmatpush1.bf16.msra.mxu0 0
    %3708 = vmatprep.subr.bf16.mxu0 0
    %3709 = vmatpush1.bf16.msra.mxu0 0
    %3710 = vmatprep.subr.bf16.mxu0 0
    %3711 = vmatpush1.bf16.msra.mxu0 0
    %3712 = vmatprep.subr.bf16.mxu0 0
    %3713 = vmatpush1.bf16.msra.mxu0 0
    %3714 = vmatprep.subr.bf16.mxu0 0
    %3715 = vmatpush1.bf16.msra.mxu0 0
    %3716 = vmatprep.mubr.bf16.mxu0 0
    %3717 = vmatmul.mubr.bf16.gmra.mrb[0].mxu0 %v3447
    %v3718 = vpop.f32.mrb[0].mxu0
    %v3719 = vadd.f32 0.0, %v3718
    %v3720 = vpop.f32.mrb[0].mxu0
    %v3721 = vadd.f32 0.0, %v3720
    %v3722 = vpop.f32.mrb[0].mxu0
    %v3723 = vpop.f32.mrb[0].mxu0
    %3724 = vdwg.mxu0
    %3725 = vmatprep.subr.bf16.mxu0 %v518
    %3726 = vmatpush1.bf16.msra.mxu0 %v517
    %3727 = vmatprep.subr.bf16.mxu0 %v522
    %3728 = vmatpush1.bf16.msra.mxu0 %v521
    %3729 = vmatprep.subr.bf16.mxu0 %v526
    %3730 = vmatpush1.bf16.msra.mxu0 %v525
    %3731 = vmatprep.subr.bf16.mxu0 %v530
    %3732 = vmatpush1.bf16.msra.mxu0 %v529
    %3733 = vmatprep.subr.bf16.mxu0 %v534
    %3734 = vmatpush1.bf16.msra.mxu0 %v533
    %3735 = vmatprep.subr.bf16.mxu0 %v538
    %3736 = vmatpush1.bf16.msra.mxu0 %v537
    %3737 = vmatprep.subr.bf16.mxu0 %v542
    %3738 = vmatpush1.bf16.msra.mxu0 %v541
    %3739 = vmatprep.subr.bf16.mxu0 %v546
    %3740 = vmatpush1.bf16.msra.mxu0 %v545
    %3741 = vmatprep.subr.bf16.mxu0 0
    %3742 = vmatpush1.bf16.msra.mxu0 0
    %3743 = vmatprep.subr.bf16.mxu0 0
    %3744 = vmatpush1.bf16.msra.mxu0 0
    %3745 = vmatprep.subr.bf16.mxu0 0
    %3746 = vmatpush1.bf16.msra.mxu0 0
    %3747 = vmatprep.subr.bf16.mxu0 0
    %3748 = vmatpush1.bf16.msra.mxu0 0
    %3749 = vmatprep.subr.bf16.mxu0 0
    %3750 = vmatpush1.bf16.msra.mxu0 0
    %3751 = vmatprep.subr.bf16.mxu0 0
    %3752 = vmatpush1.bf16.msra.mxu0 0
    %3753 = vmatprep.subr.bf16.mxu0 0
    %3754 = vmatpush1.bf16.msra.mxu0 0
    %3755 = vmatprep.subr.bf16.mxu0 0
    %3756 = vmatpush1.bf16.msra.mxu0 0
    %3757 = vmatprep.mubr.bf16.mxu0 0
    %3758 = vmatmul.mubr.bf16.gmra.mrb[0].mxu0 %v3642
    %v3759 = vpop.f32.mrb[0].mxu0
    %v3760 = vadd.f32 %v3678, %v3759
    %v3761 = vpop.f32.mrb[0].mxu0
    %v3762 = vadd.f32 %v3680, %v3761
    %v3763 = vpop.f32.mrb[0].mxu0
    %v3764 = vpop.f32.mrb[0].mxu0
    %3765 = vdwg.mxu0
    %3766 = vmatprep.subr.bf16.mxu0 %v520
    %3767 = vmatpush1.bf16.msra.mxu0 %v519
    %3768 = vmatprep.subr.bf16.mxu0 %v524
    %3769 = vmatpush1.bf16.msra.mxu0 %v523
    %3770 = vmatprep.subr.bf16.mxu0 %v528
    %3771 = vmatpush1.bf16.msra.mxu0 %v527
    %3772 = vmatprep.subr.bf16.mxu0 %v532
    %3773 = vmatpush1.bf16.msra.mxu0 %v531
    %3774 = vmatprep.subr.bf16.mxu0 %v536
    %3775 = vmatpush1.bf16.msra.mxu0 %v535
    %3776 = vmatprep.subr.bf16.mxu0 %v540
    %3777 = vmatpush1.bf16.msra.mxu0 %v539
    %3778 = vmatprep.subr.bf16.mxu0 %v544
    %3779 = vmatpush1.bf16.msra.mxu0 %v543
    %3780 = vmatprep.subr.bf16.mxu0 %v548
    %3781 = vmatpush1.bf16.msra.mxu0 %v547
    %3782 = vmatprep.subr.bf16.mxu0 0
    %3783 = vmatpush1.bf16.msra.mxu0 0
    %3784 = vmatprep.subr.bf16.mxu0 0
    %3785 = vmatpush1.bf16.msra.mxu0 0
    %3786 = vmatprep.subr.bf16.mxu0 0
    %3787 = vmatpush1.bf16.msra.mxu0 0
    %3788 = vmatprep.subr.bf16.mxu0 0
    %3789 = vmatpush1.bf16.msra.mxu0 0
    %3790 = vmatprep.subr.bf16.mxu0 0
    %3791 = vmatpush1.bf16.msra.mxu0 0
    %3792 = vmatprep.subr.bf16.mxu0 0
    %3793 = vmatpush1.bf16.msra.mxu0 0
    %3794 = vmatprep.subr.bf16.mxu0 0
    %3795 = vmatpush1.bf16.msra.mxu0 0
    %3796 = vmatprep.subr.bf16.mxu0 0
    %3797 = vmatpush1.bf16.msra.mxu0 0
    %3798 = vmatprep.mubr.bf16.mxu0 0
    %3799 = vmatmul.mubr.bf16.gmra.mrb[0].mxu0 %v3642
    %v3800 = vpop.f32.mrb[0].mxu0
    %v3801 = vadd.f32 %v3719, %v3800
    %v3802 = vpop.f32.mrb[0].mxu0
    %v3803 = vadd.f32 %v3721, %v3802
    %v3804 = vpop.f32.mrb[0].mxu0
    %v3805 = vpop.f32.mrb[0].mxu0
    %3806 = vdwg.mxu0
    %v3807 = vadd.f32 %v3760, %v668
    %v3808 = vadd.f32 %v3762, %v672
    %v3809 = vadd.f32 %v3801, %v676
    %v3810 = vadd.f32 %v3803, %v680
    %v3811 = vxor.u32 %v3807, 2147483648
    %v3812 = vmul.f32 %v3811, 1.442695
    %v3813 = vpow.pop %v3812
    %v3814 = vadd.f32 %v3813, 1.0
    %v3815 = vrcp.pop %v3814
    %v3816 = vmul.f32 1.0, %v3815
    %v3817 = vxor.u32 %v3808, 2147483648
    %v3818 = vmul.f32 %v3817, 1.442695
    %v3819 = vpow.pop %v3818
    %v3820 = vadd.f32 %v3819, 1.0
    %v3821 = vrcp.pop %v3820
    %v3822 = vmul.f32 1.0, %v3821
    %v3823 = vtanh.pop %v3809
    %v3824 = vxor.u32 %v3810, 2147483648
    %v3825 = vmul.f32 %v3824, 1.442695
    %v3826 = vpow.pop %v3825
    %v3827 = vadd.f32 %v3826, 1.0
    %v3828 = vrcp.pop %v3827
    %v3829 = vmul.f32 1.0, %v3828
    %v3830 = vmul.f32 %v3822, %v3444
    %v3831 = vmul.f32 %v3816, %v3823
    %v3832 = vadd.f32 %v3830, %v3831
    %v3833 = vtanh.pop %v3832
    %v3834 = vmul.f32 %v3829, %v3833
    %v3835 = vpack.c.bf16 %v3834, %v3834
    %v3836 = vpack.c.bf16 %v3640, %v3640
    %3837 = vmatprep.subr.bf16.mxu0 %v876
    %3838 = vmatpush1.bf16.msra.mxu0 %v875
    %3839 = vmatprep.subr.bf16.mxu0 %v880
    %3840 = vmatpush1.bf16.msra.mxu0 %v879
    %3841 = vmatprep.subr.bf16.mxu0 %v884
    %3842 = vmatpush1.bf16.msra.mxu0 %v883
    %3843 = vmatprep.subr.bf16.mxu0 %v888
    %3844 = vmatpush1.bf16.msra.mxu0 %v887
    %3845 = vmatprep.subr.bf16.mxu0 %v892
    %3846 = vmatpush1.bf16.msra.mxu0 %v891
    %3847 = vmatprep.subr.bf16.mxu0 %v896
    %3848 = vmatpush1.bf16.msra.mxu0 %v895
    %3849 = vmatprep.subr.bf16.mxu0 %v900
    %3850 = vmatpush1.bf16.msra.mxu0 %v899
    %3851 = vmatprep.subr.bf16.mxu0 %v904
    %3852 = vmatpush1.bf16.msra.mxu0 %v903
    %3853 = vmatprep.subr.bf16.mxu0 0
    %3854 = vmatpush1.bf16.msra.mxu0 0
    %3855 = vmatprep.subr.bf16.mxu0 0
    %3856 = vmatpush1.bf16.msra.mxu0 0
    %3857 = vmatprep.subr.bf16.mxu0 0
    %3858 = vmatpush1.bf16.msra.mxu0 0
    %3859 = vmatprep.subr.bf16.mxu0 0
    %3860 = vmatpush1.bf16.msra.mxu0 0
    %3861 = vmatprep.subr.bf16.mxu0 0
    %3862 = vmatpush1.bf16.msra.mxu0 0
    %3863 = vmatprep.subr.bf16.mxu0 0
    %3864 = vmatpush1.bf16.msra.mxu0 0
    %3865 = vmatprep.subr.bf16.mxu0 0
    %3866 = vmatpush1.bf16.msra.mxu0 0
    %3867 = vmatprep.subr.bf16.mxu0 0
    %3868 = vmatpush1.bf16.msra.mxu0 0
    %3869 = vmatprep.mubr.bf16.mxu0 0
    %3870 = vmatmul.mubr.bf16.gmra.mrb[0].mxu0 %v3836
    %v3871 = vpop.f32.mrb[0].mxu0
    %v3872 = vadd.f32 0.0, %v3871
    %v3873 = vpop.f32.mrb[0].mxu0
    %v3874 = vadd.f32 0.0, %v3873
    %v3875 = vpop.f32.mrb[0].mxu0
    %v3876 = vpop.f32.mrb[0].mxu0
    %3877 = vdwg.mxu0
    %3878 = vmatprep.subr.bf16.mxu0 %v878
    %3879 = vmatpush1.bf16.msra.mxu0 %v877
    %3880 = vmatprep.subr.bf16.mxu0 %v882
    %3881 = vmatpush1.bf16.msra.mxu0 %v881
    %3882 = vmatprep.subr.bf16.mxu0 %v886
    %3883 = vmatpush1.bf16.msra.mxu0 %v885
    %3884 = vmatprep.subr.bf16.mxu0 %v890
    %3885 = vmatpush1.bf16.msra.mxu0 %v889
    %3886 = vmatprep.subr.bf16.mxu0 %v894
    %3887 = vmatpush1.bf16.msra.mxu0 %v893
    %3888 = vmatprep.subr.bf16.mxu0 %v898
    %3889 = vmatpush1.bf16.msra.mxu0 %v897
    %3890 = vmatprep.subr.bf16.mxu0 %v902
    %3891 = vmatpush1.bf16.msra.mxu0 %v901
    %3892 = vmatprep.subr.bf16.mxu0 %v906
    %3893 = vmatpush1.bf16.msra.mxu0 %v905
    %3894 = vmatprep.subr.bf16.mxu0 0
    %3895 = vmatpush1.bf16.msra.mxu0 0
    %3896 = vmatprep.subr.bf16.mxu0 0
    %3897 = vmatpush1.bf16.msra.mxu0 0
    %3898 = vmatprep.subr.bf16.mxu0 0
    %3899 = vmatpush1.bf16.msra.mxu0 0
    %3900 = vmatprep.subr.bf16.mxu0 0
    %3901 = vmatpush1.bf16.msra.mxu0 0
    %3902 = vmatprep.subr.bf16.mxu0 0
    %3903 = vmatpush1.bf16.msra.mxu0 0
    %3904 = vmatprep.subr.bf16.mxu0 0
    %3905 = vmatpush1.bf16.msra.mxu0 0
    %3906 = vmatprep.subr.bf16.mxu0 0
    %3907 = vmatpush1.bf16.msra.mxu0 0
    %3908 = vmatprep.subr.bf16.mxu0 0
    %3909 = vmatpush1.bf16.msra.mxu0 0
    %3910 = vmatprep.mubr.bf16.mxu0 0
    %3911 = vmatmul.mubr.bf16.gmra.mrb[0].mxu0 %v3836
    %v3912 = vpop.f32.mrb[0].mxu0
    %v3913 = vadd.f32 0.0, %v3912
    %v3914 = vpop.f32.mrb[0].mxu0
    %v3915 = vadd.f32 0.0, %v3914
    %v3916 = vpop.f32.mrb[0].mxu0
    %v3917 = vpop.f32.mrb[0].mxu0
    %3918 = vdwg.mxu0
    %3919 = vmatprep.subr.bf16.mxu0 %v1118
    %3920 = vmatpush1.bf16.msra.mxu0 %v1117
    %3921 = vmatprep.subr.bf16.mxu0 %v1122
    %3922 = vmatpush1.bf16.msra.mxu0 %v1121
    %3923 = vmatprep.subr.bf16.mxu0 %v1126
    %3924 = vmatpush1.bf16.msra.mxu0 %v1125
    %3925 = vmatprep.subr.bf16.mxu0 %v1130
    %3926 = vmatpush1.bf16.msra.mxu0 %v1129
    %3927 = vmatprep.subr.bf16.mxu0 %v1134
    %3928 = vmatpush1.bf16.msra.mxu0 %v1133
    %3929 = vmatprep.subr.bf16.mxu0 %v1138
    %3930 = vmatpush1.bf16.msra.mxu0 %v1137
    %3931 = vmatprep.subr.bf16.mxu0 %v1142
    %3932 = vmatpush1.bf16.msra.mxu0 %v1141
    %3933 = vmatprep.subr.bf16.mxu0 %v1146
    %3934 = vmatpush1.bf16.msra.mxu0 %v1145
    %3935 = vmatprep.subr.bf16.mxu0 0
    %3936 = vmatpush1.bf16.msra.mxu0 0
    %3937 = vmatprep.subr.bf16.mxu0 0
    %3938 = vmatpush1.bf16.msra.mxu0 0
    %3939 = vmatprep.subr.bf16.mxu0 0
    %3940 = vmatpush1.bf16.msra.mxu0 0
    %3941 = vmatprep.subr.bf16.mxu0 0
    %3942 = vmatpush1.bf16.msra.mxu0 0
    %3943 = vmatprep.subr.bf16.mxu0 0
    %3944 = vmatpush1.bf16.msra.mxu0 0
    %3945 = vmatprep.subr.bf16.mxu0 0
    %3946 = vmatpush1.bf16.msra.mxu0 0
    %3947 = vmatprep.subr.bf16.mxu0 0
    %3948 = vmatpush1.bf16.msra.mxu0 0
    %3949 = vmatprep.subr.bf16.mxu0 0
    %3950 = vmatpush1.bf16.msra.mxu0 0
    %3951 = vmatprep.mubr.bf16.mxu0 0
    %3952 = vmatmul.mubr.bf16.gmra.mrb[0].mxu0 %v3835
    %v3953 = vpop.f32.mrb[0].mxu0
    %v3954 = vadd.f32 %v3872, %v3953
    %v3955 = vpop.f32.mrb[0].mxu0
    %v3956 = vadd.f32 %v3874, %v3955
    %v3957 = vpop.f32.mrb[0].mxu0
    %v3958 = vpop.f32.mrb[0].mxu0
    %3959 = vdwg.mxu0
    %3960 = vmatprep.subr.bf16.mxu0 %v1120
    %3961 = vmatpush1.bf16.msra.mxu0 %v1119
    %3962 = vmatprep.subr.bf16.mxu0 %v1124
    %3963 = vmatpush1.bf16.msra.mxu0 %v1123
    %3964 = vmatprep.subr.bf16.mxu0 %v1128
    %3965 = vmatpush1.bf16.msra.mxu0 %v1127
    %3966 = vmatprep.subr.bf16.mxu0 %v1132
    %3967 = vmatpush1.bf16.msra.mxu0 %v1131
    %3968 = vmatprep.subr.bf16.mxu0 %v1136
    %3969 = vmatpush1.bf16.msra.mxu0 %v1135
    %3970 = vmatprep.subr.bf16.mxu0 %v1140
    %3971 = vmatpush1.bf16.msra.mxu0 %v1139
    %3972 = vmatprep.subr.bf16.mxu0 %v1144
    %3973 = vmatpush1.bf16.msra.mxu0 %v1143
    %3974 = vmatprep.subr.bf16.mxu0 %v1148
    %3975 = vmatpush1.bf16.msra.mxu0 %v1147
    %3976 = vmatprep.subr.bf16.mxu0 0
    %3977 = vmatpush1.bf16.msra.mxu0 0
    %3978 = vmatprep.subr.bf16.mxu0 0
    %3979 = vmatpush1.bf16.msra.mxu0 0
    %3980 = vmatprep.subr.bf16.mxu0 0
    %3981 = vmatpush1.bf16.msra.mxu0 0
    %3982 = vmatprep.subr.bf16.mxu0 0
    %3983 = vmatpush1.bf16.msra.mxu0 0
    %3984 = vmatprep.subr.bf16.mxu0 0
    %3985 = vmatpush1.bf16.msra.mxu0 0
    %3986 = vmatprep.subr.bf16.mxu0 0
    %3987 = vmatpush1.bf16.msra.mxu0 0
    %3988 = vmatprep.subr.bf16.mxu0 0
    %3989 = vmatpush1.bf16.msra.mxu0 0
    %3990 = vmatprep.subr.bf16.mxu0 0
    %3991 = vmatpush1.bf16.msra.mxu0 0
    %3992 = vmatprep.mubr.bf16.mxu0 0
    %3993 = vmatmul.mubr.bf16.gmra.mrb[0].mxu0 %v3835
    %v3994 = vpop.f32.mrb[0].mxu0
    %v3995 = vadd.f32 %v3913, %v3994
    %v3996 = vpop.f32.mrb[0].mxu0
    %v3997 = vadd.f32 %v3915, %v3996
    %v3998 = vpop.f32.mrb[0].mxu0
    %v3999 = vpop.f32.mrb[0].mxu0
    %4000 = vdwg.mxu0
    %v4001 = vadd.f32 %v3954, %v1268
    %v4002 = vadd.f32 %v3956, %v1272
    %v4003 = vadd.f32 %v3995, %v1276
    %v4004 = vadd.f32 %v3997, %v1280
    %v4005 = vxor.u32 %v4001, 2147483648
    %v4006 = vmul.f32 %v4005, 1.442695
    %v4007 = vpow.pop %v4006
    %v4008 = vadd.f32 %v4007, 1.0
    %v4009 = vrcp.pop %v4008
    %v4010 = vmul.f32 1.0, %v4009
    %v4011 = vxor.u32 %v4002, 2147483648
    %v4012 = vmul.f32 %v4011, 1.442695
    %v4013 = vpow.pop %v4012
    %v4014 = vadd.f32 %v4013, 1.0
    %v4015 = vrcp.pop %v4014
    %v4016 = vmul.f32 1.0, %v4015
    %v4017 = vtanh.pop %v4003
    %v4018 = vxor.u32 %v4004, 2147483648
    %v4019 = vmul.f32 %v4018, 1.442695
    %v4020 = vpow.pop %v4019
    %v4021 = vadd.f32 %v4020, 1.0
    %v4022 = vrcp.pop %v4021
    %v4023 = vmul.f32 1.0, %v4022
    %v4024 = vmul.f32 %v4016, %v3638
    %v4025 = vmul.f32 %v4010, %v4017
    %v4026 = vadd.f32 %v4024, %v4025
    %v4027 = vtanh.pop %v4026
    %v4028 = vmul.f32 %v4023, %v4027
    %4029 = vst [vmem:[#allocation11] sm:$0xff] %v3834
    %4030 = vst [vmem:[#allocation12] sm:$0xff] %v3832
    %4031 = vst [vmem:[%s108] sm:$0xff] %v4028
    %4032 = vst [vmem:[%s111] sm:$0xff] %v4026
    // Predicated region
    $region54: #{tpu_custom_call.1} parent=1 // pred_check
      _
    $region55: #{tpu_custom_call.1} parent=1 // pred_check_branch
      %4034 = sbr.rel (0) target = $region57
    $region56: #{tpu_custom_call.1} parent=1 // pred_region
      %s4036 = ssub.s32 256, 256
      %4037 = vsyncadd [#allocation4], %s4036
      %s4038 = sshll.u32 [#allocation11], 4
      %s4039 = int_to_ptr.vmem [resolvable:$true] %s4038
      %4044 = dma.vmem_to_hbm [thread:$0]  %s4039, 256, %s7, [#allocation4], 128, 128, 8
    $region57: #{tpu_custom_call.1} parent=1 // pred_fallthru
      _
    // Predicated region
    $region58: #{tpu_custom_call.1} parent=1 // pred_check
      _
    $region59: #{tpu_custom_call.1} parent=1 // pred_check_branch
      %4046 = sbr.rel (0) target = $region61
    $region60: #{tpu_custom_call.1} parent=1 // pred_region
      %s4048 = ssub.s32 256, 256
      %4049 = vsyncadd [#allocation13], %s4048
      %s4050 = sshll.u32 [#allocation12], 4
      %s4051 = int_to_ptr.vmem [resolvable:$true] %s4050
      %4056 = dma.vmem_to_hbm [thread:$0]  %s4051, 256, %s8, [#allocation13], 128, 128, 8
    $region61: #{tpu_custom_call.1} parent=1 // pred_fallthru
      _
    // Predicated region
    $region62: #{tpu_custom_call.1} parent=1 // pred_check
      _
    $region63: #{tpu_custom_call.1} parent=1 // pred_check_branch
      %4058 = sbr.rel (0) target = $region65
    $region64: #{tpu_custom_call.1} parent=1 // pred_region
      %4059 = dma.done [#allocation4], 256
    $region65: #{tpu_custom_call.1} parent=1 // pred_fallthru
      _
    // Predicated region
    $region66: #{tpu_custom_call.1} parent=1 // pred_check
      _
    $region67: #{tpu_custom_call.1} parent=1 // pred_check_branch
      %4061 = sbr.rel (0) target = $region69
    $region68: #{tpu_custom_call.1} parent=1 // pred_region
      %4062 = dma.done [#allocation13], 256
    $region69: #{tpu_custom_call.1} parent=1 // pred_fallthru
      _
    %4063 = vsyncpa [#allocation3], 1
    %4064 = vsyncpa [#allocation6], 1
    %4065 = vsyncpa [#allocation9], 1
    %4066 = vsyncpa [#allocation4], 1
    %4067 = vsyncpa [#allocation13], 1

</llo_original>
